<compile_context>
chip_gen: v7x
topology: tpu7x:2x2x1
jax: 0.10.0
libtpu: 0.0.40
codegen_flags: <defaults>
</compile_context>

<pallas_src>
import jax
import jax.numpy as jnp
import numpy as np
from jax.experimental import pallas as pl
from jax.experimental.pallas import tpu as pltpu


def _pick_images_per_step(B, C, HW, itemsize, max_pack=8, slab_budget=1 << 20):
    """Largest divisor of B (<= max_pack) whose packed x slab stays small."""
    per_image = C * HW * itemsize
    best = 1
    for bt in range(1, min(B, max_pack) + 1):
        if B % bt == 0 and bt * per_image <= slab_budget:
            best = bt
    return best


def _make_kernel(C, H, W, images_per_step, compute_dtype):
    """Builds the kernel body with static shifts / masks / tap order baked in."""
    HW = H * W
    offsets = [(ky - 1, kx - 1) for ky in range(3) for kx in range(3)]
    shifts = [(-(oy * W + ox)) % HW for (oy, ox) in offsets]
    pow2 = (W & (W - 1) == 0) and (H & (H - 1) == 0)
    w_bits = W.bit_length() - 1
    mm_precision = (jax.lax.Precision.HIGHEST
                    if np.dtype(compute_dtype) == jnp.float32
                    else jax.lax.Precision.DEFAULT)

    def kernel(x_ref, w1_ref, b1_ref, w2_ref, b2_ref, o_ref, col_ref):
        # x_ref / o_ref : (Bt, C, HW)        -- Bt packed NCHW images (lane dim HW)
        # w*_ref        : (C, 9*C)           -- BN-folded conv taps, col = k*C + cin
        # b*_ref        : (C, 1) f32         -- BN-folded bias
        # col_ref       : (9*C, Bt*HW) VMEM  -- im2col staging scratch

        # In-kernel border masks from a lane iota (no HBM mask tensor).
        lane = jax.lax.broadcasted_iota(jnp.int32, (1, HW), 1)
        if pow2:
            col_idx = lane & (W - 1)
            row_idx = lane >> w_bits
        else:
            col_idx = lane % W
            row_idx = lane // W
        masks = []
        for (oy, ox) in offsets:
            masks.append((row_idx + oy >= 0) & (row_idx + oy < H) &
                         (col_idx + ox >= 0) & (col_idx + ox < W))

        def stage(v, img):
            # v: (C, HW) in compute dtype.  Store the 9 rolled+masked taps of
            # image `img` into the im2col scratch (mask fused into the store).
            for k, (sh, m) in enumerate(zip(shifts, masks)):
                shifted = v if sh == 0 else pltpu.roll(v, shift=sh, axis=1)
                slab = shifted if k == 4 else jnp.where(m, shifted, 0)
                col_ref[pl.ds(k * C, C), pl.ds(img * HW, HW)] = slab

        def fused_conv(w_ref, b_ref):
            # Single MXU contraction over all 9 taps and Bt images at once.
            acc = jnp.dot(w_ref[...], col_ref[...],
                          preferred_element_type=jnp.float32,
                          precision=mm_precision)
            return acc + b_ref[...]                      # (C, Bt*HW) f32

        # conv1 + bn1 + relu
        for img in range(images_per_step):
            stage(x_ref[img], img)
        h = jnp.maximum(fused_conv(w1_ref, b1_ref), 0.0)

        # conv2 + bn2
        hc = h.astype(compute_dtype)
        for img in range(images_per_step):
            stage(hc[:, img * HW:(img + 1) * HW], img)
        y = fused_conv(w2_ref, b2_ref)

        # residual add + final relu (f32 epilogue)
        for img in range(images_per_step):
            res = x_ref[img].astype(jnp.float32)
            o_ref[img] = jnp.maximum(
                y[:, img * HW:(img + 1) * HW] + res, 0.0).astype(o_ref.dtype)

    return kernel


def residual_block(x, w1, b1, gamma1, beta1, mean1, var1,
                   w2, b2, gamma2, beta2, mean2, var2, *,
                   eps=1e-5, compute_dtype=jnp.float32):
    """Forward pass of ResidualBlock. x: (B, C, H, W), conv weights (C, C, 3, 3)."""
    B, C, H, W = x.shape
    HW = H * W
    orig_dtype = x.dtype
    cdt = np.dtype(compute_dtype)

    # Fold BN (eval mode):  bn(conv(x)) = (s * W) x + (s * b + beta - s * mean)
    s1 = gamma1 / jnp.sqrt(var1 + eps)
    s2 = gamma2 / jnp.sqrt(var2 + eps)
    w1f = (w1 * s1[:, None, None, None]).astype(jnp.float32)
    w2f = (w2 * s2[:, None, None, None]).astype(jnp.float32)
    b1f = (s1 * b1 + beta1 - s1 * mean1).reshape(C, 1).astype(jnp.float32)
    b2f = (s2 * b2 + beta2 - s2 * mean2).reshape(C, 1).astype(jnp.float32)

    # (Cout, Cin, 3, 3) -> (Cout, 9*Cin), column index = k*Cin + cin with
    # k = ky*3 + kx, matching the im2col staging order in the kernel.
    w1_fused = jnp.transpose(w1f, (0, 2, 3, 1)).reshape(C, 9 * C).astype(cdt)
    w2_fused = jnp.transpose(w2f, (0, 2, 3, 1)).reshape(C, 9 * C).astype(cdt)

    # Pack Bt images per grid step (free reshapes only -- stays NCHW).
    Bt = _pick_images_per_step(B, C, HW, cdt.itemsize)
    G = B // Bt
    n_lanes = Bt * HW
    x_blk = x.reshape(G, Bt, C, HW).astype(cdt)

    kernel = _make_kernel(C, H, W, Bt, cdt)

    # VMEM budget from the actual block sizes (+ ~50% headroom), instead of
    # relying on the scoped default (16/32/32 MiB on v5e/v6e/v7x).
    need = (2 * 2 * Bt * C * HW * cdt.itemsize     # x + out blocks, double-buffered
            + 9 * C * n_lanes * cdt.itemsize       # im2col scratch
            + 2 * 2 * C * 9 * C * cdt.itemsize     # fused weights (2 bufs each)
            + 4 * C * n_lanes * 4                  # f32 in-kernel temporaries
            + (1 << 20))                           # misc slack
    vmem_limit = int(min(max(need * 3 // 2, 8 << 20), 64 << 20))

    out_blk = pl.pallas_call(
        kernel,
        out_shape=jax.ShapeDtypeStruct((G, Bt, C, HW), cdt),
        grid_spec=pltpu.PrefetchScalarGridSpec(
            num_scalar_prefetch=0,
            grid=(G,),
            in_specs=[
                pl.BlockSpec((None, Bt, C, HW), lambda g: (g, 0, 0, 0)),  # x
                pl.BlockSpec((C, 9 * C), lambda g: (0, 0)),               # conv1 taps
                pl.BlockSpec((C, 1), lambda g: (0, 0)),                   # bias1
                pl.BlockSpec((C, 9 * C), lambda g: (0, 0)),               # conv2 taps
                pl.BlockSpec((C, 1), lambda g: (0, 0)),                   # bias2
            ],
            out_specs=pl.BlockSpec((None, Bt, C, HW), lambda g: (g, 0, 0, 0)),
            scratch_shapes=[pltpu.VMEM((9 * C, n_lanes), cdt)],
        ),
        compiler_params=pltpu.CompilerParams(
            dimension_semantics=("parallel",),
            vmem_limit_bytes=vmem_limit,
        ),
    )(x_blk, w1_fused, b1f, w2_fused, b2f)

    return out_blk.reshape(B, C, H, W).astype(orig_dtype)


def _reference(x, w1, b1, g1, bt1, m1, v1, w2, b2, g2, bt2, m2, v2, eps=1e-5):
    """Pure-JAX reference of the PyTorch forward (eval-mode BatchNorm)."""
    def conv(z, w, b):
        y = jax.lax.conv_general_dilated(
            z, w, window_strides=(1, 1), padding=((1, 1), (1, 1)),
            dimension_numbers=("NCHW", "OIHW", "NCHW"),
            precision=jax.lax.Precision.HIGHEST)
        return y + b[None, :, None, None]

    def bn(y, g, bt, m, v):
        return (g[None, :, None, None] * (y - m[None, :, None, None])
                / jnp.sqrt(v[None, :, None, None] + eps) + bt[None, :, None, None])

    out = jax.nn.relu(bn(conv(x, w1, b1), g1, bt1, m1, v1))
    out = bn(conv(out, w2, b2), g2, bt2, m2, v2)
    return jax.nn.relu(out + x)


if __name__ == "__main__":
    key = jax.random.PRNGKey(0)
    B, C, H, W = 2, 4, 16, 16
    ks = jax.random.split(key, 13)

    x = jax.random.normal(ks[0], (B, C, H, W), dtype=jnp.float32)

    fan = jnp.sqrt(9.0 * C)
    w1 = jax.random.normal(ks[1], (C, C, 3, 3), jnp.float32) / fan
    b1 = 0.1 * jax.random.normal(ks[2], (C,), jnp.float32)
    gamma1 = 1.0 + 0.1 * jax.random.normal(ks[3], (C,), jnp.float32)
    beta1 = 0.1 * jax.random.normal(ks[4], (C,), jnp.float32)
    mean1 = 0.1 * jax.random.normal(ks[5], (C,), jnp.float32)
    var1 = 0.5 + jax.random.uniform(ks[6], (C,), jnp.float32)

    w2 = jax.random.normal(ks[7], (C, C, 3, 3), jnp.float32) / fan
    b2 = 0.1 * jax.random.normal(ks[8], (C,), jnp.float32)
    gamma2 = 1.0 + 0.1 * jax.random.normal(ks[9], (C,), jnp.float32)
    beta2 = 0.1 * jax.random.normal(ks[10], (C,), jnp.float32)
    mean2 = 0.1 * jax.random.normal(ks[11], (C,), jnp.float32)
    var2 = 0.5 + jax.random.uniform(ks[12], (C,), jnp.float32)

    out = residual_block(x, w1, b1, gamma1, beta1, mean1, var1,
                         w2, b2, gamma2, beta2, mean2, var2)
    out = jax.block_until_ready(out)

    ref = _reference(x, w1, b1, gamma1, beta1, mean1, var1,
                     w2, b2, gamma2, beta2, mean2, var2)

    assert out.shape == (B, C, H, W)
    max_err = float(jnp.max(jnp.abs(out - ref)))
    assert max_err < 2e-4, f"max abs error {max_err}"
    print("KERNEL_OK")
</pallas_src>

<mosaic_0001>
module attributes {stable_mosaic.version = 11 : i64} {
  func.func @kernel(%arg0: i32, %arg1: memref<1x2x4x256xf32, #tpu.memory_space<vmem>>, %arg2: memref<4x36xf32, #tpu.memory_space<vmem>>, %arg3: memref<4x1xf32, #tpu.memory_space<vmem>>, %arg4: memref<4x36xf32, #tpu.memory_space<vmem>>, %arg5: memref<4x1xf32, #tpu.memory_space<vmem>>, %arg6: memref<1x2x4x256xf32, #tpu.memory_space<vmem>>, %arg7: memref<36x512xf32, #tpu.memory_space<vmem>>) attributes {dimension_semantics = [#tpu.dimension_semantics<parallel>], iteration_bounds = array<i64: 1>, scalar_prefetch = 0 : i64, scratch_operands = 1 : i64, tpu.core_type = #tpu.core_type<tc>, window_params = [{transform_indices = @transform_0, window_bounds = array<i64: 1, 2, 4, 256>}, {pipeline_mode = #tpu.pipeline_mode<synchronous>, transform_indices = @transform_1, window_bounds = array<i64: 4, 36>}, {pipeline_mode = #tpu.pipeline_mode<synchronous>, transform_indices = @transform_2, window_bounds = array<i64: 4, 1>}, {pipeline_mode = #tpu.pipeline_mode<synchronous>, transform_indices = @transform_3, window_bounds = array<i64: 4, 36>}, {pipeline_mode = #tpu.pipeline_mode<synchronous>, transform_indices = @transform_4, window_bounds = array<i64: 4, 1>}, {transform_indices = @transform_5, window_bounds = array<i64: 1, 2, 4, 256>}]} {
    %0 = tpu.iota {dimensions = array<i32: 1>} : vector<1x256xi32>
    %c15_i32 = arith.constant 15 : i32
    %1 = vector.broadcast %c15_i32 : i32 to vector<1x256xi32>
    %2 = arith.andi %0, %1 : vector<1x256xi32>
    %c4_i32 = arith.constant 4 : i32
    %3 = vector.broadcast %c4_i32 : i32 to vector<1x256xi32>
    %4 = arith.shrsi %0, %3 : vector<1x256xi32>
    %c-1_i32 = arith.constant -1 : i32
    %5 = vector.broadcast %c-1_i32 : i32 to vector<1x256xi32>
    %6 = arith.addi %4, %5 : vector<1x256xi32>
    %c0_i32 = arith.constant 0 : i32
    %7 = vector.broadcast %c0_i32 : i32 to vector<1x256xi32>
    %8 = arith.cmpi sge, %6, %7 : vector<1x256xi32>
    %c-1_i32_0 = arith.constant -1 : i32
    %9 = vector.broadcast %c-1_i32_0 : i32 to vector<1x256xi32>
    %10 = arith.addi %4, %9 : vector<1x256xi32>
    %c16_i32 = arith.constant 16 : i32
    %11 = vector.broadcast %c16_i32 : i32 to vector<1x256xi32>
    %12 = arith.cmpi slt, %10, %11 : vector<1x256xi32>
    %13 = arith.andi %8, %12 : vector<1x256xi1>
    %c-1_i32_1 = arith.constant -1 : i32
    %14 = vector.broadcast %c-1_i32_1 : i32 to vector<1x256xi32>
    %15 = arith.addi %2, %14 : vector<1x256xi32>
    %c0_i32_2 = arith.constant 0 : i32
    %16 = vector.broadcast %c0_i32_2 : i32 to vector<1x256xi32>
    %17 = arith.cmpi sge, %15, %16 : vector<1x256xi32>
    %18 = arith.andi %13, %17 : vector<1x256xi1>
    %c-1_i32_3 = arith.constant -1 : i32
    %19 = vector.broadcast %c-1_i32_3 : i32 to vector<1x256xi32>
    %20 = arith.addi %2, %19 : vector<1x256xi32>
    %c16_i32_4 = arith.constant 16 : i32
    %21 = vector.broadcast %c16_i32_4 : i32 to vector<1x256xi32>
    %22 = arith.cmpi slt, %20, %21 : vector<1x256xi32>
    %23 = arith.andi %18, %22 : vector<1x256xi1>
    %c-1_i32_5 = arith.constant -1 : i32
    %24 = vector.broadcast %c-1_i32_5 : i32 to vector<1x256xi32>
    %25 = arith.addi %4, %24 : vector<1x256xi32>
    %c0_i32_6 = arith.constant 0 : i32
    %26 = vector.broadcast %c0_i32_6 : i32 to vector<1x256xi32>
    %27 = arith.cmpi sge, %25, %26 : vector<1x256xi32>
    %c-1_i32_7 = arith.constant -1 : i32
    %28 = vector.broadcast %c-1_i32_7 : i32 to vector<1x256xi32>
    %29 = arith.addi %4, %28 : vector<1x256xi32>
    %c16_i32_8 = arith.constant 16 : i32
    %30 = vector.broadcast %c16_i32_8 : i32 to vector<1x256xi32>
    %31 = arith.cmpi slt, %29, %30 : vector<1x256xi32>
    %32 = arith.andi %27, %31 : vector<1x256xi1>
    %c0_i32_9 = arith.constant 0 : i32
    %33 = vector.broadcast %c0_i32_9 : i32 to vector<1x256xi32>
    %34 = arith.addi %2, %33 : vector<1x256xi32>
    %c0_i32_10 = arith.constant 0 : i32
    %35 = vector.broadcast %c0_i32_10 : i32 to vector<1x256xi32>
    %36 = arith.cmpi sge, %34, %35 : vector<1x256xi32>
    %37 = arith.andi %32, %36 : vector<1x256xi1>
    %c0_i32_11 = arith.constant 0 : i32
    %38 = vector.broadcast %c0_i32_11 : i32 to vector<1x256xi32>
    %39 = arith.addi %2, %38 : vector<1x256xi32>
    %c16_i32_12 = arith.constant 16 : i32
    %40 = vector.broadcast %c16_i32_12 : i32 to vector<1x256xi32>
    %41 = arith.cmpi slt, %39, %40 : vector<1x256xi32>
    %42 = arith.andi %37, %41 : vector<1x256xi1>
    %c-1_i32_13 = arith.constant -1 : i32
    %43 = vector.broadcast %c-1_i32_13 : i32 to vector<1x256xi32>
    %44 = arith.addi %4, %43 : vector<1x256xi32>
    %c0_i32_14 = arith.constant 0 : i32
    %45 = vector.broadcast %c0_i32_14 : i32 to vector<1x256xi32>
    %46 = arith.cmpi sge, %44, %45 : vector<1x256xi32>
    %c-1_i32_15 = arith.constant -1 : i32
    %47 = vector.broadcast %c-1_i32_15 : i32 to vector<1x256xi32>
    %48 = arith.addi %4, %47 : vector<1x256xi32>
    %c16_i32_16 = arith.constant 16 : i32
    %49 = vector.broadcast %c16_i32_16 : i32 to vector<1x256xi32>
    %50 = arith.cmpi slt, %48, %49 : vector<1x256xi32>
    %51 = arith.andi %46, %50 : vector<1x256xi1>
    %c1_i32 = arith.constant 1 : i32
    %52 = vector.broadcast %c1_i32 : i32 to vector<1x256xi32>
    %53 = arith.addi %2, %52 : vector<1x256xi32>
    %c0_i32_17 = arith.constant 0 : i32
    %54 = vector.broadcast %c0_i32_17 : i32 to vector<1x256xi32>
    %55 = arith.cmpi sge, %53, %54 : vector<1x256xi32>
    %56 = arith.andi %51, %55 : vector<1x256xi1>
    %c1_i32_18 = arith.constant 1 : i32
    %57 = vector.broadcast %c1_i32_18 : i32 to vector<1x256xi32>
    %58 = arith.addi %2, %57 : vector<1x256xi32>
    %c16_i32_19 = arith.constant 16 : i32
    %59 = vector.broadcast %c16_i32_19 : i32 to vector<1x256xi32>
    %60 = arith.cmpi slt, %58, %59 : vector<1x256xi32>
    %61 = arith.andi %56, %60 : vector<1x256xi1>
    %c0_i32_20 = arith.constant 0 : i32
    %62 = vector.broadcast %c0_i32_20 : i32 to vector<1x256xi32>
    %63 = arith.addi %4, %62 : vector<1x256xi32>
    %c0_i32_21 = arith.constant 0 : i32
    %64 = vector.broadcast %c0_i32_21 : i32 to vector<1x256xi32>
    %65 = arith.cmpi sge, %63, %64 : vector<1x256xi32>
    %c0_i32_22 = arith.constant 0 : i32
    %66 = vector.broadcast %c0_i32_22 : i32 to vector<1x256xi32>
    %67 = arith.addi %4, %66 : vector<1x256xi32>
    %c16_i32_23 = arith.constant 16 : i32
    %68 = vector.broadcast %c16_i32_23 : i32 to vector<1x256xi32>
    %69 = arith.cmpi slt, %67, %68 : vector<1x256xi32>
    %70 = arith.andi %65, %69 : vector<1x256xi1>
    %c-1_i32_24 = arith.constant -1 : i32
    %71 = vector.broadcast %c-1_i32_24 : i32 to vector<1x256xi32>
    %72 = arith.addi %2, %71 : vector<1x256xi32>
    %c0_i32_25 = arith.constant 0 : i32
    %73 = vector.broadcast %c0_i32_25 : i32 to vector<1x256xi32>
    %74 = arith.cmpi sge, %72, %73 : vector<1x256xi32>
    %75 = arith.andi %70, %74 : vector<1x256xi1>
    %c-1_i32_26 = arith.constant -1 : i32
    %76 = vector.broadcast %c-1_i32_26 : i32 to vector<1x256xi32>
    %77 = arith.addi %2, %76 : vector<1x256xi32>
    %c16_i32_27 = arith.constant 16 : i32
    %78 = vector.broadcast %c16_i32_27 : i32 to vector<1x256xi32>
    %79 = arith.cmpi slt, %77, %78 : vector<1x256xi32>
    %80 = arith.andi %75, %79 : vector<1x256xi1>
    %c0_i32_28 = arith.constant 0 : i32
    %81 = vector.broadcast %c0_i32_28 : i32 to vector<1x256xi32>
    %82 = arith.addi %4, %81 : vector<1x256xi32>
    %c0_i32_29 = arith.constant 0 : i32
    %83 = vector.broadcast %c0_i32_29 : i32 to vector<1x256xi32>
    %84 = arith.cmpi sge, %82, %83 : vector<1x256xi32>
    %c0_i32_30 = arith.constant 0 : i32
    %85 = vector.broadcast %c0_i32_30 : i32 to vector<1x256xi32>
    %86 = arith.addi %4, %85 : vector<1x256xi32>
    %c16_i32_31 = arith.constant 16 : i32
    %87 = vector.broadcast %c16_i32_31 : i32 to vector<1x256xi32>
    %88 = arith.cmpi slt, %86, %87 : vector<1x256xi32>
    %89 = arith.andi %84, %88 : vector<1x256xi1>
    %c1_i32_32 = arith.constant 1 : i32
    %90 = vector.broadcast %c1_i32_32 : i32 to vector<1x256xi32>
    %91 = arith.addi %2, %90 : vector<1x256xi32>
    %c0_i32_33 = arith.constant 0 : i32
    %92 = vector.broadcast %c0_i32_33 : i32 to vector<1x256xi32>
    %93 = arith.cmpi sge, %91, %92 : vector<1x256xi32>
    %94 = arith.andi %89, %93 : vector<1x256xi1>
    %c1_i32_34 = arith.constant 1 : i32
    %95 = vector.broadcast %c1_i32_34 : i32 to vector<1x256xi32>
    %96 = arith.addi %2, %95 : vector<1x256xi32>
    %c16_i32_35 = arith.constant 16 : i32
    %97 = vector.broadcast %c16_i32_35 : i32 to vector<1x256xi32>
    %98 = arith.cmpi slt, %96, %97 : vector<1x256xi32>
    %99 = arith.andi %94, %98 : vector<1x256xi1>
    %c1_i32_36 = arith.constant 1 : i32
    %100 = vector.broadcast %c1_i32_36 : i32 to vector<1x256xi32>
    %101 = arith.addi %4, %100 : vector<1x256xi32>
    %c0_i32_37 = arith.constant 0 : i32
    %102 = vector.broadcast %c0_i32_37 : i32 to vector<1x256xi32>
    %103 = arith.cmpi sge, %101, %102 : vector<1x256xi32>
    %c1_i32_38 = arith.constant 1 : i32
    %104 = vector.broadcast %c1_i32_38 : i32 to vector<1x256xi32>
    %105 = arith.addi %4, %104 : vector<1x256xi32>
    %c16_i32_39 = arith.constant 16 : i32
    %106 = vector.broadcast %c16_i32_39 : i32 to vector<1x256xi32>
    %107 = arith.cmpi slt, %105, %106 : vector<1x256xi32>
    %108 = arith.andi %103, %107 : vector<1x256xi1>
    %c-1_i32_40 = arith.constant -1 : i32
    %109 = vector.broadcast %c-1_i32_40 : i32 to vector<1x256xi32>
    %110 = arith.addi %2, %109 : vector<1x256xi32>
    %c0_i32_41 = arith.constant 0 : i32
    %111 = vector.broadcast %c0_i32_41 : i32 to vector<1x256xi32>
    %112 = arith.cmpi sge, %110, %111 : vector<1x256xi32>
    %113 = arith.andi %108, %112 : vector<1x256xi1>
    %c-1_i32_42 = arith.constant -1 : i32
    %114 = vector.broadcast %c-1_i32_42 : i32 to vector<1x256xi32>
    %115 = arith.addi %2, %114 : vector<1x256xi32>
    %c16_i32_43 = arith.constant 16 : i32
    %116 = vector.broadcast %c16_i32_43 : i32 to vector<1x256xi32>
    %117 = arith.cmpi slt, %115, %116 : vector<1x256xi32>
    %118 = arith.andi %113, %117 : vector<1x256xi1>
    %c1_i32_44 = arith.constant 1 : i32
    %119 = vector.broadcast %c1_i32_44 : i32 to vector<1x256xi32>
    %120 = arith.addi %4, %119 : vector<1x256xi32>
    %c0_i32_45 = arith.constant 0 : i32
    %121 = vector.broadcast %c0_i32_45 : i32 to vector<1x256xi32>
    %122 = arith.cmpi sge, %120, %121 : vector<1x256xi32>
    %c1_i32_46 = arith.constant 1 : i32
    %123 = vector.broadcast %c1_i32_46 : i32 to vector<1x256xi32>
    %124 = arith.addi %4, %123 : vector<1x256xi32>
    %c16_i32_47 = arith.constant 16 : i32
    %125 = vector.broadcast %c16_i32_47 : i32 to vector<1x256xi32>
    %126 = arith.cmpi slt, %124, %125 : vector<1x256xi32>
    %127 = arith.andi %122, %126 : vector<1x256xi1>
    %c0_i32_48 = arith.constant 0 : i32
    %128 = vector.broadcast %c0_i32_48 : i32 to vector<1x256xi32>
    %129 = arith.addi %2, %128 : vector<1x256xi32>
    %c0_i32_49 = arith.constant 0 : i32
    %130 = vector.broadcast %c0_i32_49 : i32 to vector<1x256xi32>
    %131 = arith.cmpi sge, %129, %130 : vector<1x256xi32>
    %132 = arith.andi %127, %131 : vector<1x256xi1>
    %c0_i32_50 = arith.constant 0 : i32
    %133 = vector.broadcast %c0_i32_50 : i32 to vector<1x256xi32>
    %134 = arith.addi %2, %133 : vector<1x256xi32>
    %c16_i32_51 = arith.constant 16 : i32
    %135 = vector.broadcast %c16_i32_51 : i32 to vector<1x256xi32>
    %136 = arith.cmpi slt, %134, %135 : vector<1x256xi32>
    %137 = arith.andi %132, %136 : vector<1x256xi1>
    %c1_i32_52 = arith.constant 1 : i32
    %138 = vector.broadcast %c1_i32_52 : i32 to vector<1x256xi32>
    %139 = arith.addi %4, %138 : vector<1x256xi32>
    %c0_i32_53 = arith.constant 0 : i32
    %140 = vector.broadcast %c0_i32_53 : i32 to vector<1x256xi32>
    %141 = arith.cmpi sge, %139, %140 : vector<1x256xi32>
    %c1_i32_54 = arith.constant 1 : i32
    %142 = vector.broadcast %c1_i32_54 : i32 to vector<1x256xi32>
    %143 = arith.addi %4, %142 : vector<1x256xi32>
    %c16_i32_55 = arith.constant 16 : i32
    %144 = vector.broadcast %c16_i32_55 : i32 to vector<1x256xi32>
    %145 = arith.cmpi slt, %143, %144 : vector<1x256xi32>
    %146 = arith.andi %141, %145 : vector<1x256xi1>
    %c1_i32_56 = arith.constant 1 : i32
    %147 = vector.broadcast %c1_i32_56 : i32 to vector<1x256xi32>
    %148 = arith.addi %2, %147 : vector<1x256xi32>
    %c0_i32_57 = arith.constant 0 : i32
    %149 = vector.broadcast %c0_i32_57 : i32 to vector<1x256xi32>
    %150 = arith.cmpi sge, %148, %149 : vector<1x256xi32>
    %151 = arith.andi %146, %150 : vector<1x256xi1>
    %c1_i32_58 = arith.constant 1 : i32
    %152 = vector.broadcast %c1_i32_58 : i32 to vector<1x256xi32>
    %153 = arith.addi %2, %152 : vector<1x256xi32>
    %c16_i32_59 = arith.constant 16 : i32
    %154 = vector.broadcast %c16_i32_59 : i32 to vector<1x256xi32>
    %155 = arith.cmpi slt, %153, %154 : vector<1x256xi32>
    %156 = arith.andi %151, %155 : vector<1x256xi1>
    %c0 = arith.constant 0 : index
    %c0_60 = arith.constant 0 : index
    %c0_61 = arith.constant 0 : index
    %c0_62 = arith.constant 0 : index
    %157 = vector.load %arg1[%c0, %c0_60, %c0_61, %c0_62] : memref<1x2x4x256xf32, #tpu.memory_space<vmem>>, vector<1x1x4x256xf32>
    %158 = vector.shape_cast %157 : vector<1x1x4x256xf32> to vector<4x256xf32>
    %c17_i32 = arith.constant 17 : i32
    %159 = tpu.dynamic_rotate %158 by %c17_i32 dim 1 : vector<4x256xf32>, i32 -> vector<4x256xf32>
    %c0_i32_63 = arith.constant 0 : i32
    %160 = arith.sitofp %c0_i32_63 : i32 to f32
    %161 = vector.shape_cast %23 : vector<1x256xi1> to vector<1x256xi1>
    %162 = vector.broadcast %161 : vector<1x256xi1> to vector<4x256xi1>
    %163 = vector.broadcast %160 : f32 to vector<4x256xf32>
    %164 = arith.select %162, %159, %163 : vector<4x256xi1>, vector<4x256xf32>
    %c0_64 = arith.constant 0 : index
    %c0_65 = arith.constant 0 : index
    %165 = vector.load %arg7[%c0_64, %c0_65] : memref<36x512xf32, #tpu.memory_space<vmem>>, vector<4x256xf32>
    tpu.vector_store %arg7[%c0_64, %c0_65], %164 {strides = array<i32>} : memref<36x512xf32, #tpu.memory_space<vmem>>, vector<4x256xf32>,
    %c16_i32_66 = arith.constant 16 : i32
    %166 = tpu.dynamic_rotate %158 by %c16_i32_66 dim 1 : vector<4x256xf32>, i32 -> vector<4x256xf32>
    %c0_i32_67 = arith.constant 0 : i32
    %167 = arith.sitofp %c0_i32_67 : i32 to f32
    %168 = vector.shape_cast %42 : vector<1x256xi1> to vector<1x256xi1>
    %169 = vector.broadcast %168 : vector<1x256xi1> to vector<4x256xi1>
    %170 = vector.broadcast %167 : f32 to vector<4x256xf32>
    %171 = arith.select %169, %166, %170 : vector<4x256xi1>, vector<4x256xf32>
    %c4 = arith.constant 4 : index
    %c0_68 = arith.constant 0 : index
    %172 = vector.load %arg7[%c4, %c0_68] : memref<36x512xf32, #tpu.memory_space<vmem>>, vector<4x256xf32>
    tpu.vector_store %arg7[%c4, %c0_68], %171 {strides = array<i32>} : memref<36x512xf32, #tpu.memory_space<vmem>>, vector<4x256xf32>,
    %c15_i32_69 = arith.constant 15 : i32
    %173 = tpu.dynamic_rotate %158 by %c15_i32_69 dim 1 : vector<4x256xf32>, i32 -> vector<4x256xf32>
    %c0_i32_70 = arith.constant 0 : i32
    %174 = arith.sitofp %c0_i32_70 : i32 to f32
    %175 = vector.shape_cast %61 : vector<1x256xi1> to vector<1x256xi1>
    %176 = vector.broadcast %175 : vector<1x256xi1> to vector<4x256xi1>
    %177 = vector.broadcast %174 : f32 to vector<4x256xf32>
    %178 = arith.select %176, %173, %177 : vector<4x256xi1>, vector<4x256xf32>
    %c8 = arith.constant 8 : index
    %c0_71 = arith.constant 0 : index
    %179 = vector.load %arg7[%c8, %c0_71] : memref<36x512xf32, #tpu.memory_space<vmem>>, vector<4x256xf32>
    tpu.vector_store %arg7[%c8, %c0_71], %178 {strides = array<i32>} : memref<36x512xf32, #tpu.memory_space<vmem>>, vector<4x256xf32>,
    %c1_i32_72 = arith.constant 1 : i32
    %180 = tpu.dynamic_rotate %158 by %c1_i32_72 dim 1 : vector<4x256xf32>, i32 -> vector<4x256xf32>
    %c0_i32_73 = arith.constant 0 : i32
    %181 = arith.sitofp %c0_i32_73 : i32 to f32
    %182 = vector.shape_cast %80 : vector<1x256xi1> to vector<1x256xi1>
    %183 = vector.broadcast %182 : vector<1x256xi1> to vector<4x256xi1>
    %184 = vector.broadcast %181 : f32 to vector<4x256xf32>
    %185 = arith.select %183, %180, %184 : vector<4x256xi1>, vector<4x256xf32>
    %c12 = arith.constant 12 : index
    %c0_74 = arith.constant 0 : index
    %186 = vector.load %arg7[%c12, %c0_74] : memref<36x512xf32, #tpu.memory_space<vmem>>, vector<4x256xf32>
    tpu.vector_store %arg7[%c12, %c0_74], %185 {strides = array<i32>} : memref<36x512xf32, #tpu.memory_space<vmem>>, vector<4x256xf32>,
    %c16 = arith.constant 16 : index
    %c0_75 = arith.constant 0 : index
    %187 = vector.load %arg7[%c16, %c0_75] : memref<36x512xf32, #tpu.memory_space<vmem>>, vector<4x256xf32>
    tpu.vector_store %arg7[%c16, %c0_75], %158 {strides = array<i32>} : memref<36x512xf32, #tpu.memory_space<vmem>>, vector<4x256xf32>,
    %c255_i32 = arith.constant 255 : i32
    %188 = tpu.dynamic_rotate %158 by %c255_i32 dim 1 : vector<4x256xf32>, i32 -> vector<4x256xf32>
    %c0_i32_76 = arith.constant 0 : i32
    %189 = arith.sitofp %c0_i32_76 : i32 to f32
    %190 = vector.shape_cast %99 : vector<1x256xi1> to vector<1x256xi1>
    %191 = vector.broadcast %190 : vector<1x256xi1> to vector<4x256xi1>
    %192 = vector.broadcast %189 : f32 to vector<4x256xf32>
    %193 = arith.select %191, %188, %192 : vector<4x256xi1>, vector<4x256xf32>
    %c20 = arith.constant 20 : index
    %c0_77 = arith.constant 0 : index
    %194 = vector.load %arg7[%c20, %c0_77] : memref<36x512xf32, #tpu.memory_space<vmem>>, vector<4x256xf32>
    tpu.vector_store %arg7[%c20, %c0_77], %193 {strides = array<i32>} : memref<36x512xf32, #tpu.memory_space<vmem>>, vector<4x256xf32>,
    %c241_i32 = arith.constant 241 : i32
    %195 = tpu.dynamic_rotate %158 by %c241_i32 dim 1 : vector<4x256xf32>, i32 -> vector<4x256xf32>
    %c0_i32_78 = arith.constant 0 : i32
    %196 = arith.sitofp %c0_i32_78 : i32 to f32
    %197 = vector.shape_cast %118 : vector<1x256xi1> to vector<1x256xi1>
    %198 = vector.broadcast %197 : vector<1x256xi1> to vector<4x256xi1>
    %199 = vector.broadcast %196 : f32 to vector<4x256xf32>
    %200 = arith.select %198, %195, %199 : vector<4x256xi1>, vector<4x256xf32>
    %c24 = arith.constant 24 : index
    %c0_79 = arith.constant 0 : index
    %201 = vector.load %arg7[%c24, %c0_79] : memref<36x512xf32, #tpu.memory_space<vmem>>, vector<4x256xf32>
    tpu.vector_store %arg7[%c24, %c0_79], %200 {strides = array<i32>} : memref<36x512xf32, #tpu.memory_space<vmem>>, vector<4x256xf32>,
    %c240_i32 = arith.constant 240 : i32
    %202 = tpu.dynamic_rotate %158 by %c240_i32 dim 1 : vector<4x256xf32>, i32 -> vector<4x256xf32>
    %c0_i32_80 = arith.constant 0 : i32
    %203 = arith.sitofp %c0_i32_80 : i32 to f32
    %204 = vector.shape_cast %137 : vector<1x256xi1> to vector<1x256xi1>
    %205 = vector.broadcast %204 : vector<1x256xi1> to vector<4x256xi1>
    %206 = vector.broadcast %203 : f32 to vector<4x256xf32>
    %207 = arith.select %205, %202, %206 : vector<4x256xi1>, vector<4x256xf32>
    %c28 = arith.constant 28 : index
    %c0_81 = arith.constant 0 : index
    %208 = vector.load %arg7[%c28, %c0_81] : memref<36x512xf32, #tpu.memory_space<vmem>>, vector<4x256xf32>
    tpu.vector_store %arg7[%c28, %c0_81], %207 {strides = array<i32>} : memref<36x512xf32, #tpu.memory_space<vmem>>, vector<4x256xf32>,
    %c239_i32 = arith.constant 239 : i32
    %209 = tpu.dynamic_rotate %158 by %c239_i32 dim 1 : vector<4x256xf32>, i32 -> vector<4x256xf32>
    %c0_i32_82 = arith.constant 0 : i32
    %210 = arith.sitofp %c0_i32_82 : i32 to f32
    %211 = vector.shape_cast %156 : vector<1x256xi1> to vector<1x256xi1>
    %212 = vector.broadcast %211 : vector<1x256xi1> to vector<4x256xi1>
    %213 = vector.broadcast %210 : f32 to vector<4x256xf32>
    %214 = arith.select %212, %209, %213 : vector<4x256xi1>, vector<4x256xf32>
    %c32 = arith.constant 32 : index
    %c0_83 = arith.constant 0 : index
    %215 = vector.load %arg7[%c32, %c0_83] : memref<36x512xf32, #tpu.memory_space<vmem>>, vector<4x256xf32>
    tpu.vector_store %arg7[%c32, %c0_83], %214 {strides = array<i32>} : memref<36x512xf32, #tpu.memory_space<vmem>>, vector<4x256xf32>,
    %c0_84 = arith.constant 0 : index
    %c1 = arith.constant 1 : index
    %c0_85 = arith.constant 0 : index
    %c0_86 = arith.constant 0 : index
    %216 = vector.load %arg1[%c0_84, %c1, %c0_85, %c0_86] : memref<1x2x4x256xf32, #tpu.memory_space<vmem>>, vector<1x1x4x256xf32>
    %217 = vector.shape_cast %216 : vector<1x1x4x256xf32> to vector<4x256xf32>
    %c17_i32_87 = arith.constant 17 : i32
    %218 = tpu.dynamic_rotate %217 by %c17_i32_87 dim 1 : vector<4x256xf32>, i32 -> vector<4x256xf32>
    %c0_i32_88 = arith.constant 0 : i32
    %219 = arith.sitofp %c0_i32_88 : i32 to f32
    %220 = vector.shape_cast %23 : vector<1x256xi1> to vector<1x256xi1>
    %221 = vector.broadcast %220 : vector<1x256xi1> to vector<4x256xi1>
    %222 = vector.broadcast %219 : f32 to vector<4x256xf32>
    %223 = arith.select %221, %218, %222 : vector<4x256xi1>, vector<4x256xf32>
    %c0_89 = arith.constant 0 : index
    %c256 = arith.constant 256 : index
    %224 = vector.load %arg7[%c0_89, %c256] : memref<36x512xf32, #tpu.memory_space<vmem>>, vector<4x256xf32>
    tpu.vector_store %arg7[%c0_89, %c256], %223 {strides = array<i32>} : memref<36x512xf32, #tpu.memory_space<vmem>>, vector<4x256xf32>,
    %c16_i32_90 = arith.constant 16 : i32
    %225 = tpu.dynamic_rotate %217 by %c16_i32_90 dim 1 : vector<4x256xf32>, i32 -> vector<4x256xf32>
    %c0_i32_91 = arith.constant 0 : i32
    %226 = arith.sitofp %c0_i32_91 : i32 to f32
    %227 = vector.shape_cast %42 : vector<1x256xi1> to vector<1x256xi1>
    %228 = vector.broadcast %227 : vector<1x256xi1> to vector<4x256xi1>
    %229 = vector.broadcast %226 : f32 to vector<4x256xf32>
    %230 = arith.select %228, %225, %229 : vector<4x256xi1>, vector<4x256xf32>
    %c4_92 = arith.constant 4 : index
    %c256_93 = arith.constant 256 : index
    %231 = vector.load %arg7[%c4_92, %c256_93] : memref<36x512xf32, #tpu.memory_space<vmem>>, vector<4x256xf32>
    tpu.vector_store %arg7[%c4_92, %c256_93], %230 {strides = array<i32>} : memref<36x512xf32, #tpu.memory_space<vmem>>, vector<4x256xf32>,
    %c15_i32_94 = arith.constant 15 : i32
    %232 = tpu.dynamic_rotate %217 by %c15_i32_94 dim 1 : vector<4x256xf32>, i32 -> vector<4x256xf32>
    %c0_i32_95 = arith.constant 0 : i32
    %233 = arith.sitofp %c0_i32_95 : i32 to f32
    %234 = vector.shape_cast %61 : vector<1x256xi1> to vector<1x256xi1>
    %235 = vector.broadcast %234 : vector<1x256xi1> to vector<4x256xi1>
    %236 = vector.broadcast %233 : f32 to vector<4x256xf32>
    %237 = arith.select %235, %232, %236 : vector<4x256xi1>, vector<4x256xf32>
    %c8_96 = arith.constant 8 : index
    %c256_97 = arith.constant 256 : index
    %238 = vector.load %arg7[%c8_96, %c256_97] : memref<36x512xf32, #tpu.memory_space<vmem>>, vector<4x256xf32>
    tpu.vector_store %arg7[%c8_96, %c256_97], %237 {strides = array<i32>} : memref<36x512xf32, #tpu.memory_space<vmem>>, vector<4x256xf32>,
    %c1_i32_98 = arith.constant 1 : i32
    %239 = tpu.dynamic_rotate %217 by %c1_i32_98 dim 1 : vector<4x256xf32>, i32 -> vector<4x256xf32>
    %c0_i32_99 = arith.constant 0 : i32
    %240 = arith.sitofp %c0_i32_99 : i32 to f32
    %241 = vector.shape_cast %80 : vector<1x256xi1> to vector<1x256xi1>
    %242 = vector.broadcast %241 : vector<1x256xi1> to vector<4x256xi1>
    %243 = vector.broadcast %240 : f32 to vector<4x256xf32>
    %244 = arith.select %242, %239, %243 : vector<4x256xi1>, vector<4x256xf32>
    %c12_100 = arith.constant 12 : index
    %c256_101 = arith.constant 256 : index
    %245 = vector.load %arg7[%c12_100, %c256_101] : memref<36x512xf32, #tpu.memory_space<vmem>>, vector<4x256xf32>
    tpu.vector_store %arg7[%c12_100, %c256_101], %244 {strides = array<i32>} : memref<36x512xf32, #tpu.memory_space<vmem>>, vector<4x256xf32>,
    %c16_102 = arith.constant 16 : index
    %c256_103 = arith.constant 256 : index
    %246 = vector.load %arg7[%c16_102, %c256_103] : memref<36x512xf32, #tpu.memory_space<vmem>>, vector<4x256xf32>
    tpu.vector_store %arg7[%c16_102, %c256_103], %217 {strides = array<i32>} : memref<36x512xf32, #tpu.memory_space<vmem>>, vector<4x256xf32>,
    %c255_i32_104 = arith.constant 255 : i32
    %247 = tpu.dynamic_rotate %217 by %c255_i32_104 dim 1 : vector<4x256xf32>, i32 -> vector<4x256xf32>
    %c0_i32_105 = arith.constant 0 : i32
    %248 = arith.sitofp %c0_i32_105 : i32 to f32
    %249 = vector.shape_cast %99 : vector<1x256xi1> to vector<1x256xi1>
    %250 = vector.broadcast %249 : vector<1x256xi1> to vector<4x256xi1>
    %251 = vector.broadcast %248 : f32 to vector<4x256xf32>
    %252 = arith.select %250, %247, %251 : vector<4x256xi1>, vector<4x256xf32>
    %c20_106 = arith.constant 20 : index
    %c256_107 = arith.constant 256 : index
    %253 = vector.load %arg7[%c20_106, %c256_107] : memref<36x512xf32, #tpu.memory_space<vmem>>, vector<4x256xf32>
    tpu.vector_store %arg7[%c20_106, %c256_107], %252 {strides = array<i32>} : memref<36x512xf32, #tpu.memory_space<vmem>>, vector<4x256xf32>,
    %c241_i32_108 = arith.constant 241 : i32
    %254 = tpu.dynamic_rotate %217 by %c241_i32_108 dim 1 : vector<4x256xf32>, i32 -> vector<4x256xf32>
    %c0_i32_109 = arith.constant 0 : i32
    %255 = arith.sitofp %c0_i32_109 : i32 to f32
    %256 = vector.shape_cast %118 : vector<1x256xi1> to vector<1x256xi1>
    %257 = vector.broadcast %256 : vector<1x256xi1> to vector<4x256xi1>
    %258 = vector.broadcast %255 : f32 to vector<4x256xf32>
    %259 = arith.select %257, %254, %258 : vector<4x256xi1>, vector<4x256xf32>
    %c24_110 = arith.constant 24 : index
    %c256_111 = arith.constant 256 : index
    %260 = vector.load %arg7[%c24_110, %c256_111] : memref<36x512xf32, #tpu.memory_space<vmem>>, vector<4x256xf32>
    tpu.vector_store %arg7[%c24_110, %c256_111], %259 {strides = array<i32>} : memref<36x512xf32, #tpu.memory_space<vmem>>, vector<4x256xf32>,
    %c240_i32_112 = arith.constant 240 : i32
    %261 = tpu.dynamic_rotate %217 by %c240_i32_112 dim 1 : vector<4x256xf32>, i32 -> vector<4x256xf32>
    %c0_i32_113 = arith.constant 0 : i32
    %262 = arith.sitofp %c0_i32_113 : i32 to f32
    %263 = vector.shape_cast %137 : vector<1x256xi1> to vector<1x256xi1>
    %264 = vector.broadcast %263 : vector<1x256xi1> to vector<4x256xi1>
    %265 = vector.broadcast %262 : f32 to vector<4x256xf32>
    %266 = arith.select %264, %261, %265 : vector<4x256xi1>, vector<4x256xf32>
    %c28_114 = arith.constant 28 : index
    %c256_115 = arith.constant 256 : index
    %267 = vector.load %arg7[%c28_114, %c256_115] : memref<36x512xf32, #tpu.memory_space<vmem>>, vector<4x256xf32>
    tpu.vector_store %arg7[%c28_114, %c256_115], %266 {strides = array<i32>} : memref<36x512xf32, #tpu.memory_space<vmem>>, vector<4x256xf32>,
    %c239_i32_116 = arith.constant 239 : i32
    %268 = tpu.dynamic_rotate %217 by %c239_i32_116 dim 1 : vector<4x256xf32>, i32 -> vector<4x256xf32>
    %c0_i32_117 = arith.constant 0 : i32
    %269 = arith.sitofp %c0_i32_117 : i32 to f32
    %270 = vector.shape_cast %156 : vector<1x256xi1> to vector<1x256xi1>
    %271 = vector.broadcast %270 : vector<1x256xi1> to vector<4x256xi1>
    %272 = vector.broadcast %269 : f32 to vector<4x256xf32>
    %273 = arith.select %271, %268, %272 : vector<4x256xi1>, vector<4x256xf32>
    %c32_118 = arith.constant 32 : index
    %c256_119 = arith.constant 256 : index
    %274 = vector.load %arg7[%c32_118, %c256_119] : memref<36x512xf32, #tpu.memory_space<vmem>>, vector<4x256xf32>
    tpu.vector_store %arg7[%c32_118, %c256_119], %273 {strides = array<i32>} : memref<36x512xf32, #tpu.memory_space<vmem>>, vector<4x256xf32>,
    %c0_120 = arith.constant 0 : index
    %c0_121 = arith.constant 0 : index
    %275 = vector.load %arg2[%c0_120, %c0_121] : memref<4x36xf32, #tpu.memory_space<vmem>>, vector<4x36xf32>
    %c0_122 = arith.constant 0 : index
    %c0_123 = arith.constant 0 : index
    %276 = vector.load %arg7[%c0_122, %c0_123] : memref<36x512xf32, #tpu.memory_space<vmem>>, vector<36x512xf32>
    %cst = arith.constant dense<0.000000e+00> : vector<4x512xf32>
    %277 = tpu.matmul %275, %276, %cst {dimension_numbers = #tpu.dot_dimension_numbers<[1], [0], [0], [1], [0, 0, 1, 1], [], []>, precision = #tpu.contract_precision<fp32>} : vector<4x36xf32>, vector<36x512xf32>, vector<4x512xf32> -> vector<4x512xf32>
    %c0_124 = arith.constant 0 : index
    %c0_125 = arith.constant 0 : index
    %278 = vector.load %arg3[%c0_124, %c0_125] : memref<4x1xf32, #tpu.memory_space<vmem>>, vector<4x1xf32>
    %279 = vector.broadcast %278 : vector<4x1xf32> to vector<4x512xf32>
    %280 = arith.addf %277, %279 : vector<4x512xf32>
    %cst_126 = arith.constant 0.000000e+00 : f32
    %281 = vector.broadcast %cst_126 : f32 to vector<4x512xf32>
    %282 = arith.maximumf %280, %281 : vector<4x512xf32>
    %283 = vector.extract_strided_slice %282 {offsets = [0, 0], sizes = [4, 256], strides = [1, 1]} : vector<4x512xf32> to vector<4x256xf32>
    %c17_i32_127 = arith.constant 17 : i32
    %284 = tpu.dynamic_rotate %283 by %c17_i32_127 dim 1 : vector<4x256xf32>, i32 -> vector<4x256xf32>
    %c0_i32_128 = arith.constant 0 : i32
    %285 = arith.sitofp %c0_i32_128 : i32 to f32
    %286 = vector.shape_cast %23 : vector<1x256xi1> to vector<1x256xi1>
    %287 = vector.broadcast %286 : vector<1x256xi1> to vector<4x256xi1>
    %288 = vector.broadcast %285 : f32 to vector<4x256xf32>
    %289 = arith.select %287, %284, %288 : vector<4x256xi1>, vector<4x256xf32>
    %c0_129 = arith.constant 0 : index
    %c0_130 = arith.constant 0 : index
    %290 = vector.load %arg7[%c0_129, %c0_130] : memref<36x512xf32, #tpu.memory_space<vmem>>, vector<4x256xf32>
    tpu.vector_store %arg7[%c0_129, %c0_130], %289 {strides = array<i32>} : memref<36x512xf32, #tpu.memory_space<vmem>>, vector<4x256xf32>,
    %c16_i32_131 = arith.constant 16 : i32
    %291 = tpu.dynamic_rotate %283 by %c16_i32_131 dim 1 : vector<4x256xf32>, i32 -> vector<4x256xf32>
    %c0_i32_132 = arith.constant 0 : i32
    %292 = arith.sitofp %c0_i32_132 : i32 to f32
    %293 = vector.shape_cast %42 : vector<1x256xi1> to vector<1x256xi1>
    %294 = vector.broadcast %293 : vector<1x256xi1> to vector<4x256xi1>
    %295 = vector.broadcast %292 : f32 to vector<4x256xf32>
    %296 = arith.select %294, %291, %295 : vector<4x256xi1>, vector<4x256xf32>
    %c4_133 = arith.constant 4 : index
    %c0_134 = arith.constant 0 : index
    %297 = vector.load %arg7[%c4_133, %c0_134] : memref<36x512xf32, #tpu.memory_space<vmem>>, vector<4x256xf32>
    tpu.vector_store %arg7[%c4_133, %c0_134], %296 {strides = array<i32>} : memref<36x512xf32, #tpu.memory_space<vmem>>, vector<4x256xf32>,
    %c15_i32_135 = arith.constant 15 : i32
    %298 = tpu.dynamic_rotate %283 by %c15_i32_135 dim 1 : vector<4x256xf32>, i32 -> vector<4x256xf32>
    %c0_i32_136 = arith.constant 0 : i32
    %299 = arith.sitofp %c0_i32_136 : i32 to f32
    %300 = vector.shape_cast %61 : vector<1x256xi1> to vector<1x256xi1>
    %301 = vector.broadcast %300 : vector<1x256xi1> to vector<4x256xi1>
    %302 = vector.broadcast %299 : f32 to vector<4x256xf32>
    %303 = arith.select %301, %298, %302 : vector<4x256xi1>, vector<4x256xf32>
    %c8_137 = arith.constant 8 : index
    %c0_138 = arith.constant 0 : index
    %304 = vector.load %arg7[%c8_137, %c0_138] : memref<36x512xf32, #tpu.memory_space<vmem>>, vector<4x256xf32>
    tpu.vector_store %arg7[%c8_137, %c0_138], %303 {strides = array<i32>} : memref<36x512xf32, #tpu.memory_space<vmem>>, vector<4x256xf32>,
    %c1_i32_139 = arith.constant 1 : i32
    %305 = tpu.dynamic_rotate %283 by %c1_i32_139 dim 1 : vector<4x256xf32>, i32 -> vector<4x256xf32>
    %c0_i32_140 = arith.constant 0 : i32
    %306 = arith.sitofp %c0_i32_140 : i32 to f32
    %307 = vector.shape_cast %80 : vector<1x256xi1> to vector<1x256xi1>
    %308 = vector.broadcast %307 : vector<1x256xi1> to vector<4x256xi1>
    %309 = vector.broadcast %306 : f32 to vector<4x256xf32>
    %310 = arith.select %308, %305, %309 : vector<4x256xi1>, vector<4x256xf32>
    %c12_141 = arith.constant 12 : index
    %c0_142 = arith.constant 0 : index
    %311 = vector.load %arg7[%c12_141, %c0_142] : memref<36x512xf32, #tpu.memory_space<vmem>>, vector<4x256xf32>
    tpu.vector_store %arg7[%c12_141, %c0_142], %310 {strides = array<i32>} : memref<36x512xf32, #tpu.memory_space<vmem>>, vector<4x256xf32>,
    %c16_143 = arith.constant 16 : index
    %c0_144 = arith.constant 0 : index
    %312 = vector.load %arg7[%c16_143, %c0_144] : memref<36x512xf32, #tpu.memory_space<vmem>>, vector<4x256xf32>
    tpu.vector_store %arg7[%c16_143, %c0_144], %283 {strides = array<i32>} : memref<36x512xf32, #tpu.memory_space<vmem>>, vector<4x256xf32>,
    %c255_i32_145 = arith.constant 255 : i32
    %313 = tpu.dynamic_rotate %283 by %c255_i32_145 dim 1 : vector<4x256xf32>, i32 -> vector<4x256xf32>
    %c0_i32_146 = arith.constant 0 : i32
    %314 = arith.sitofp %c0_i32_146 : i32 to f32
    %315 = vector.shape_cast %99 : vector<1x256xi1> to vector<1x256xi1>
    %316 = vector.broadcast %315 : vector<1x256xi1> to vector<4x256xi1>
    %317 = vector.broadcast %314 : f32 to vector<4x256xf32>
    %318 = arith.select %316, %313, %317 : vector<4x256xi1>, vector<4x256xf32>
    %c20_147 = arith.constant 20 : index
    %c0_148 = arith.constant 0 : index
    %319 = vector.load %arg7[%c20_147, %c0_148] : memref<36x512xf32, #tpu.memory_space<vmem>>, vector<4x256xf32>
    tpu.vector_store %arg7[%c20_147, %c0_148], %318 {strides = array<i32>} : memref<36x512xf32, #tpu.memory_space<vmem>>, vector<4x256xf32>,
    %c241_i32_149 = arith.constant 241 : i32
    %320 = tpu.dynamic_rotate %283 by %c241_i32_149 dim 1 : vector<4x256xf32>, i32 -> vector<4x256xf32>
    %c0_i32_150 = arith.constant 0 : i32
    %321 = arith.sitofp %c0_i32_150 : i32 to f32
    %322 = vector.shape_cast %118 : vector<1x256xi1> to vector<1x256xi1>
    %323 = vector.broadcast %322 : vector<1x256xi1> to vector<4x256xi1>
    %324 = vector.broadcast %321 : f32 to vector<4x256xf32>
    %325 = arith.select %323, %320, %324 : vector<4x256xi1>, vector<4x256xf32>
    %c24_151 = arith.constant 24 : index
    %c0_152 = arith.constant 0 : index
    %326 = vector.load %arg7[%c24_151, %c0_152] : memref<36x512xf32, #tpu.memory_space<vmem>>, vector<4x256xf32>
    tpu.vector_store %arg7[%c24_151, %c0_152], %325 {strides = array<i32>} : memref<36x512xf32, #tpu.memory_space<vmem>>, vector<4x256xf32>,
    %c240_i32_153 = arith.constant 240 : i32
    %327 = tpu.dynamic_rotate %283 by %c240_i32_153 dim 1 : vector<4x256xf32>, i32 -> vector<4x256xf32>
    %c0_i32_154 = arith.constant 0 : i32
    %328 = arith.sitofp %c0_i32_154 : i32 to f32
    %329 = vector.shape_cast %137 : vector<1x256xi1> to vector<1x256xi1>
    %330 = vector.broadcast %329 : vector<1x256xi1> to vector<4x256xi1>
    %331 = vector.broadcast %328 : f32 to vector<4x256xf32>
    %332 = arith.select %330, %327, %331 : vector<4x256xi1>, vector<4x256xf32>
    %c28_155 = arith.constant 28 : index
    %c0_156 = arith.constant 0 : index
    %333 = vector.load %arg7[%c28_155, %c0_156] : memref<36x512xf32, #tpu.memory_space<vmem>>, vector<4x256xf32>
    tpu.vector_store %arg7[%c28_155, %c0_156], %332 {strides = array<i32>} : memref<36x512xf32, #tpu.memory_space<vmem>>, vector<4x256xf32>,
    %c239_i32_157 = arith.constant 239 : i32
    %334 = tpu.dynamic_rotate %283 by %c239_i32_157 dim 1 : vector<4x256xf32>, i32 -> vector<4x256xf32>
    %c0_i32_158 = arith.constant 0 : i32
    %335 = arith.sitofp %c0_i32_158 : i32 to f32
    %336 = vector.shape_cast %156 : vector<1x256xi1> to vector<1x256xi1>
    %337 = vector.broadcast %336 : vector<1x256xi1> to vector<4x256xi1>
    %338 = vector.broadcast %335 : f32 to vector<4x256xf32>
    %339 = arith.select %337, %334, %338 : vector<4x256xi1>, vector<4x256xf32>
    %c32_159 = arith.constant 32 : index
    %c0_160 = arith.constant 0 : index
    %340 = vector.load %arg7[%c32_159, %c0_160] : memref<36x512xf32, #tpu.memory_space<vmem>>, vector<4x256xf32>
    tpu.vector_store %arg7[%c32_159, %c0_160], %339 {strides = array<i32>} : memref<36x512xf32, #tpu.memory_space<vmem>>, vector<4x256xf32>,
    %341 = vector.extract_strided_slice %282 {offsets = [0, 256], sizes = [4, 256], strides = [1, 1]} : vector<4x512xf32> to vector<4x256xf32>
    %c17_i32_161 = arith.constant 17 : i32
    %342 = tpu.dynamic_rotate %341 by %c17_i32_161 dim 1 : vector<4x256xf32>, i32 -> vector<4x256xf32>
    %c0_i32_162 = arith.constant 0 : i32
    %343 = arith.sitofp %c0_i32_162 : i32 to f32
    %344 = vector.shape_cast %23 : vector<1x256xi1> to vector<1x256xi1>
    %345 = vector.broadcast %344 : vector<1x256xi1> to vector<4x256xi1>
    %346 = vector.broadcast %343 : f32 to vector<4x256xf32>
    %347 = arith.select %345, %342, %346 : vector<4x256xi1>, vector<4x256xf32>
    %c0_163 = arith.constant 0 : index
    %c256_164 = arith.constant 256 : index
    %348 = vector.load %arg7[%c0_163, %c256_164] : memref<36x512xf32, #tpu.memory_space<vmem>>, vector<4x256xf32>
    tpu.vector_store %arg7[%c0_163, %c256_164], %347 {strides = array<i32>} : memref<36x512xf32, #tpu.memory_space<vmem>>, vector<4x256xf32>,
    %c16_i32_165 = arith.constant 16 : i32
    %349 = tpu.dynamic_rotate %341 by %c16_i32_165 dim 1 : vector<4x256xf32>, i32 -> vector<4x256xf32>
    %c0_i32_166 = arith.constant 0 : i32
    %350 = arith.sitofp %c0_i32_166 : i32 to f32
    %351 = vector.shape_cast %42 : vector<1x256xi1> to vector<1x256xi1>
    %352 = vector.broadcast %351 : vector<1x256xi1> to vector<4x256xi1>
    %353 = vector.broadcast %350 : f32 to vector<4x256xf32>
    %354 = arith.select %352, %349, %353 : vector<4x256xi1>, vector<4x256xf32>
    %c4_167 = arith.constant 4 : index
    %c256_168 = arith.constant 256 : index
    %355 = vector.load %arg7[%c4_167, %c256_168] : memref<36x512xf32, #tpu.memory_space<vmem>>, vector<4x256xf32>
    tpu.vector_store %arg7[%c4_167, %c256_168], %354 {strides = array<i32>} : memref<36x512xf32, #tpu.memory_space<vmem>>, vector<4x256xf32>,
    %c15_i32_169 = arith.constant 15 : i32
    %356 = tpu.dynamic_rotate %341 by %c15_i32_169 dim 1 : vector<4x256xf32>, i32 -> vector<4x256xf32>
    %c0_i32_170 = arith.constant 0 : i32
    %357 = arith.sitofp %c0_i32_170 : i32 to f32
    %358 = vector.shape_cast %61 : vector<1x256xi1> to vector<1x256xi1>
    %359 = vector.broadcast %358 : vector<1x256xi1> to vector<4x256xi1>
    %360 = vector.broadcast %357 : f32 to vector<4x256xf32>
    %361 = arith.select %359, %356, %360 : vector<4x256xi1>, vector<4x256xf32>
    %c8_171 = arith.constant 8 : index
    %c256_172 = arith.constant 256 : index
    %362 = vector.load %arg7[%c8_171, %c256_172] : memref<36x512xf32, #tpu.memory_space<vmem>>, vector<4x256xf32>
    tpu.vector_store %arg7[%c8_171, %c256_172], %361 {strides = array<i32>} : memref<36x512xf32, #tpu.memory_space<vmem>>, vector<4x256xf32>,
    %c1_i32_173 = arith.constant 1 : i32
    %363 = tpu.dynamic_rotate %341 by %c1_i32_173 dim 1 : vector<4x256xf32>, i32 -> vector<4x256xf32>
    %c0_i32_174 = arith.constant 0 : i32
    %364 = arith.sitofp %c0_i32_174 : i32 to f32
    %365 = vector.shape_cast %80 : vector<1x256xi1> to vector<1x256xi1>
    %366 = vector.broadcast %365 : vector<1x256xi1> to vector<4x256xi1>
    %367 = vector.broadcast %364 : f32 to vector<4x256xf32>
    %368 = arith.select %366, %363, %367 : vector<4x256xi1>, vector<4x256xf32>
    %c12_175 = arith.constant 12 : index
    %c256_176 = arith.constant 256 : index
    %369 = vector.load %arg7[%c12_175, %c256_176] : memref<36x512xf32, #tpu.memory_space<vmem>>, vector<4x256xf32>
    tpu.vector_store %arg7[%c12_175, %c256_176], %368 {strides = array<i32>} : memref<36x512xf32, #tpu.memory_space<vmem>>, vector<4x256xf32>,
    %c16_177 = arith.constant 16 : index
    %c256_178 = arith.constant 256 : index
    %370 = vector.load %arg7[%c16_177, %c256_178] : memref<36x512xf32, #tpu.memory_space<vmem>>, vector<4x256xf32>
    tpu.vector_store %arg7[%c16_177, %c256_178], %341 {strides = array<i32>} : memref<36x512xf32, #tpu.memory_space<vmem>>, vector<4x256xf32>,
    %c255_i32_179 = arith.constant 255 : i32
    %371 = tpu.dynamic_rotate %341 by %c255_i32_179 dim 1 : vector<4x256xf32>, i32 -> vector<4x256xf32>
    %c0_i32_180 = arith.constant 0 : i32
    %372 = arith.sitofp %c0_i32_180 : i32 to f32
    %373 = vector.shape_cast %99 : vector<1x256xi1> to vector<1x256xi1>
    %374 = vector.broadcast %373 : vector<1x256xi1> to vector<4x256xi1>
    %375 = vector.broadcast %372 : f32 to vector<4x256xf32>
    %376 = arith.select %374, %371, %375 : vector<4x256xi1>, vector<4x256xf32>
    %c20_181 = arith.constant 20 : index
    %c256_182 = arith.constant 256 : index
    %377 = vector.load %arg7[%c20_181, %c256_182] : memref<36x512xf32, #tpu.memory_space<vmem>>, vector<4x256xf32>
    tpu.vector_store %arg7[%c20_181, %c256_182], %376 {strides = array<i32>} : memref<36x512xf32, #tpu.memory_space<vmem>>, vector<4x256xf32>,
    %c241_i32_183 = arith.constant 241 : i32
    %378 = tpu.dynamic_rotate %341 by %c241_i32_183 dim 1 : vector<4x256xf32>, i32 -> vector<4x256xf32>
    %c0_i32_184 = arith.constant 0 : i32
    %379 = arith.sitofp %c0_i32_184 : i32 to f32
    %380 = vector.shape_cast %118 : vector<1x256xi1> to vector<1x256xi1>
    %381 = vector.broadcast %380 : vector<1x256xi1> to vector<4x256xi1>
    %382 = vector.broadcast %379 : f32 to vector<4x256xf32>
    %383 = arith.select %381, %378, %382 : vector<4x256xi1>, vector<4x256xf32>
    %c24_185 = arith.constant 24 : index
    %c256_186 = arith.constant 256 : index
    %384 = vector.load %arg7[%c24_185, %c256_186] : memref<36x512xf32, #tpu.memory_space<vmem>>, vector<4x256xf32>
    tpu.vector_store %arg7[%c24_185, %c256_186], %383 {strides = array<i32>} : memref<36x512xf32, #tpu.memory_space<vmem>>, vector<4x256xf32>,
    %c240_i32_187 = arith.constant 240 : i32
    %385 = tpu.dynamic_rotate %341 by %c240_i32_187 dim 1 : vector<4x256xf32>, i32 -> vector<4x256xf32>
    %c0_i32_188 = arith.constant 0 : i32
    %386 = arith.sitofp %c0_i32_188 : i32 to f32
    %387 = vector.shape_cast %137 : vector<1x256xi1> to vector<1x256xi1>
    %388 = vector.broadcast %387 : vector<1x256xi1> to vector<4x256xi1>
    %389 = vector.broadcast %386 : f32 to vector<4x256xf32>
    %390 = arith.select %388, %385, %389 : vector<4x256xi1>, vector<4x256xf32>
    %c28_189 = arith.constant 28 : index
    %c256_190 = arith.constant 256 : index
    %391 = vector.load %arg7[%c28_189, %c256_190] : memref<36x512xf32, #tpu.memory_space<vmem>>, vector<4x256xf32>
    tpu.vector_store %arg7[%c28_189, %c256_190], %390 {strides = array<i32>} : memref<36x512xf32, #tpu.memory_space<vmem>>, vector<4x256xf32>,
    %c239_i32_191 = arith.constant 239 : i32
    %392 = tpu.dynamic_rotate %341 by %c239_i32_191 dim 1 : vector<4x256xf32>, i32 -> vector<4x256xf32>
    %c0_i32_192 = arith.constant 0 : i32
    %393 = arith.sitofp %c0_i32_192 : i32 to f32
    %394 = vector.shape_cast %156 : vector<1x256xi1> to vector<1x256xi1>
    %395 = vector.broadcast %394 : vector<1x256xi1> to vector<4x256xi1>
    %396 = vector.broadcast %393 : f32 to vector<4x256xf32>
    %397 = arith.select %395, %392, %396 : vector<4x256xi1>, vector<4x256xf32>
    %c32_193 = arith.constant 32 : index
    %c256_194 = arith.constant 256 : index
    %398 = vector.load %arg7[%c32_193, %c256_194] : memref<36x512xf32, #tpu.memory_space<vmem>>, vector<4x256xf32>
    tpu.vector_store %arg7[%c32_193, %c256_194], %397 {strides = array<i32>} : memref<36x512xf32, #tpu.memory_space<vmem>>, vector<4x256xf32>,
    %c0_195 = arith.constant 0 : index
    %c0_196 = arith.constant 0 : index
    %399 = vector.load %arg4[%c0_195, %c0_196] : memref<4x36xf32, #tpu.memory_space<vmem>>, vector<4x36xf32>
    %c0_197 = arith.constant 0 : index
    %c0_198 = arith.constant 0 : index
    %400 = vector.load %arg7[%c0_197, %c0_198] : memref<36x512xf32, #tpu.memory_space<vmem>>, vector<36x512xf32>
    %cst_199 = arith.constant dense<0.000000e+00> : vector<4x512xf32>
    %401 = tpu.matmul %399, %400, %cst_199 {dimension_numbers = #tpu.dot_dimension_numbers<[1], [0], [0], [1], [0, 0, 1, 1], [], []>, precision = #tpu.contract_precision<fp32>} : vector<4x36xf32>, vector<36x512xf32>, vector<4x512xf32> -> vector<4x512xf32>
    %c0_200 = arith.constant 0 : index
    %c0_201 = arith.constant 0 : index
    %402 = vector.load %arg5[%c0_200, %c0_201] : memref<4x1xf32, #tpu.memory_space<vmem>>, vector<4x1xf32>
    %403 = vector.broadcast %402 : vector<4x1xf32> to vector<4x512xf32>
    %404 = arith.addf %401, %403 : vector<4x512xf32>
    %c0_202 = arith.constant 0 : index
    %c0_203 = arith.constant 0 : index
    %c0_204 = arith.constant 0 : index
    %c0_205 = arith.constant 0 : index
    %405 = vector.load %arg1[%c0_202, %c0_203, %c0_204, %c0_205] : memref<1x2x4x256xf32, #tpu.memory_space<vmem>>, vector<1x1x4x256xf32>
    %406 = vector.shape_cast %405 : vector<1x1x4x256xf32> to vector<4x256xf32>
    %407 = vector.extract_strided_slice %404 {offsets = [0, 0], sizes = [4, 256], strides = [1, 1]} : vector<4x512xf32> to vector<4x256xf32>
    %408 = arith.addf %407, %406 : vector<4x256xf32>
    %cst_206 = arith.constant 0.000000e+00 : f32
    %409 = vector.broadcast %cst_206 : f32 to vector<4x256xf32>
    %410 = arith.maximumf %408, %409 : vector<4x256xf32>
    %c0_207 = arith.constant 0 : index
    %c0_208 = arith.constant 0 : index
    %c0_209 = arith.constant 0 : index
    %c0_210 = arith.constant 0 : index
    %411 = vector.load %arg6[%c0_207, %c0_208, %c0_209, %c0_210] : memref<1x2x4x256xf32, #tpu.memory_space<vmem>>, vector<1x1x4x256xf32>
    %412 = vector.shape_cast %411 : vector<1x1x4x256xf32> to vector<4x256xf32>
    %413 = vector.shape_cast %410 : vector<4x256xf32> to vector<1x1x4x256xf32>
    tpu.vector_store %arg6[%c0_207, %c0_208, %c0_209, %c0_210], %413 {strides = array<i32>} : memref<1x2x4x256xf32, #tpu.memory_space<vmem>>, vector<1x1x4x256xf32>,
    %c0_211 = arith.constant 0 : index
    %c1_212 = arith.constant 1 : index
    %c0_213 = arith.constant 0 : index
    %c0_214 = arith.constant 0 : index
    %414 = vector.load %arg1[%c0_211, %c1_212, %c0_213, %c0_214] : memref<1x2x4x256xf32, #tpu.memory_space<vmem>>, vector<1x1x4x256xf32>
    %415 = vector.shape_cast %414 : vector<1x1x4x256xf32> to vector<4x256xf32>
    %416 = vector.extract_strided_slice %404 {offsets = [0, 256], sizes = [4, 256], strides = [1, 1]} : vector<4x512xf32> to vector<4x256xf32>
    %417 = arith.addf %416, %415 : vector<4x256xf32>
    %cst_215 = arith.constant 0.000000e+00 : f32
    %418 = vector.broadcast %cst_215 : f32 to vector<4x256xf32>
    %419 = arith.maximumf %417, %418 : vector<4x256xf32>
    %c0_216 = arith.constant 0 : index
    %c1_217 = arith.constant 1 : index
    %c0_218 = arith.constant 0 : index
    %c0_219 = arith.constant 0 : index
    %420 = vector.load %arg6[%c0_216, %c1_217, %c0_218, %c0_219] : memref<1x2x4x256xf32, #tpu.memory_space<vmem>>, vector<1x1x4x256xf32>
    %421 = vector.shape_cast %420 : vector<1x1x4x256xf32> to vector<4x256xf32>
    %422 = vector.shape_cast %419 : vector<4x256xf32> to vector<1x1x4x256xf32>
    tpu.vector_store %arg6[%c0_216, %c1_217, %c0_218, %c0_219], %422 {strides = array<i32>} : memref<1x2x4x256xf32, #tpu.memory_space<vmem>>, vector<1x1x4x256xf32>,
    return
  }
  func.func @transform_0(%arg0: i32) -> (i32, i32, i32, i32) {
    %c0_i32 = arith.constant 0 : i32
    %c0_i32_0 = arith.constant 0 : i32
    %c0_i32_1 = arith.constant 0 : i32
    %c0_i32_2 = arith.constant 0 : i32
    return %arg0, %c0_i32, %c0_i32_0, %c0_i32_1 : i32, i32, i32, i32
  }
  func.func @transform_1(%arg0: i32) -> (i32, i32) {
    %c0_i32 = arith.constant 0 : i32
    %c0_i32_0 = arith.constant 0 : i32
    %c0_i32_1 = arith.constant 0 : i32
    return %c0_i32, %c0_i32_0 : i32, i32
  }
  func.func @transform_2(%arg0: i32) -> (i32, i32) {
    %c0_i32 = arith.constant 0 : i32
    %c0_i32_0 = arith.constant 0 : i32
    %c0_i32_1 = arith.constant 0 : i32
    return %c0_i32, %c0_i32_0 : i32, i32
  }
  func.func @transform_3(%arg0: i32) -> (i32, i32) {
    %c0_i32 = arith.constant 0 : i32
    %c0_i32_0 = arith.constant 0 : i32
    %c0_i32_1 = arith.constant 0 : i32
    return %c0_i32, %c0_i32_0 : i32, i32
  }
  func.func @transform_4(%arg0: i32) -> (i32, i32) {
    %c0_i32 = arith.constant 0 : i32
    %c0_i32_0 = arith.constant 0 : i32
    %c0_i32_1 = arith.constant 0 : i32
    return %c0_i32, %c0_i32_0 : i32, i32
  }
  func.func @transform_5(%arg0: i32) -> (i32, i32, i32, i32) {
    %c0_i32 = arith.constant 0 : i32
    %c0_i32_0 = arith.constant 0 : i32
    %c0_i32_1 = arith.constant 0 : i32
    %c0_i32_2 = arith.constant 0 : i32
    return %arg0, %c0_i32, %c0_i32_0, %c0_i32_1 : i32, i32, i32, i32
  }
}

</mosaic_0001>

<llo_original>
// kernel: tpu_custom_call.1
$region0: #{tpu_custom_call.1}
  #allocation0 [shape = 'u32[]', space=smem, size = 0x4, offset = 0x4, fixed_abs, tag = 'smem constant byte address 0x4 - core index']
  #allocation1 [shape = 'u32[144,128]{1,0:T(1,128)}', space=vmem, size = 0x12000, scoped, tag = 'internal scratch']
  #allocation2 [shape = 'f32[36,512]{1,0:T(8,128)}', space=vmem, size = 0x14000, scoped, tag = 'scratch operand']
  %s0 = inlined_call_operand.hbm [shape: f32[1,2,4,256], index: 0, kind: input, shape index: {}]
  %s1 = inlined_call_operand.vmem [shape: f32[4,36], index: 1, kind: input, shape index: {}]
  %s2 = inlined_call_operand.vmem [shape: f32[4,1], index: 2, kind: input, shape index: {}]
  %s3 = inlined_call_operand.vmem [shape: f32[4,36], index: 3, kind: input, shape index: {}]
  %s4 = inlined_call_operand.vmem [shape: f32[4,1], index: 4, kind: input, shape index: {}]
  %s5 = inlined_call_operand.hbm [shape: f32[1,2,4,256], index: 5, kind: output, shape index: {}]
  %s6 = sld [smem:[#allocation0]]
  $region34: #{tpu_custom_call.1} parent=0
    _
  %s8 = ssub.s32 1, %s6
  %s9 = scalar_select 0, %s8, %s6
  $region1: #{tpu_custom_call.1} parent=0
    #allocation3 [shape = 'u8[8192]{0}', space=vmem, size = 0x2000, scoped, tag = 'input window, operand 0, single buffered']
    #allocation4 [shape = 's32[1]{0}', space=sflag, size = 0x4, scoped, tag = 'scoped memory for tpu_custom_call.1']
    #allocation5 [shape = 's32[1]{0}', space=sflag, size = 0x4, scoped, tag = 'scoped memory for tpu_custom_call.1']
    #allocation6 [shape = 'u8[8192]{0}', space=vmem, size = 0x2000, scoped, tag = 'output window, operand 0, single buffered']
    %10 = vsyncpa [#allocation4], 0
    %11 = vsyncpa [#allocation5], 0
    // Predicated region
    $region2: #{tpu_custom_call.1} parent=1 // pred_check
      _
    $region3: #{tpu_custom_call.1} parent=1 // pred_check_branch
      %13 = sbr.rel (0) target = $region5
    $region4: #{tpu_custom_call.1} parent=1 // pred_region
      %s15 = ssub.s32 256, 256
      %16 = vsyncadd [#allocation4], %s15
      %s17 = sshll.u32 [#allocation3], 4
      %s18 = int_to_ptr.vmem [resolvable:$true] %s17
      %23 = dma.hbm_to_vmem [thread:$0]  %s0, 256, %s18, [#allocation4], 128, 128, 8
    $region5: #{tpu_custom_call.1} parent=1 // pred_fallthru
      _
    // Predicated region
    $region6: #{tpu_custom_call.1} parent=1 // pred_check
      _
    $region7: #{tpu_custom_call.1} parent=1 // pred_check_branch
      %25 = sbr.rel (0) target = $region9
    $region8: #{tpu_custom_call.1} parent=1 // pred_region
      _
    $region9: #{tpu_custom_call.1} parent=1 // pred_fallthru
      _
    // Predicated region
    $region10: #{tpu_custom_call.1} parent=1 // pred_check
      _
    $region11: #{tpu_custom_call.1} parent=1 // pred_check_branch
      %27 = sbr.rel (0) target = $region13
    $region12: #{tpu_custom_call.1} parent=1 // pred_region
      _
    $region13: #{tpu_custom_call.1} parent=1 // pred_fallthru
      _
    // Predicated region
    $region14: #{tpu_custom_call.1} parent=1 // pred_check
      _
    $region15: #{tpu_custom_call.1} parent=1 // pred_check_branch
      %29 = sbr.rel (0) target = $region17
    $region16: #{tpu_custom_call.1} parent=1 // pred_region
      _
    $region17: #{tpu_custom_call.1} parent=1 // pred_fallthru
      _
    // Predicated region
    $region18: #{tpu_custom_call.1} parent=1 // pred_check
      _
    $region19: #{tpu_custom_call.1} parent=1 // pred_check_branch
      %31 = sbr.rel (0) target = $region21
    $region20: #{tpu_custom_call.1} parent=1 // pred_region
      _
    $region21: #{tpu_custom_call.1} parent=1 // pred_fallthru
      _
    // Predicated region
    $region22: #{tpu_custom_call.1} parent=1 // pred_check
      _
    $region23: #{tpu_custom_call.1} parent=1 // pred_check_branch
      %33 = sbr.rel (0) target = $region25
    $region24: #{tpu_custom_call.1} parent=1 // pred_region
      %34 = dma.done [#allocation4], 256
    $region25: #{tpu_custom_call.1} parent=1 // pred_fallthru
      _
    %v35 = vlaneseq
    %v36 = vand.u32 %v35, 127
    %v37 = vadd.s32 %v36, 128
    %v38 = vand.u32 %v36, 15
    %v39 = vand.u32 %v37, 15
    %v40 = vshra.s32 %v36, 4
    %v41 = vshra.s32 %v37, 4
    %v42 = vadd.s32 %v40, 4294967295
    %v43 = vadd.s32 %v41, 4294967295
    %vm44 = vcmp.ge.s32.totalorder %v42, 0
    %vm45 = vcmp.ge.s32.totalorder %v43, 0
    %vm46 = vcmp.lt.s32.totalorder %v42, 16
    %vm47 = vcmp.lt.s32.totalorder %v43, 16
    %vm48 = vmand %vm44, %vm46
    %vm49 = vmand %vm45, %vm47
    %v50 = vadd.s32 %v38, 4294967295
    %v51 = vadd.s32 %v39, 4294967295
    %vm52 = vcmp.ge.s32.totalorder %v50, 0
    %vm53 = vcmp.ge.s32.totalorder %v51, 0
    %vm54 = vmand %vm48, %vm52
    %vm55 = vmand %vm49, %vm53
    %vm56 = vcmp.lt.s32.totalorder %v50, 16
    %vm57 = vcmp.lt.s32.totalorder %v51, 16
    %vm58 = vmand %vm54, %vm56
    %vm59 = vmand %vm55, %vm57
    %vm60 = vcmp.ge.s32.totalorder %v38, 0
    %vm61 = vcmp.ge.s32.totalorder %v39, 0
    %vm62 = vmand %vm48, %vm60
    %vm63 = vmand %vm49, %vm61
    %vm64 = vcmp.lt.s32.totalorder %v38, 16
    %vm65 = vcmp.lt.s32.totalorder %v39, 16
    %vm66 = vmand %vm62, %vm64
    %vm67 = vmand %vm63, %vm65
    %v68 = vadd.s32 %v38, 1
    %v69 = vadd.s32 %v39, 1
    %vm70 = vcmp.ge.s32.totalorder %v68, 0
    %vm71 = vcmp.ge.s32.totalorder %v69, 0
    %vm72 = vmand %vm48, %vm70
    %vm73 = vmand %vm49, %vm71
    %vm74 = vcmp.lt.s32.totalorder %v68, 16
    %vm75 = vcmp.lt.s32.totalorder %v69, 16
    %vm76 = vmand %vm72, %vm74
    %vm77 = vmand %vm73, %vm75
    %vm78 = vcmp.ge.s32.totalorder %v40, 0
    %vm79 = vcmp.ge.s32.totalorder %v41, 0
    %vm80 = vcmp.lt.s32.totalorder %v40, 16
    %vm81 = vcmp.lt.s32.totalorder %v41, 16
    %vm82 = vmand %vm78, %vm80
    %vm83 = vmand %vm79, %vm81
    %vm84 = vmand %vm82, %vm52
    %vm85 = vmand %vm83, %vm53
    %vm86 = vmand %vm84, %vm56
    %vm87 = vmand %vm85, %vm57
    %vm88 = vmand %vm82, %vm70
    %vm89 = vmand %vm83, %vm71
    %vm90 = vmand %vm88, %vm74
    %vm91 = vmand %vm89, %vm75
    %v92 = vadd.s32 %v40, 1
    %v93 = vadd.s32 %v41, 1
    %vm94 = vcmp.ge.s32.totalorder %v92, 0
    %vm95 = vcmp.ge.s32.totalorder %v93, 0
    %vm96 = vcmp.lt.s32.totalorder %v92, 16
    %vm97 = vcmp.lt.s32.totalorder %v93, 16
    %vm98 = vmand %vm94, %vm96
    %vm99 = vmand %vm95, %vm97
    %vm100 = vmand %vm98, %vm52
    %vm101 = vmand %vm99, %vm53
    %vm102 = vmand %vm100, %vm56
    %vm103 = vmand %vm101, %vm57
    %vm104 = vmand %vm98, %vm60
    %vm105 = vmand %vm99, %vm61
    %vm106 = vmand %vm104, %vm64
    %vm107 = vmand %vm105, %vm65
    %vm108 = vmand %vm98, %vm70
    %vm109 = vmand %vm99, %vm71
    %vm110 = vmand %vm108, %vm74
    %vm111 = vmand %vm109, %vm75
    %v112 = vld [vmem:[#allocation3] sm:$0xff]
    %v114 = vcombine.high %v112, %v112
    %116 = vrot.lane.b32.xlu0 %v112, 17
    %v117 = vpop.permute.xlu0 %116
    %118 = vrot.lane.b32.xlu0 %v114, 17
    %v119 = vpop.permute.xlu0 %118
    %vm120 = vcmp.lt.s32.totalorder %v36, 17
    %v121 = vsel %vm120, %v117, %v119
    %v122 = vsel %vm120, %v119, %v117
    %v123 = vsel %vm58, 1, 0
    %v124 = vsel %vm59, 1, 0
    %vm125 = vcmp.eq.s32.totalorder %v123, 1
    %vm126 = vcmp.eq.s32.totalorder %v124, 1
    %v127 = vsel %vm125, %v122, 0.0
    %v128 = vsel %vm126, %v121, 0.0
    %129 = vst [vmem:[#allocation2] sm:$0xf] %v127
    %130 = vst [vmem:[#allocation2 + $0x8] sm:$0xf] %v128
    %131 = vrot.lane.b32.xlu0 %v112, 16
    %v132 = vpop.permute.xlu0 %131
    %133 = vrot.lane.b32.xlu0 %v114, 16
    %v134 = vpop.permute.xlu0 %133
    %vm135 = vcmp.lt.s32.totalorder %v36, 16
    %v136 = vsel %vm135, %v132, %v134
    %v137 = vsel %vm135, %v134, %v132
    %v138 = vsel %vm66, 1, 0
    %v139 = vsel %vm67, 1, 0
    %vm140 = vcmp.eq.s32.totalorder %v138, 1
    %vm141 = vcmp.eq.s32.totalorder %v139, 1
    %v142 = vsel %vm140, %v137, 0.0
    %v143 = vsel %vm141, %v136, 0.0
    %v146 = vrot.slane %v142, 4
    %v147 = vrot.slane %v143, 4
    %150 = vst [vmem:[#allocation2] sm:$0xf0] %v146
    %151 = vst [vmem:[#allocation2 + $0x8] sm:$0xf0] %v147
    %152 = vrot.lane.b32.xlu0 %v112, 15
    %v153 = vpop.permute.xlu0 %152
    %154 = vrot.lane.b32.xlu0 %v114, 15
    %v155 = vpop.permute.xlu0 %154
    %vm156 = vcmp.lt.s32.totalorder %v36, 15
    %v157 = vsel %vm156, %v153, %v155
    %v158 = vsel %vm156, %v155, %v153
    %v159 = vsel %vm76, 1, 0
    %v160 = vsel %vm77, 1, 0
    %vm161 = vcmp.eq.s32.totalorder %v159, 1
    %vm162 = vcmp.eq.s32.totalorder %v160, 1
    %v163 = vsel %vm161, %v158, 0.0
    %v164 = vsel %vm162, %v157, 0.0
    %165 = vst [vmem:[#allocation2 + $0x20] sm:$0xf] %v163
    %166 = vst [vmem:[#allocation2 + $0x28] sm:$0xf] %v164
    %167 = vrot.lane.b32.xlu0 %v112, 1
    %v168 = vpop.permute.xlu0 %167
    %169 = vrot.lane.b32.xlu0 %v114, 1
    %v170 = vpop.permute.xlu0 %169
    %vm171 = vcmp.lt.s32.totalorder %v36, 1
    %v172 = vsel %vm171, %v168, %v170
    %v173 = vsel %vm171, %v170, %v168
    %v174 = vsel %vm86, 1, 0
    %v175 = vsel %vm87, 1, 0
    %vm176 = vcmp.eq.s32.totalorder %v174, 1
    %vm177 = vcmp.eq.s32.totalorder %v175, 1
    %v178 = vsel %vm176, %v173, 0.0
    %v179 = vsel %vm177, %v172, 0.0
    %v182 = vrot.slane %v178, 4
    %v183 = vrot.slane %v179, 4
    %186 = vst [vmem:[#allocation2 + $0x20] sm:$0xf0] %v182
    %187 = vst [vmem:[#allocation2 + $0x28] sm:$0xf0] %v183
    %188 = vst [vmem:[#allocation2 + $0x40] sm:$0xf] %v112
    %189 = vst [vmem:[#allocation2 + $0x48] sm:$0xf] %v114
    %190 = vrot.lane.b32.xlu0 %v112, 127
    %v191 = vpop.permute.xlu0 %190
    %192 = vrot.lane.b32.xlu0 %v114, 127
    %v193 = vpop.permute.xlu0 %192
    %vm194 = vcmp.lt.s32.totalorder %v36, 127
    %v195 = vsel %vm194, %v191, %v193
    %v196 = vsel %vm194, %v193, %v191
    %v197 = vsel %vm90, 1, 0
    %v198 = vsel %vm91, 1, 0
    %vm199 = vcmp.eq.s32.totalorder %v197, 1
    %vm200 = vcmp.eq.s32.totalorder %v198, 1
    %v201 = vsel %vm199, %v195, 0.0
    %v202 = vsel %vm200, %v196, 0.0
    %v205 = vrot.slane %v201, 4
    %v206 = vrot.slane %v202, 4
    %209 = vst [vmem:[#allocation2 + $0x40] sm:$0xf0] %v205
    %210 = vst [vmem:[#allocation2 + $0x48] sm:$0xf0] %v206
    %211 = vrot.lane.b32.xlu0 %v112, 113
    %v212 = vpop.permute.xlu0 %211
    %213 = vrot.lane.b32.xlu0 %v114, 113
    %v214 = vpop.permute.xlu0 %213
    %vm215 = vcmp.lt.s32.totalorder %v36, 113
    %v216 = vsel %vm215, %v212, %v214
    %v217 = vsel %vm215, %v214, %v212
    %v218 = vsel %vm102, 1, 0
    %v219 = vsel %vm103, 1, 0
    %vm220 = vcmp.eq.s32.totalorder %v218, 1
    %vm221 = vcmp.eq.s32.totalorder %v219, 1
    %v222 = vsel %vm220, %v216, 0.0
    %v223 = vsel %vm221, %v217, 0.0
    %224 = vst [vmem:[#allocation2 + $0x60] sm:$0xf] %v222
    %225 = vst [vmem:[#allocation2 + $0x68] sm:$0xf] %v223
    %226 = vrot.lane.b32.xlu0 %v112, 112
    %v227 = vpop.permute.xlu0 %226
    %228 = vrot.lane.b32.xlu0 %v114, 112
    %v229 = vpop.permute.xlu0 %228
    %vm230 = vcmp.lt.s32.totalorder %v36, 112
    %v231 = vsel %vm230, %v227, %v229
    %v232 = vsel %vm230, %v229, %v227
    %v233 = vsel %vm106, 1, 0
    %v234 = vsel %vm107, 1, 0
    %vm235 = vcmp.eq.s32.totalorder %v233, 1
    %vm236 = vcmp.eq.s32.totalorder %v234, 1
    %v237 = vsel %vm235, %v231, 0.0
    %v238 = vsel %vm236, %v232, 0.0
    %v241 = vrot.slane %v237, 4
    %v242 = vrot.slane %v238, 4
    %245 = vst [vmem:[#allocation2 + $0x60] sm:$0xf0] %v241
    %246 = vst [vmem:[#allocation2 + $0x68] sm:$0xf0] %v242
    %247 = vrot.lane.b32.xlu0 %v112, 111
    %v248 = vpop.permute.xlu0 %247
    %249 = vrot.lane.b32.xlu0 %v114, 111
    %v250 = vpop.permute.xlu0 %249
    %vm251 = vcmp.lt.s32.totalorder %v36, 111
    %v252 = vsel %vm251, %v248, %v250
    %v253 = vsel %vm251, %v250, %v248
    %v254 = vsel %vm110, 1, 0
    %v255 = vsel %vm111, 1, 0
    %vm256 = vcmp.eq.s32.totalorder %v254, 1
    %vm257 = vcmp.eq.s32.totalorder %v255, 1
    %v258 = vsel %vm256, %v252, 0.0
    %v259 = vsel %vm257, %v253, 0.0
    %260 = vst [vmem:[#allocation2 + $0x80] sm:$0xf] %v258
    %261 = vst [vmem:[#allocation2 + $0x88] sm:$0xf] %v259
    %s262 = scalar_lea.vmem [#allocation3], 8
    %v263 = vld [vmem:[%s262] sm:$0xff]
    %v265 = vcombine.high %v263, %v263
    %267 = vrot.lane.b32.xlu0 %v263, 17
    %v268 = vpop.permute.xlu0 %267
    %269 = vrot.lane.b32.xlu0 %v265, 17
    %v270 = vpop.permute.xlu0 %269
    %v271 = vsel %vm120, %v268, %v270
    %v272 = vsel %vm120, %v270, %v268
    %v273 = vsel %vm125, %v272, 0.0
    %v274 = vsel %vm126, %v271, 0.0
    %275 = vst [vmem:[#allocation2 + $0x10] sm:$0xf] %v273
    %276 = vst [vmem:[#allocation2 + $0x18] sm:$0xf] %v274
    %277 = vrot.lane.b32.xlu0 %v263, 16
    %v278 = vpop.permute.xlu0 %277
    %279 = vrot.lane.b32.xlu0 %v265, 16
    %v280 = vpop.permute.xlu0 %279
    %v281 = vsel %vm135, %v278, %v280
    %v282 = vsel %vm135, %v280, %v278
    %v283 = vsel %vm140, %v282, 0.0
    %v284 = vsel %vm141, %v281, 0.0
    %v287 = vrot.slane %v283, 4
    %v288 = vrot.slane %v284, 4
    %291 = vst [vmem:[#allocation2 + $0x10] sm:$0xf0] %v287
    %292 = vst [vmem:[#allocation2 + $0x18] sm:$0xf0] %v288
    %293 = vrot.lane.b32.xlu0 %v263, 15
    %v294 = vpop.permute.xlu0 %293
    %295 = vrot.lane.b32.xlu0 %v265, 15
    %v296 = vpop.permute.xlu0 %295
    %v297 = vsel %vm156, %v294, %v296
    %v298 = vsel %vm156, %v296, %v294
    %v299 = vsel %vm161, %v298, 0.0
    %v300 = vsel %vm162, %v297, 0.0
    %301 = vst [vmem:[#allocation2 + $0x30] sm:$0xf] %v299
    %302 = vst [vmem:[#allocation2 + $0x38] sm:$0xf] %v300
    %303 = vrot.lane.b32.xlu0 %v263, 1
    %v304 = vpop.permute.xlu0 %303
    %305 = vrot.lane.b32.xlu0 %v265, 1
    %v306 = vpop.permute.xlu0 %305
    %v307 = vsel %vm171, %v304, %v306
    %v308 = vsel %vm171, %v306, %v304
    %v309 = vsel %vm176, %v308, 0.0
    %v310 = vsel %vm177, %v307, 0.0
    %v313 = vrot.slane %v309, 4
    %v314 = vrot.slane %v310, 4
    %317 = vst [vmem:[#allocation2 + $0x30] sm:$0xf0] %v313
    %318 = vst [vmem:[#allocation2 + $0x38] sm:$0xf0] %v314
    %319 = vst [vmem:[#allocation2 + $0x50] sm:$0xf] %v263
    %320 = vst [vmem:[#allocation2 + $0x58] sm:$0xf] %v265
    %321 = vrot.lane.b32.xlu0 %v263, 127
    %v322 = vpop.permute.xlu0 %321
    %323 = vrot.lane.b32.xlu0 %v265, 127
    %v324 = vpop.permute.xlu0 %323
    %v325 = vsel %vm194, %v322, %v324
    %v326 = vsel %vm194, %v324, %v322
    %v327 = vsel %vm199, %v325, 0.0
    %v328 = vsel %vm200, %v326, 0.0
    %v331 = vrot.slane %v327, 4
    %v332 = vrot.slane %v328, 4
    %335 = vst [vmem:[#allocation2 + $0x50] sm:$0xf0] %v331
    %336 = vst [vmem:[#allocation2 + $0x58] sm:$0xf0] %v332
    %337 = vrot.lane.b32.xlu0 %v263, 113
    %v338 = vpop.permute.xlu0 %337
    %339 = vrot.lane.b32.xlu0 %v265, 113
    %v340 = vpop.permute.xlu0 %339
    %v341 = vsel %vm215, %v338, %v340
    %v342 = vsel %vm215, %v340, %v338
    %v343 = vsel %vm220, %v341, 0.0
    %v344 = vsel %vm221, %v342, 0.0
    %345 = vst [vmem:[#allocation2 + $0x70] sm:$0xf] %v343
    %346 = vst [vmem:[#allocation2 + $0x78] sm:$0xf] %v344
    %347 = vrot.lane.b32.xlu0 %v263, 112
    %v348 = vpop.permute.xlu0 %347
    %349 = vrot.lane.b32.xlu0 %v265, 112
    %v350 = vpop.permute.xlu0 %349
    %v351 = vsel %vm230, %v348, %v350
    %v352 = vsel %vm230, %v350, %v348
    %v353 = vsel %vm235, %v351, 0.0
    %v354 = vsel %vm236, %v352, 0.0
    %v357 = vrot.slane %v353, 4
    %v358 = vrot.slane %v354, 4
    %361 = vst [vmem:[#allocation2 + $0x70] sm:$0xf0] %v357
    %362 = vst [vmem:[#allocation2 + $0x78] sm:$0xf0] %v358
    %363 = vrot.lane.b32.xlu0 %v263, 111
    %v364 = vpop.permute.xlu0 %363
    %365 = vrot.lane.b32.xlu0 %v265, 111
    %v366 = vpop.permute.xlu0 %365
    %v367 = vsel %vm251, %v364, %v366
    %v368 = vsel %vm251, %v366, %v364
    %v369 = vsel %vm256, %v367, 0.0
    %v370 = vsel %vm257, %v368, 0.0
    %371 = vst [vmem:[#allocation2 + $0x90] sm:$0xf] %v369
    %372 = vst [vmem:[#allocation2 + $0x98] sm:$0xf] %v370
    %v373 = vld [vmem:[%s1] sm:$0xf]
    %v374 = vld [vmem:[#allocation2] sm:$0xff]
    %v375 = vld [vmem:[#allocation2 + $0x8] sm:$0xff]
    %v376 = vld [vmem:[#allocation2 + $0x10] sm:$0xff]
    %v377 = vld [vmem:[#allocation2 + $0x18] sm:$0xff]
    %v378 = vld [vmem:[#allocation2 + $0x20] sm:$0xff]
    %v379 = vld [vmem:[#allocation2 + $0x28] sm:$0xff]
    %v380 = vld [vmem:[#allocation2 + $0x30] sm:$0xff]
    %v381 = vld [vmem:[#allocation2 + $0x38] sm:$0xff]
    %v382 = vld [vmem:[#allocation2 + $0x40] sm:$0xff]
    %v383 = vld [vmem:[#allocation2 + $0x48] sm:$0xff]
    %v384 = vld [vmem:[#allocation2 + $0x50] sm:$0xff]
    %v385 = vld [vmem:[#allocation2 + $0x58] sm:$0xff]
    %v386 = vld [vmem:[#allocation2 + $0x60] sm:$0xff]
    %v387 = vld [vmem:[#allocation2 + $0x68] sm:$0xff]
    %v388 = vld [vmem:[#allocation2 + $0x70] sm:$0xff]
    %v389 = vld [vmem:[#allocation2 + $0x78] sm:$0xff]
    %v390 = vld [vmem:[#allocation2 + $0x80] sm:$0xf]
    %v391 = vld [vmem:[#allocation2 + $0x88] sm:$0xf]
    %v392 = vld [vmem:[#allocation2 + $0x90] sm:$0xf]
    %v393 = vld [vmem:[#allocation2 + $0x98] sm:$0xf]
    %v394 = vld [vmem:[%s2] sm:$0xf]
    %396 = vset.pattern.permute.xlu0 0
    %397 = vperm.xlu0 %396, %v394
    %v398 = vpop.permute.xlu0 %397
    %vm400 = vcmask 293888
    %v402 = vsel %vm400, %v373, 0
    %vm404 = vcmask 1043456
    %v406 = vsel %vm404, %v390, 0
    %v409 = vsel %vm404, %v391, 0
    %v412 = vsel %vm404, %v392, 0
    %v415 = vsel %vm404, %v393, 0
    %v417 = vand.u32 %v375, 4294901760
    %418 = vmatprep.subr.mxu0 %v417
    %v419 = vand.u32 %v374, 4294901760
    %420 = vmatpush1.msra.mxu0 %v419
    %v421 = vand.u32 %v379, 4294901760
    %422 = vmatprep.subr.mxu0 %v421
    %v423 = vand.u32 %v378, 4294901760
    %424 = vmatpush1.msra.mxu0 %v423
    %v425 = vand.u32 %v383, 4294901760
    %426 = vmatprep.subr.mxu0 %v425
    %v427 = vand.u32 %v382, 4294901760
    %428 = vmatpush1.msra.mxu0 %v427
    %v429 = vand.u32 %v387, 4294901760
    %430 = vmatprep.subr.mxu0 %v429
    %v431 = vand.u32 %v386, 4294901760
    %432 = vmatpush1.msra.mxu0 %v431
    %v433 = vand.u32 %v409, 4294901760
    %434 = vmatprep.subr.mxu0 %v433
    %v435 = vand.u32 %v406, 4294901760
    %436 = vmatpush1.msra.mxu0 %v435
    %437 = vmatprep.subr.mxu0 0.0
    %438 = vmatpush1.msra.mxu0 0.0
    %439 = vmatprep.subr.mxu0 0.0
    %440 = vmatpush1.msra.mxu0 0.0
    %441 = vmatprep.subr.mxu0 0.0
    %442 = vmatpush1.msra.mxu0 0.0
    %443 = vmatprep.subr.mxu0 0.0
    %444 = vmatpush1.msra.mxu0 0.0
    %445 = vmatprep.subr.mxu0 0.0
    %446 = vmatpush1.msra.mxu0 0.0
    %447 = vmatprep.subr.mxu0 0.0
    %448 = vmatpush1.msra.mxu0 0.0
    %449 = vmatprep.subr.mxu0 0.0
    %450 = vmatpush1.msra.mxu0 0.0
    %451 = vmatprep.subr.mxu0 0.0
    %452 = vmatpush1.msra.mxu0 0.0
    %453 = vmatprep.subr.mxu0 0.0
    %454 = vmatpush1.msra.mxu0 0.0
    %455 = vmatprep.subr.mxu0 0.0
    %456 = vmatpush1.msra.mxu0 0.0
    %457 = vmatprep.subr.mxu0 0.0
    %458 = vmatpush1.msra.mxu0 0.0
    %459 = vmatprep.subr.mxu0 0.0
    %460 = vmatpush1.msra.mxu0 0.0
    %461 = vmatprep.subr.mxu0 0.0
    %462 = vmatpush1.msra.mxu0 0.0
    %463 = vmatprep.subr.mxu0 0.0
    %464 = vmatpush1.msra.mxu0 0.0
    %465 = vmatprep.subr.mxu0 0.0
    %466 = vmatpush1.msra.mxu0 0.0
    %467 = vmatprep.subr.mxu0 0.0
    %468 = vmatpush1.msra.mxu0 0.0
    %469 = vmatprep.subr.mxu0 0.0
    %470 = vmatpush1.msra.mxu0 0.0
    %471 = vmatprep.subr.mxu0 0.0
    %472 = vmatpush1.msra.mxu0 0.0
    %473 = vmatprep.subr.mxu0 0.0
    %474 = vmatpush1.msra.mxu0 0.0
    %475 = vmatprep.subr.mxu0 0.0
    %476 = vmatpush1.msra.mxu0 0.0
    %477 = vmatprep.subr.mxu0 0.0
    %478 = vmatpush1.msra.mxu0 0.0
    %479 = vmatprep.subr.mxu0 0.0
    %480 = vmatpush1.msra.mxu0 0.0
    %481 = vmatprep.subr.mxu0 0.0
    %482 = vmatpush1.msra.mxu0 0.0
    %483 = vmatprep.subr.mxu0 0.0
    %484 = vmatpush1.msra.mxu0 0.0
    %485 = vmatprep.subr.mxu0 0.0
    %486 = vmatpush1.msra.mxu0 0.0
    %487 = vmatprep.subr.mxu0 0.0
    %488 = vmatpush1.msra.mxu0 0.0
    %489 = vmatprep.subr.mxu0 0.0
    %490 = vmatpush1.msra.mxu0 0.0
    %491 = vmatprep.mubr.f32.mxu0 0.0
    %v492 = vand.u32 %v402, 4294901760
    %v493 = vsub.f32 %v402, %v492
    %v494 = vand.u32 %v493, 4294901760
    %v495 = vsub.f32 %v493, %v494
    %v496 = vand.u32 %v495, 4294901760
    %497 = vmatmul.mubr.f32.gmra.mrb[0].mxu0 %v496
    %v498 = vpop.f32.mrb[0].mxu0
    %v499 = vadd.f32 %v398, %v498
    %v500 = vpop.f32.mrb[0].mxu0
    %v501 = vadd.f32 %v398, %v500
    %502 = vdwg.mxu0
    %v503 = vand.u32 %v375, 4294901760
    %v504 = vsub.f32 %v375, %v503
    %v505 = vand.u32 %v504, 4294901760
    %v506 = vsub.f32 %v504, %v505
    %v507 = vand.u32 %v506, 4294901760
    %508 = vmatprep.subr.mxu0 %v507
    %v509 = vand.u32 %v374, 4294901760
    %v510 = vsub.f32 %v374, %v509
    %v511 = vand.u32 %v510, 4294901760
    %v512 = vsub.f32 %v510, %v511
    %v513 = vand.u32 %v512, 4294901760
    %514 = vmatpush1.msra.mxu0 %v513
    %v515 = vand.u32 %v379, 4294901760
    %v516 = vsub.f32 %v379, %v515
    %v517 = vand.u32 %v516, 4294901760
    %v518 = vsub.f32 %v516, %v517
    %v519 = vand.u32 %v518, 4294901760
    %520 = vmatprep.subr.mxu0 %v519
    %v521 = vand.u32 %v378, 4294901760
    %v522 = vsub.f32 %v378, %v521
    %v523 = vand.u32 %v522, 4294901760
    %v524 = vsub.f32 %v522, %v523
    %v525 = vand.u32 %v524, 4294901760
    %526 = vmatpush1.msra.mxu0 %v525
    %v527 = vand.u32 %v383, 4294901760
    %v528 = vsub.f32 %v383, %v527
    %v529 = vand.u32 %v528, 4294901760
    %v530 = vsub.f32 %v528, %v529
    %v531 = vand.u32 %v530, 4294901760
    %532 = vmatprep.subr.mxu0 %v531
    %v533 = vand.u32 %v382, 4294901760
    %v534 = vsub.f32 %v382, %v533
    %v535 = vand.u32 %v534, 4294901760
    %v536 = vsub.f32 %v534, %v535
    %v537 = vand.u32 %v536, 4294901760
    %538 = vmatpush1.msra.mxu0 %v537
    %v539 = vand.u32 %v387, 4294901760
    %v540 = vsub.f32 %v387, %v539
    %v541 = vand.u32 %v540, 4294901760
    %v542 = vsub.f32 %v540, %v541
    %v543 = vand.u32 %v542, 4294901760
    %544 = vmatprep.subr.mxu0 %v543
    %v545 = vand.u32 %v386, 4294901760
    %v546 = vsub.f32 %v386, %v545
    %v547 = vand.u32 %v546, 4294901760
    %v548 = vsub.f32 %v546, %v547
    %v549 = vand.u32 %v548, 4294901760
    %550 = vmatpush1.msra.mxu0 %v549
    %v551 = vand.u32 %v409, 4294901760
    %v552 = vsub.f32 %v409, %v551
    %v553 = vand.u32 %v552, 4294901760
    %v554 = vsub.f32 %v552, %v553
    %v555 = vand.u32 %v554, 4294901760
    %556 = vmatprep.subr.mxu0 %v555
    %v557 = vand.u32 %v406, 4294901760
    %v558 = vsub.f32 %v406, %v557
    %v559 = vand.u32 %v558, 4294901760
    %v560 = vsub.f32 %v558, %v559
    %v561 = vand.u32 %v560, 4294901760
    %562 = vmatpush1.msra.mxu0 %v561
    %563 = vmatprep.subr.mxu0 0.0
    %564 = vmatpush1.msra.mxu0 0.0
    %565 = vmatprep.subr.mxu0 0.0
    %566 = vmatpush1.msra.mxu0 0.0
    %567 = vmatprep.subr.mxu0 0.0
    %568 = vmatpush1.msra.mxu0 0.0
    %569 = vmatprep.subr.mxu0 0.0
    %570 = vmatpush1.msra.mxu0 0.0
    %571 = vmatprep.subr.mxu0 0.0
    %572 = vmatpush1.msra.mxu0 0.0
    %573 = vmatprep.subr.mxu0 0.0
    %574 = vmatpush1.msra.mxu0 0.0
    %575 = vmatprep.subr.mxu0 0.0
    %576 = vmatpush1.msra.mxu0 0.0
    %577 = vmatprep.subr.mxu0 0.0
    %578 = vmatpush1.msra.mxu0 0.0
    %579 = vmatprep.subr.mxu0 0.0
    %580 = vmatpush1.msra.mxu0 0.0
    %581 = vmatprep.subr.mxu0 0.0
    %582 = vmatpush1.msra.mxu0 0.0
    %583 = vmatprep.subr.mxu0 0.0
    %584 = vmatpush1.msra.mxu0 0.0
    %585 = vmatprep.subr.mxu0 0.0
    %586 = vmatpush1.msra.mxu0 0.0
    %587 = vmatprep.subr.mxu0 0.0
    %588 = vmatpush1.msra.mxu0 0.0
    %589 = vmatprep.subr.mxu0 0.0
    %590 = vmatpush1.msra.mxu0 0.0
    %591 = vmatprep.subr.mxu0 0.0
    %592 = vmatpush1.msra.mxu0 0.0
    %593 = vmatprep.subr.mxu0 0.0
    %594 = vmatpush1.msra.mxu0 0.0
    %595 = vmatprep.subr.mxu0 0.0
    %596 = vmatpush1.msra.mxu0 0.0
    %597 = vmatprep.subr.mxu0 0.0
    %598 = vmatpush1.msra.mxu0 0.0
    %599 = vmatprep.subr.mxu0 0.0
    %600 = vmatpush1.msra.mxu0 0.0
    %601 = vmatprep.subr.mxu0 0.0
    %602 = vmatpush1.msra.mxu0 0.0
    %603 = vmatprep.subr.mxu0 0.0
    %604 = vmatpush1.msra.mxu0 0.0
    %605 = vmatprep.subr.mxu0 0.0
    %606 = vmatpush1.msra.mxu0 0.0
    %607 = vmatprep.subr.mxu0 0.0
    %608 = vmatpush1.msra.mxu0 0.0
    %609 = vmatprep.subr.mxu0 0.0
    %610 = vmatpush1.msra.mxu0 0.0
    %611 = vmatprep.subr.mxu0 0.0
    %612 = vmatpush1.msra.mxu0 0.0
    %613 = vmatprep.subr.mxu0 0.0
    %614 = vmatpush1.msra.mxu0 0.0
    %615 = vmatprep.subr.mxu0 0.0
    %616 = vmatpush1.msra.mxu0 0.0
    %617 = vmatprep.mubr.f32.mxu0 0.0
    %v618 = vand.u32 %v402, 4294901760
    %619 = vmatmul.mubr.f32.gmra.mrb[0].mxu0 %v618
    %v620 = vpop.f32.mrb[0].mxu0
    %v621 = vadd.f32 %v499, %v620
    %v622 = vpop.f32.mrb[0].mxu0
    %v623 = vadd.f32 %v501, %v622
    %624 = vdwg.mxu0
    %v625 = vand.u32 %v375, 4294901760
    %v626 = vsub.f32 %v375, %v625
    %627 = vmatprep.subr.mxu0 %v626
    %v628 = vand.u32 %v374, 4294901760
    %v629 = vsub.f32 %v374, %v628
    %630 = vmatpush1.msra.mxu0 %v629
    %v631 = vand.u32 %v379, 4294901760
    %v632 = vsub.f32 %v379, %v631
    %633 = vmatprep.subr.mxu0 %v632
    %v634 = vand.u32 %v378, 4294901760
    %v635 = vsub.f32 %v378, %v634
    %636 = vmatpush1.msra.mxu0 %v635
    %v637 = vand.u32 %v383, 4294901760
    %v638 = vsub.f32 %v383, %v637
    %639 = vmatprep.subr.mxu0 %v638
    %v640 = vand.u32 %v382, 4294901760
    %v641 = vsub.f32 %v382, %v640
    %642 = vmatpush1.msra.mxu0 %v641
    %v643 = vand.u32 %v387, 4294901760
    %v644 = vsub.f32 %v387, %v643
    %645 = vmatprep.subr.mxu0 %v644
    %v646 = vand.u32 %v386, 4294901760
    %v647 = vsub.f32 %v386, %v646
    %648 = vmatpush1.msra.mxu0 %v647
    %v649 = vand.u32 %v409, 4294901760
    %v650 = vsub.f32 %v409, %v649
    %651 = vmatprep.subr.mxu0 %v650
    %v652 = vand.u32 %v406, 4294901760
    %v653 = vsub.f32 %v406, %v652
    %654 = vmatpush1.msra.mxu0 %v653
    %655 = vmatprep.subr.mxu0 0.0
    %656 = vmatpush1.msra.mxu0 0.0
    %657 = vmatprep.subr.mxu0 0.0
    %658 = vmatpush1.msra.mxu0 0.0
    %659 = vmatprep.subr.mxu0 0.0
    %660 = vmatpush1.msra.mxu0 0.0
    %661 = vmatprep.subr.mxu0 0.0
    %662 = vmatpush1.msra.mxu0 0.0
    %663 = vmatprep.subr.mxu0 0.0
    %664 = vmatpush1.msra.mxu0 0.0
    %665 = vmatprep.subr.mxu0 0.0
    %666 = vmatpush1.msra.mxu0 0.0
    %667 = vmatprep.subr.mxu0 0.0
    %668 = vmatpush1.msra.mxu0 0.0
    %669 = vmatprep.subr.mxu0 0.0
    %670 = vmatpush1.msra.mxu0 0.0
    %671 = vmatprep.subr.mxu0 0.0
    %672 = vmatpush1.msra.mxu0 0.0
    %673 = vmatprep.subr.mxu0 0.0
    %674 = vmatpush1.msra.mxu0 0.0
    %675 = vmatprep.subr.mxu0 0.0
    %676 = vmatpush1.msra.mxu0 0.0
    %677 = vmatprep.subr.mxu0 0.0
    %678 = vmatpush1.msra.mxu0 0.0
    %679 = vmatprep.subr.mxu0 0.0
    %680 = vmatpush1.msra.mxu0 0.0
    %681 = vmatprep.subr.mxu0 0.0
    %682 = vmatpush1.msra.mxu0 0.0
    %683 = vmatprep.subr.mxu0 0.0
    %684 = vmatpush1.msra.mxu0 0.0
    %685 = vmatprep.subr.mxu0 0.0
    %686 = vmatpush1.msra.mxu0 0.0
    %687 = vmatprep.subr.mxu0 0.0
    %688 = vmatpush1.msra.mxu0 0.0
    %689 = vmatprep.subr.mxu0 0.0
    %690 = vmatpush1.msra.mxu0 0.0
    %691 = vmatprep.subr.mxu0 0.0
    %692 = vmatpush1.msra.mxu0 0.0
    %693 = vmatprep.subr.mxu0 0.0
    %694 = vmatpush1.msra.mxu0 0.0
    %695 = vmatprep.subr.mxu0 0.0
    %696 = vmatpush1.msra.mxu0 0.0
    %697 = vmatprep.subr.mxu0 0.0
    %698 = vmatpush1.msra.mxu0 0.0
    %699 = vmatprep.subr.mxu0 0.0
    %700 = vmatpush1.msra.mxu0 0.0
    %701 = vmatprep.subr.mxu0 0.0
    %702 = vmatpush1.msra.mxu0 0.0
    %703 = vmatprep.subr.mxu0 0.0
    %704 = vmatpush1.msra.mxu0 0.0
    %705 = vmatprep.subr.mxu0 0.0
    %706 = vmatpush1.msra.mxu0 0.0
    %707 = vmatprep.subr.mxu0 0.0
    %708 = vmatpush1.msra.mxu0 0.0
    %709 = vmatprep.mubr.f32.mxu0 0.0
    %v710 = vand.u32 %v402, 4294901760
    %v711 = vsub.f32 %v402, %v710
    %712 = vmatmul.mubr.f32.gmra.mrb[0].mxu0 %v711
    %v713 = vpop.f32.mrb[0].mxu0
    %v714 = vadd.f32 %v621, %v713
    %v715 = vpop.f32.mrb[0].mxu0
    %v716 = vadd.f32 %v623, %v715
    %717 = vdwg.mxu0
    %v718 = vand.u32 %v375, 4294901760
    %719 = vmatprep.subr.mxu0 %v718
    %v720 = vand.u32 %v374, 4294901760
    %721 = vmatpush1.msra.mxu0 %v720
    %v722 = vand.u32 %v379, 4294901760
    %723 = vmatprep.subr.mxu0 %v722
    %v724 = vand.u32 %v378, 4294901760
    %725 = vmatpush1.msra.mxu0 %v724
    %v726 = vand.u32 %v383, 4294901760
    %727 = vmatprep.subr.mxu0 %v726
    %v728 = vand.u32 %v382, 4294901760
    %729 = vmatpush1.msra.mxu0 %v728
    %v730 = vand.u32 %v387, 4294901760
    %731 = vmatprep.subr.mxu0 %v730
    %v732 = vand.u32 %v386, 4294901760
    %733 = vmatpush1.msra.mxu0 %v732
    %v734 = vand.u32 %v409, 4294901760
    %735 = vmatprep.subr.mxu0 %v734
    %v736 = vand.u32 %v406, 4294901760
    %737 = vmatpush1.msra.mxu0 %v736
    %738 = vmatprep.subr.mxu0 0.0
    %739 = vmatpush1.msra.mxu0 0.0
    %740 = vmatprep.subr.mxu0 0.0
    %741 = vmatpush1.msra.mxu0 0.0
    %742 = vmatprep.subr.mxu0 0.0
    %743 = vmatpush1.msra.mxu0 0.0
    %744 = vmatprep.subr.mxu0 0.0
    %745 = vmatpush1.msra.mxu0 0.0
    %746 = vmatprep.subr.mxu0 0.0
    %747 = vmatpush1.msra.mxu0 0.0
    %748 = vmatprep.subr.mxu0 0.0
    %749 = vmatpush1.msra.mxu0 0.0
    %750 = vmatprep.subr.mxu0 0.0
    %751 = vmatpush1.msra.mxu0 0.0
    %752 = vmatprep.subr.mxu0 0.0
    %753 = vmatpush1.msra.mxu0 0.0
    %754 = vmatprep.subr.mxu0 0.0
    %755 = vmatpush1.msra.mxu0 0.0
    %756 = vmatprep.subr.mxu0 0.0
    %757 = vmatpush1.msra.mxu0 0.0
    %758 = vmatprep.subr.mxu0 0.0
    %759 = vmatpush1.msra.mxu0 0.0
    %760 = vmatprep.subr.mxu0 0.0
    %761 = vmatpush1.msra.mxu0 0.0
    %762 = vmatprep.subr.mxu0 0.0
    %763 = vmatpush1.msra.mxu0 0.0
    %764 = vmatprep.subr.mxu0 0.0
    %765 = vmatpush1.msra.mxu0 0.0
    %766 = vmatprep.subr.mxu0 0.0
    %767 = vmatpush1.msra.mxu0 0.0
    %768 = vmatprep.subr.mxu0 0.0
    %769 = vmatpush1.msra.mxu0 0.0
    %770 = vmatprep.subr.mxu0 0.0
    %771 = vmatpush1.msra.mxu0 0.0
    %772 = vmatprep.subr.mxu0 0.0
    %773 = vmatpush1.msra.mxu0 0.0
    %774 = vmatprep.subr.mxu0 0.0
    %775 = vmatpush1.msra.mxu0 0.0
    %776 = vmatprep.subr.mxu0 0.0
    %777 = vmatpush1.msra.mxu0 0.0
    %778 = vmatprep.subr.mxu0 0.0
    %779 = vmatpush1.msra.mxu0 0.0
    %780 = vmatprep.subr.mxu0 0.0
    %781 = vmatpush1.msra.mxu0 0.0
    %782 = vmatprep.subr.mxu0 0.0
    %783 = vmatpush1.msra.mxu0 0.0
    %784 = vmatprep.subr.mxu0 0.0
    %785 = vmatpush1.msra.mxu0 0.0
    %786 = vmatprep.subr.mxu0 0.0
    %787 = vmatpush1.msra.mxu0 0.0
    %788 = vmatprep.subr.mxu0 0.0
    %789 = vmatpush1.msra.mxu0 0.0
    %790 = vmatprep.subr.mxu0 0.0
    %791 = vmatpush1.msra.mxu0 0.0
    %792 = vmatprep.mubr.f32.mxu0 0.0
    %v793 = vand.u32 %v402, 4294901760
    %v794 = vsub.f32 %v402, %v793
    %v795 = vand.u32 %v794, 4294901760
    %796 = vmatmul.mubr.f32.gmra.mrb[0].mxu0 %v795
    %v797 = vpop.f32.mrb[0].mxu0
    %v798 = vadd.f32 %v714, %v797
    %v799 = vpop.f32.mrb[0].mxu0
    %v800 = vadd.f32 %v716, %v799
    %801 = vdwg.mxu0
    %v802 = vand.u32 %v375, 4294901760
    %v803 = vsub.f32 %v375, %v802
    %v804 = vand.u32 %v803, 4294901760
    %805 = vmatprep.subr.mxu0 %v804
    %v806 = vand.u32 %v374, 4294901760
    %v807 = vsub.f32 %v374, %v806
    %v808 = vand.u32 %v807, 4294901760
    %809 = vmatpush1.msra.mxu0 %v808
    %v810 = vand.u32 %v379, 4294901760
    %v811 = vsub.f32 %v379, %v810
    %v812 = vand.u32 %v811, 4294901760
    %813 = vmatprep.subr.mxu0 %v812
    %v814 = vand.u32 %v378, 4294901760
    %v815 = vsub.f32 %v378, %v814
    %v816 = vand.u32 %v815, 4294901760
    %817 = vmatpush1.msra.mxu0 %v816
    %v818 = vand.u32 %v383, 4294901760
    %v819 = vsub.f32 %v383, %v818
    %v820 = vand.u32 %v819, 4294901760
    %821 = vmatprep.subr.mxu0 %v820
    %v822 = vand.u32 %v382, 4294901760
    %v823 = vsub.f32 %v382, %v822
    %v824 = vand.u32 %v823, 4294901760
    %825 = vmatpush1.msra.mxu0 %v824
    %v826 = vand.u32 %v387, 4294901760
    %v827 = vsub.f32 %v387, %v826
    %v828 = vand.u32 %v827, 4294901760
    %829 = vmatprep.subr.mxu0 %v828
    %v830 = vand.u32 %v386, 4294901760
    %v831 = vsub.f32 %v386, %v830
    %v832 = vand.u32 %v831, 4294901760
    %833 = vmatpush1.msra.mxu0 %v832
    %v834 = vand.u32 %v409, 4294901760
    %v835 = vsub.f32 %v409, %v834
    %v836 = vand.u32 %v835, 4294901760
    %837 = vmatprep.subr.mxu0 %v836
    %v838 = vand.u32 %v406, 4294901760
    %v839 = vsub.f32 %v406, %v838
    %v840 = vand.u32 %v839, 4294901760
    %841 = vmatpush1.msra.mxu0 %v840
    %842 = vmatprep.subr.mxu0 0.0
    %843 = vmatpush1.msra.mxu0 0.0
    %844 = vmatprep.subr.mxu0 0.0
    %845 = vmatpush1.msra.mxu0 0.0
    %846 = vmatprep.subr.mxu0 0.0
    %847 = vmatpush1.msra.mxu0 0.0
    %848 = vmatprep.subr.mxu0 0.0
    %849 = vmatpush1.msra.mxu0 0.0
    %850 = vmatprep.subr.mxu0 0.0
    %851 = vmatpush1.msra.mxu0 0.0
    %852 = vmatprep.subr.mxu0 0.0
    %853 = vmatpush1.msra.mxu0 0.0
    %854 = vmatprep.subr.mxu0 0.0
    %855 = vmatpush1.msra.mxu0 0.0
    %856 = vmatprep.subr.mxu0 0.0
    %857 = vmatpush1.msra.mxu0 0.0
    %858 = vmatprep.subr.mxu0 0.0
    %859 = vmatpush1.msra.mxu0 0.0
    %860 = vmatprep.subr.mxu0 0.0
    %861 = vmatpush1.msra.mxu0 0.0
    %862 = vmatprep.subr.mxu0 0.0
    %863 = vmatpush1.msra.mxu0 0.0
    %864 = vmatprep.subr.mxu0 0.0
    %865 = vmatpush1.msra.mxu0 0.0
    %866 = vmatprep.subr.mxu0 0.0
    %867 = vmatpush1.msra.mxu0 0.0
    %868 = vmatprep.subr.mxu0 0.0
    %869 = vmatpush1.msra.mxu0 0.0
    %870 = vmatprep.subr.mxu0 0.0
    %871 = vmatpush1.msra.mxu0 0.0
    %872 = vmatprep.subr.mxu0 0.0
    %873 = vmatpush1.msra.mxu0 0.0
    %874 = vmatprep.subr.mxu0 0.0
    %875 = vmatpush1.msra.mxu0 0.0
    %876 = vmatprep.subr.mxu0 0.0
    %877 = vmatpush1.msra.mxu0 0.0
    %878 = vmatprep.subr.mxu0 0.0
    %879 = vmatpush1.msra.mxu0 0.0
    %880 = vmatprep.subr.mxu0 0.0
    %881 = vmatpush1.msra.mxu0 0.0
    %882 = vmatprep.subr.mxu0 0.0
    %883 = vmatpush1.msra.mxu0 0.0
    %884 = vmatprep.subr.mxu0 0.0
    %885 = vmatpush1.msra.mxu0 0.0
    %886 = vmatprep.subr.mxu0 0.0
    %887 = vmatpush1.msra.mxu0 0.0
    %888 = vmatprep.subr.mxu0 0.0
    %889 = vmatpush1.msra.mxu0 0.0
    %890 = vmatprep.subr.mxu0 0.0
    %891 = vmatpush1.msra.mxu0 0.0
    %892 = vmatprep.subr.mxu0 0.0
    %893 = vmatpush1.msra.mxu0 0.0
    %894 = vmatprep.subr.mxu0 0.0
    %895 = vmatpush1.msra.mxu0 0.0
    %896 = vmatprep.mubr.f32.mxu0 0.0
    %v897 = vand.u32 %v402, 4294901760
    %898 = vmatmul.mubr.f32.gmra.mrb[0].mxu0 %v897
    %v899 = vpop.f32.mrb[0].mxu0
    %v900 = vadd.f32 %v798, %v899
    %v901 = vpop.f32.mrb[0].mxu0
    %v902 = vadd.f32 %v800, %v901
    %903 = vdwg.mxu0
    %v904 = vand.u32 %v375, 4294901760
    %905 = vmatprep.subr.mxu0 %v904
    %v906 = vand.u32 %v374, 4294901760
    %907 = vmatpush1.msra.mxu0 %v906
    %v908 = vand.u32 %v379, 4294901760
    %909 = vmatprep.subr.mxu0 %v908
    %v910 = vand.u32 %v378, 4294901760
    %911 = vmatpush1.msra.mxu0 %v910
    %v912 = vand.u32 %v383, 4294901760
    %913 = vmatprep.subr.mxu0 %v912
    %v914 = vand.u32 %v382, 4294901760
    %915 = vmatpush1.msra.mxu0 %v914
    %v916 = vand.u32 %v387, 4294901760
    %917 = vmatprep.subr.mxu0 %v916
    %v918 = vand.u32 %v386, 4294901760
    %919 = vmatpush1.msra.mxu0 %v918
    %v920 = vand.u32 %v409, 4294901760
    %921 = vmatprep.subr.mxu0 %v920
    %v922 = vand.u32 %v406, 4294901760
    %923 = vmatpush1.msra.mxu0 %v922
    %924 = vmatprep.subr.mxu0 0.0
    %925 = vmatpush1.msra.mxu0 0.0
    %926 = vmatprep.subr.mxu0 0.0
    %927 = vmatpush1.msra.mxu0 0.0
    %928 = vmatprep.subr.mxu0 0.0
    %929 = vmatpush1.msra.mxu0 0.0
    %930 = vmatprep.subr.mxu0 0.0
    %931 = vmatpush1.msra.mxu0 0.0
    %932 = vmatprep.subr.mxu0 0.0
    %933 = vmatpush1.msra.mxu0 0.0
    %934 = vmatprep.subr.mxu0 0.0
    %935 = vmatpush1.msra.mxu0 0.0
    %936 = vmatprep.subr.mxu0 0.0
    %937 = vmatpush1.msra.mxu0 0.0
    %938 = vmatprep.subr.mxu0 0.0
    %939 = vmatpush1.msra.mxu0 0.0
    %940 = vmatprep.subr.mxu0 0.0
    %941 = vmatpush1.msra.mxu0 0.0
    %942 = vmatprep.subr.mxu0 0.0
    %943 = vmatpush1.msra.mxu0 0.0
    %944 = vmatprep.subr.mxu0 0.0
    %945 = vmatpush1.msra.mxu0 0.0
    %946 = vmatprep.subr.mxu0 0.0
    %947 = vmatpush1.msra.mxu0 0.0
    %948 = vmatprep.subr.mxu0 0.0
    %949 = vmatpush1.msra.mxu0 0.0
    %950 = vmatprep.subr.mxu0 0.0
    %951 = vmatpush1.msra.mxu0 0.0
    %952 = vmatprep.subr.mxu0 0.0
    %953 = vmatpush1.msra.mxu0 0.0
    %954 = vmatprep.subr.mxu0 0.0
    %955 = vmatpush1.msra.mxu0 0.0
    %956 = vmatprep.subr.mxu0 0.0
    %957 = vmatpush1.msra.mxu0 0.0
    %958 = vmatprep.subr.mxu0 0.0
    %959 = vmatpush1.msra.mxu0 0.0
    %960 = vmatprep.subr.mxu0 0.0
    %961 = vmatpush1.msra.mxu0 0.0
    %962 = vmatprep.subr.mxu0 0.0
    %963 = vmatpush1.msra.mxu0 0.0
    %964 = vmatprep.subr.mxu0 0.0
    %965 = vmatpush1.msra.mxu0 0.0
    %966 = vmatprep.subr.mxu0 0.0
    %967 = vmatpush1.msra.mxu0 0.0
    %968 = vmatprep.subr.mxu0 0.0
    %969 = vmatpush1.msra.mxu0 0.0
    %970 = vmatprep.subr.mxu0 0.0
    %971 = vmatpush1.msra.mxu0 0.0
    %972 = vmatprep.subr.mxu0 0.0
    %973 = vmatpush1.msra.mxu0 0.0
    %974 = vmatprep.subr.mxu0 0.0
    %975 = vmatpush1.msra.mxu0 0.0
    %976 = vmatprep.subr.mxu0 0.0
    %977 = vmatpush1.msra.mxu0 0.0
    %978 = vmatprep.mubr.f32.mxu0 0.0
    %v979 = vand.u32 %v402, 4294901760
    %980 = vmatmul.mubr.f32.gmra.mrb[0].mxu0 %v979
    %v981 = vpop.f32.mrb[0].mxu0
    %v982 = vadd.f32 %v900, %v981
    %v983 = vpop.f32.mrb[0].mxu0
    %v984 = vadd.f32 %v902, %v983
    %985 = vdwg.mxu0
    %v986 = vand.u32 %v377, 4294901760
    %987 = vmatprep.subr.mxu0 %v986
    %v988 = vand.u32 %v376, 4294901760
    %989 = vmatpush1.msra.mxu0 %v988
    %v990 = vand.u32 %v381, 4294901760
    %991 = vmatprep.subr.mxu0 %v990
    %v992 = vand.u32 %v380, 4294901760
    %993 = vmatpush1.msra.mxu0 %v992
    %v994 = vand.u32 %v385, 4294901760
    %995 = vmatprep.subr.mxu0 %v994
    %v996 = vand.u32 %v384, 4294901760
    %997 = vmatpush1.msra.mxu0 %v996
    %v998 = vand.u32 %v389, 4294901760
    %999 = vmatprep.subr.mxu0 %v998
    %v1000 = vand.u32 %v388, 4294901760
    %1001 = vmatpush1.msra.mxu0 %v1000
    %v1002 = vand.u32 %v415, 4294901760
    %1003 = vmatprep.subr.mxu0 %v1002
    %v1004 = vand.u32 %v412, 4294901760
    %1005 = vmatpush1.msra.mxu0 %v1004
    %1006 = vmatprep.subr.mxu0 0.0
    %1007 = vmatpush1.msra.mxu0 0.0
    %1008 = vmatprep.subr.mxu0 0.0
    %1009 = vmatpush1.msra.mxu0 0.0
    %1010 = vmatprep.subr.mxu0 0.0
    %1011 = vmatpush1.msra.mxu0 0.0
    %1012 = vmatprep.subr.mxu0 0.0
    %1013 = vmatpush1.msra.mxu0 0.0
    %1014 = vmatprep.subr.mxu0 0.0
    %1015 = vmatpush1.msra.mxu0 0.0
    %1016 = vmatprep.subr.mxu0 0.0
    %1017 = vmatpush1.msra.mxu0 0.0
    %1018 = vmatprep.subr.mxu0 0.0
    %1019 = vmatpush1.msra.mxu0 0.0
    %1020 = vmatprep.subr.mxu0 0.0
    %1021 = vmatpush1.msra.mxu0 0.0
    %1022 = vmatprep.subr.mxu0 0.0
    %1023 = vmatpush1.msra.mxu0 0.0
    %1024 = vmatprep.subr.mxu0 0.0
    %1025 = vmatpush1.msra.mxu0 0.0
    %1026 = vmatprep.subr.mxu0 0.0
    %1027 = vmatpush1.msra.mxu0 0.0
    %1028 = vmatprep.subr.mxu0 0.0
    %1029 = vmatpush1.msra.mxu0 0.0
    %1030 = vmatprep.subr.mxu0 0.0
    %1031 = vmatpush1.msra.mxu0 0.0
    %1032 = vmatprep.subr.mxu0 0.0
    %1033 = vmatpush1.msra.mxu0 0.0
    %1034 = vmatprep.subr.mxu0 0.0
    %1035 = vmatpush1.msra.mxu0 0.0
    %1036 = vmatprep.subr.mxu0 0.0
    %1037 = vmatpush1.msra.mxu0 0.0
    %1038 = vmatprep.subr.mxu0 0.0
    %1039 = vmatpush1.msra.mxu0 0.0
    %1040 = vmatprep.subr.mxu0 0.0
    %1041 = vmatpush1.msra.mxu0 0.0
    %1042 = vmatprep.subr.mxu0 0.0
    %1043 = vmatpush1.msra.mxu0 0.0
    %1044 = vmatprep.subr.mxu0 0.0
    %1045 = vmatpush1.msra.mxu0 0.0
    %1046 = vmatprep.subr.mxu0 0.0
    %1047 = vmatpush1.msra.mxu0 0.0
    %1048 = vmatprep.subr.mxu0 0.0
    %1049 = vmatpush1.msra.mxu0 0.0
    %1050 = vmatprep.subr.mxu0 0.0
    %1051 = vmatpush1.msra.mxu0 0.0
    %1052 = vmatprep.subr.mxu0 0.0
    %1053 = vmatpush1.msra.mxu0 0.0
    %1054 = vmatprep.subr.mxu0 0.0
    %1055 = vmatpush1.msra.mxu0 0.0
    %1056 = vmatprep.subr.mxu0 0.0
    %1057 = vmatpush1.msra.mxu0 0.0
    %1058 = vmatprep.subr.mxu0 0.0
    %1059 = vmatpush1.msra.mxu0 0.0
    %1060 = vmatprep.mubr.f32.mxu0 0.0
    %v1061 = vand.u32 %v402, 4294901760
    %v1062 = vsub.f32 %v402, %v1061
    %v1063 = vand.u32 %v1062, 4294901760
    %v1064 = vsub.f32 %v1062, %v1063
    %v1065 = vand.u32 %v1064, 4294901760
    %1066 = vmatmul.mubr.f32.gmra.mrb[0].mxu0 %v1065
    %v1067 = vpop.f32.mrb[0].mxu0
    %v1068 = vadd.f32 %v398, %v1067
    %v1069 = vpop.f32.mrb[0].mxu0
    %v1070 = vadd.f32 %v398, %v1069
    %1071 = vdwg.mxu0
    %v1072 = vand.u32 %v377, 4294901760
    %v1073 = vsub.f32 %v377, %v1072
    %v1074 = vand.u32 %v1073, 4294901760
    %v1075 = vsub.f32 %v1073, %v1074
    %v1076 = vand.u32 %v1075, 4294901760
    %1077 = vmatprep.subr.mxu0 %v1076
    %v1078 = vand.u32 %v376, 4294901760
    %v1079 = vsub.f32 %v376, %v1078
    %v1080 = vand.u32 %v1079, 4294901760
    %v1081 = vsub.f32 %v1079, %v1080
    %v1082 = vand.u32 %v1081, 4294901760
    %1083 = vmatpush1.msra.mxu0 %v1082
    %v1084 = vand.u32 %v381, 4294901760
    %v1085 = vsub.f32 %v381, %v1084
    %v1086 = vand.u32 %v1085, 4294901760
    %v1087 = vsub.f32 %v1085, %v1086
    %v1088 = vand.u32 %v1087, 4294901760
    %1089 = vmatprep.subr.mxu0 %v1088
    %v1090 = vand.u32 %v380, 4294901760
    %v1091 = vsub.f32 %v380, %v1090
    %v1092 = vand.u32 %v1091, 4294901760
    %v1093 = vsub.f32 %v1091, %v1092
    %v1094 = vand.u32 %v1093, 4294901760
    %1095 = vmatpush1.msra.mxu0 %v1094
    %v1096 = vand.u32 %v385, 4294901760
    %v1097 = vsub.f32 %v385, %v1096
    %v1098 = vand.u32 %v1097, 4294901760
    %v1099 = vsub.f32 %v1097, %v1098
    %v1100 = vand.u32 %v1099, 4294901760
    %1101 = vmatprep.subr.mxu0 %v1100
    %v1102 = vand.u32 %v384, 4294901760
    %v1103 = vsub.f32 %v384, %v1102
    %v1104 = vand.u32 %v1103, 4294901760
    %v1105 = vsub.f32 %v1103, %v1104
    %v1106 = vand.u32 %v1105, 4294901760
    %1107 = vmatpush1.msra.mxu0 %v1106
    %v1108 = vand.u32 %v389, 4294901760
    %v1109 = vsub.f32 %v389, %v1108
    %v1110 = vand.u32 %v1109, 4294901760
    %v1111 = vsub.f32 %v1109, %v1110
    %v1112 = vand.u32 %v1111, 4294901760
    %1113 = vmatprep.subr.mxu0 %v1112
    %v1114 = vand.u32 %v388, 4294901760
    %v1115 = vsub.f32 %v388, %v1114
    %v1116 = vand.u32 %v1115, 4294901760
    %v1117 = vsub.f32 %v1115, %v1116
    %v1118 = vand.u32 %v1117, 4294901760
    %1119 = vmatpush1.msra.mxu0 %v1118
    %v1120 = vand.u32 %v415, 4294901760
    %v1121 = vsub.f32 %v415, %v1120
    %v1122 = vand.u32 %v1121, 4294901760
    %v1123 = vsub.f32 %v1121, %v1122
    %v1124 = vand.u32 %v1123, 4294901760
    %1125 = vmatprep.subr.mxu0 %v1124
    %v1126 = vand.u32 %v412, 4294901760
    %v1127 = vsub.f32 %v412, %v1126
    %v1128 = vand.u32 %v1127, 4294901760
    %v1129 = vsub.f32 %v1127, %v1128
    %v1130 = vand.u32 %v1129, 4294901760
    %1131 = vmatpush1.msra.mxu0 %v1130
    %1132 = vmatprep.subr.mxu0 0.0
    %1133 = vmatpush1.msra.mxu0 0.0
    %1134 = vmatprep.subr.mxu0 0.0
    %1135 = vmatpush1.msra.mxu0 0.0
    %1136 = vmatprep.subr.mxu0 0.0
    %1137 = vmatpush1.msra.mxu0 0.0
    %1138 = vmatprep.subr.mxu0 0.0
    %1139 = vmatpush1.msra.mxu0 0.0
    %1140 = vmatprep.subr.mxu0 0.0
    %1141 = vmatpush1.msra.mxu0 0.0
    %1142 = vmatprep.subr.mxu0 0.0
    %1143 = vmatpush1.msra.mxu0 0.0
    %1144 = vmatprep.subr.mxu0 0.0
    %1145 = vmatpush1.msra.mxu0 0.0
    %1146 = vmatprep.subr.mxu0 0.0
    %1147 = vmatpush1.msra.mxu0 0.0
    %1148 = vmatprep.subr.mxu0 0.0
    %1149 = vmatpush1.msra.mxu0 0.0
    %1150 = vmatprep.subr.mxu0 0.0
    %1151 = vmatpush1.msra.mxu0 0.0
    %1152 = vmatprep.subr.mxu0 0.0
    %1153 = vmatpush1.msra.mxu0 0.0
    %1154 = vmatprep.subr.mxu0 0.0
    %1155 = vmatpush1.msra.mxu0 0.0
    %1156 = vmatprep.subr.mxu0 0.0
    %1157 = vmatpush1.msra.mxu0 0.0
    %1158 = vmatprep.subr.mxu0 0.0
    %1159 = vmatpush1.msra.mxu0 0.0
    %1160 = vmatprep.subr.mxu0 0.0
    %1161 = vmatpush1.msra.mxu0 0.0
    %1162 = vmatprep.subr.mxu0 0.0
    %1163 = vmatpush1.msra.mxu0 0.0
    %1164 = vmatprep.subr.mxu0 0.0
    %1165 = vmatpush1.msra.mxu0 0.0
    %1166 = vmatprep.subr.mxu0 0.0
    %1167 = vmatpush1.msra.mxu0 0.0
    %1168 = vmatprep.subr.mxu0 0.0
    %1169 = vmatpush1.msra.mxu0 0.0
    %1170 = vmatprep.subr.mxu0 0.0
    %1171 = vmatpush1.msra.mxu0 0.0
    %1172 = vmatprep.subr.mxu0 0.0
    %1173 = vmatpush1.msra.mxu0 0.0
    %1174 = vmatprep.subr.mxu0 0.0
    %1175 = vmatpush1.msra.mxu0 0.0
    %1176 = vmatprep.subr.mxu0 0.0
    %1177 = vmatpush1.msra.mxu0 0.0
    %1178 = vmatprep.subr.mxu0 0.0
    %1179 = vmatpush1.msra.mxu0 0.0
    %1180 = vmatprep.subr.mxu0 0.0
    %1181 = vmatpush1.msra.mxu0 0.0
    %1182 = vmatprep.subr.mxu0 0.0
    %1183 = vmatpush1.msra.mxu0 0.0
    %1184 = vmatprep.subr.mxu0 0.0
    %1185 = vmatpush1.msra.mxu0 0.0
    %1186 = vmatprep.mubr.f32.mxu0 0.0
    %v1187 = vand.u32 %v402, 4294901760
    %1188 = vmatmul.mubr.f32.gmra.mrb[0].mxu0 %v1187
    %v1189 = vpop.f32.mrb[0].mxu0
    %v1190 = vadd.f32 %v1068, %v1189
    %v1191 = vpop.f32.mrb[0].mxu0
    %v1192 = vadd.f32 %v1070, %v1191
    %1193 = vdwg.mxu0
    %v1194 = vand.u32 %v377, 4294901760
    %v1195 = vsub.f32 %v377, %v1194
    %1196 = vmatprep.subr.mxu0 %v1195
    %v1197 = vand.u32 %v376, 4294901760
    %v1198 = vsub.f32 %v376, %v1197
    %1199 = vmatpush1.msra.mxu0 %v1198
    %v1200 = vand.u32 %v381, 4294901760
    %v1201 = vsub.f32 %v381, %v1200
    %1202 = vmatprep.subr.mxu0 %v1201
    %v1203 = vand.u32 %v380, 4294901760
    %v1204 = vsub.f32 %v380, %v1203
    %1205 = vmatpush1.msra.mxu0 %v1204
    %v1206 = vand.u32 %v385, 4294901760
    %v1207 = vsub.f32 %v385, %v1206
    %1208 = vmatprep.subr.mxu0 %v1207
    %v1209 = vand.u32 %v384, 4294901760
    %v1210 = vsub.f32 %v384, %v1209
    %1211 = vmatpush1.msra.mxu0 %v1210
    %v1212 = vand.u32 %v389, 4294901760
    %v1213 = vsub.f32 %v389, %v1212
    %1214 = vmatprep.subr.mxu0 %v1213
    %v1215 = vand.u32 %v388, 4294901760
    %v1216 = vsub.f32 %v388, %v1215
    %1217 = vmatpush1.msra.mxu0 %v1216
    %v1218 = vand.u32 %v415, 4294901760
    %v1219 = vsub.f32 %v415, %v1218
    %1220 = vmatprep.subr.mxu0 %v1219
    %v1221 = vand.u32 %v412, 4294901760
    %v1222 = vsub.f32 %v412, %v1221
    %1223 = vmatpush1.msra.mxu0 %v1222
    %1224 = vmatprep.subr.mxu0 0.0
    %1225 = vmatpush1.msra.mxu0 0.0
    %1226 = vmatprep.subr.mxu0 0.0
    %1227 = vmatpush1.msra.mxu0 0.0
    %1228 = vmatprep.subr.mxu0 0.0
    %1229 = vmatpush1.msra.mxu0 0.0
    %1230 = vmatprep.subr.mxu0 0.0
    %1231 = vmatpush1.msra.mxu0 0.0
    %1232 = vmatprep.subr.mxu0 0.0
    %1233 = vmatpush1.msra.mxu0 0.0
    %1234 = vmatprep.subr.mxu0 0.0
    %1235 = vmatpush1.msra.mxu0 0.0
    %1236 = vmatprep.subr.mxu0 0.0
    %1237 = vmatpush1.msra.mxu0 0.0
    %1238 = vmatprep.subr.mxu0 0.0
    %1239 = vmatpush1.msra.mxu0 0.0
    %1240 = vmatprep.subr.mxu0 0.0
    %1241 = vmatpush1.msra.mxu0 0.0
    %1242 = vmatprep.subr.mxu0 0.0
    %1243 = vmatpush1.msra.mxu0 0.0
    %1244 = vmatprep.subr.mxu0 0.0
    %1245 = vmatpush1.msra.mxu0 0.0
    %1246 = vmatprep.subr.mxu0 0.0
    %1247 = vmatpush1.msra.mxu0 0.0
    %1248 = vmatprep.subr.mxu0 0.0
    %1249 = vmatpush1.msra.mxu0 0.0
    %1250 = vmatprep.subr.mxu0 0.0
    %1251 = vmatpush1.msra.mxu0 0.0
    %1252 = vmatprep.subr.mxu0 0.0
    %1253 = vmatpush1.msra.mxu0 0.0
    %1254 = vmatprep.subr.mxu0 0.0
    %1255 = vmatpush1.msra.mxu0 0.0
    %1256 = vmatprep.subr.mxu0 0.0
    %1257 = vmatpush1.msra.mxu0 0.0
    %1258 = vmatprep.subr.mxu0 0.0
    %1259 = vmatpush1.msra.mxu0 0.0
    %1260 = vmatprep.subr.mxu0 0.0
    %1261 = vmatpush1.msra.mxu0 0.0
    %1262 = vmatprep.subr.mxu0 0.0
    %1263 = vmatpush1.msra.mxu0 0.0
    %1264 = vmatprep.subr.mxu0 0.0
    %1265 = vmatpush1.msra.mxu0 0.0
    %1266 = vmatprep.subr.mxu0 0.0
    %1267 = vmatpush1.msra.mxu0 0.0
    %1268 = vmatprep.subr.mxu0 0.0
    %1269 = vmatpush1.msra.mxu0 0.0
    %1270 = vmatprep.subr.mxu0 0.0
    %1271 = vmatpush1.msra.mxu0 0.0
    %1272 = vmatprep.subr.mxu0 0.0
    %1273 = vmatpush1.msra.mxu0 0.0
    %1274 = vmatprep.subr.mxu0 0.0
    %1275 = vmatpush1.msra.mxu0 0.0
    %1276 = vmatprep.subr.mxu0 0.0
    %1277 = vmatpush1.msra.mxu0 0.0
    %1278 = vmatprep.mubr.f32.mxu0 0.0
    %v1279 = vand.u32 %v402, 4294901760
    %v1280 = vsub.f32 %v402, %v1279
    %1281 = vmatmul.mubr.f32.gmra.mrb[0].mxu0 %v1280
    %v1282 = vpop.f32.mrb[0].mxu0
    %v1283 = vadd.f32 %v1190, %v1282
    %v1284 = vpop.f32.mrb[0].mxu0
    %v1285 = vadd.f32 %v1192, %v1284
    %1286 = vdwg.mxu0
    %v1287 = vand.u32 %v377, 4294901760
    %1288 = vmatprep.subr.mxu0 %v1287
    %v1289 = vand.u32 %v376, 4294901760
    %1290 = vmatpush1.msra.mxu0 %v1289
    %v1291 = vand.u32 %v381, 4294901760
    %1292 = vmatprep.subr.mxu0 %v1291
    %v1293 = vand.u32 %v380, 4294901760
    %1294 = vmatpush1.msra.mxu0 %v1293
    %v1295 = vand.u32 %v385, 4294901760
    %1296 = vmatprep.subr.mxu0 %v1295
    %v1297 = vand.u32 %v384, 4294901760
    %1298 = vmatpush1.msra.mxu0 %v1297
    %v1299 = vand.u32 %v389, 4294901760
    %1300 = vmatprep.subr.mxu0 %v1299
    %v1301 = vand.u32 %v388, 4294901760
    %1302 = vmatpush1.msra.mxu0 %v1301
    %v1303 = vand.u32 %v415, 4294901760
    %1304 = vmatprep.subr.mxu0 %v1303
    %v1305 = vand.u32 %v412, 4294901760
    %1306 = vmatpush1.msra.mxu0 %v1305
    %1307 = vmatprep.subr.mxu0 0.0
    %1308 = vmatpush1.msra.mxu0 0.0
    %1309 = vmatprep.subr.mxu0 0.0
    %1310 = vmatpush1.msra.mxu0 0.0
    %1311 = vmatprep.subr.mxu0 0.0
    %1312 = vmatpush1.msra.mxu0 0.0
    %1313 = vmatprep.subr.mxu0 0.0
    %1314 = vmatpush1.msra.mxu0 0.0
    %1315 = vmatprep.subr.mxu0 0.0
    %1316 = vmatpush1.msra.mxu0 0.0
    %1317 = vmatprep.subr.mxu0 0.0
    %1318 = vmatpush1.msra.mxu0 0.0
    %1319 = vmatprep.subr.mxu0 0.0
    %1320 = vmatpush1.msra.mxu0 0.0
    %1321 = vmatprep.subr.mxu0 0.0
    %1322 = vmatpush1.msra.mxu0 0.0
    %1323 = vmatprep.subr.mxu0 0.0
    %1324 = vmatpush1.msra.mxu0 0.0
    %1325 = vmatprep.subr.mxu0 0.0
    %1326 = vmatpush1.msra.mxu0 0.0
    %1327 = vmatprep.subr.mxu0 0.0
    %1328 = vmatpush1.msra.mxu0 0.0
    %1329 = vmatprep.subr.mxu0 0.0
    %1330 = vmatpush1.msra.mxu0 0.0
    %1331 = vmatprep.subr.mxu0 0.0
    %1332 = vmatpush1.msra.mxu0 0.0
    %1333 = vmatprep.subr.mxu0 0.0
    %1334 = vmatpush1.msra.mxu0 0.0
    %1335 = vmatprep.subr.mxu0 0.0
    %1336 = vmatpush1.msra.mxu0 0.0
    %1337 = vmatprep.subr.mxu0 0.0
    %1338 = vmatpush1.msra.mxu0 0.0
    %1339 = vmatprep.subr.mxu0 0.0
    %1340 = vmatpush1.msra.mxu0 0.0
    %1341 = vmatprep.subr.mxu0 0.0
    %1342 = vmatpush1.msra.mxu0 0.0
    %1343 = vmatprep.subr.mxu0 0.0
    %1344 = vmatpush1.msra.mxu0 0.0
    %1345 = vmatprep.subr.mxu0 0.0
    %1346 = vmatpush1.msra.mxu0 0.0
    %1347 = vmatprep.subr.mxu0 0.0
    %1348 = vmatpush1.msra.mxu0 0.0
    %1349 = vmatprep.subr.mxu0 0.0
    %1350 = vmatpush1.msra.mxu0 0.0
    %1351 = vmatprep.subr.mxu0 0.0
    %1352 = vmatpush1.msra.mxu0 0.0
    %1353 = vmatprep.subr.mxu0 0.0
    %1354 = vmatpush1.msra.mxu0 0.0
    %1355 = vmatprep.subr.mxu0 0.0
    %1356 = vmatpush1.msra.mxu0 0.0
    %1357 = vmatprep.subr.mxu0 0.0
    %1358 = vmatpush1.msra.mxu0 0.0
    %1359 = vmatprep.subr.mxu0 0.0
    %1360 = vmatpush1.msra.mxu0 0.0
    %1361 = vmatprep.mubr.f32.mxu0 0.0
    %v1362 = vand.u32 %v402, 4294901760
    %v1363 = vsub.f32 %v402, %v1362
    %v1364 = vand.u32 %v1363, 4294901760
    %1365 = vmatmul.mubr.f32.gmra.mrb[0].mxu0 %v1364
    %v1366 = vpop.f32.mrb[0].mxu0
    %v1367 = vadd.f32 %v1283, %v1366
    %v1368 = vpop.f32.mrb[0].mxu0
    %v1369 = vadd.f32 %v1285, %v1368
    %1370 = vdwg.mxu0
    %v1371 = vand.u32 %v377, 4294901760
    %v1372 = vsub.f32 %v377, %v1371
    %v1373 = vand.u32 %v1372, 4294901760
    %1374 = vmatprep.subr.mxu0 %v1373
    %v1375 = vand.u32 %v376, 4294901760
    %v1376 = vsub.f32 %v376, %v1375
    %v1377 = vand.u32 %v1376, 4294901760
    %1378 = vmatpush1.msra.mxu0 %v1377
    %v1379 = vand.u32 %v381, 4294901760
    %v1380 = vsub.f32 %v381, %v1379
    %v1381 = vand.u32 %v1380, 4294901760
    %1382 = vmatprep.subr.mxu0 %v1381
    %v1383 = vand.u32 %v380, 4294901760
    %v1384 = vsub.f32 %v380, %v1383
    %v1385 = vand.u32 %v1384, 4294901760
    %1386 = vmatpush1.msra.mxu0 %v1385
    %v1387 = vand.u32 %v385, 4294901760
    %v1388 = vsub.f32 %v385, %v1387
    %v1389 = vand.u32 %v1388, 4294901760
    %1390 = vmatprep.subr.mxu0 %v1389
    %v1391 = vand.u32 %v384, 4294901760
    %v1392 = vsub.f32 %v384, %v1391
    %v1393 = vand.u32 %v1392, 4294901760
    %1394 = vmatpush1.msra.mxu0 %v1393
    %v1395 = vand.u32 %v389, 4294901760
    %v1396 = vsub.f32 %v389, %v1395
    %v1397 = vand.u32 %v1396, 4294901760
    %1398 = vmatprep.subr.mxu0 %v1397
    %v1399 = vand.u32 %v388, 4294901760
    %v1400 = vsub.f32 %v388, %v1399
    %v1401 = vand.u32 %v1400, 4294901760
    %1402 = vmatpush1.msra.mxu0 %v1401
    %v1403 = vand.u32 %v415, 4294901760
    %v1404 = vsub.f32 %v415, %v1403
    %v1405 = vand.u32 %v1404, 4294901760
    %1406 = vmatprep.subr.mxu0 %v1405
    %v1407 = vand.u32 %v412, 4294901760
    %v1408 = vsub.f32 %v412, %v1407
    %v1409 = vand.u32 %v1408, 4294901760
    %1410 = vmatpush1.msra.mxu0 %v1409
    %1411 = vmatprep.subr.mxu0 0.0
    %1412 = vmatpush1.msra.mxu0 0.0
    %1413 = vmatprep.subr.mxu0 0.0
    %1414 = vmatpush1.msra.mxu0 0.0
    %1415 = vmatprep.subr.mxu0 0.0
    %1416 = vmatpush1.msra.mxu0 0.0
    %1417 = vmatprep.subr.mxu0 0.0
    %1418 = vmatpush1.msra.mxu0 0.0
    %1419 = vmatprep.subr.mxu0 0.0
    %1420 = vmatpush1.msra.mxu0 0.0
    %1421 = vmatprep.subr.mxu0 0.0
    %1422 = vmatpush1.msra.mxu0 0.0
    %1423 = vmatprep.subr.mxu0 0.0
    %1424 = vmatpush1.msra.mxu0 0.0
    %1425 = vmatprep.subr.mxu0 0.0
    %1426 = vmatpush1.msra.mxu0 0.0
    %1427 = vmatprep.subr.mxu0 0.0
    %1428 = vmatpush1.msra.mxu0 0.0
    %1429 = vmatprep.subr.mxu0 0.0
    %1430 = vmatpush1.msra.mxu0 0.0
    %1431 = vmatprep.subr.mxu0 0.0
    %1432 = vmatpush1.msra.mxu0 0.0
    %1433 = vmatprep.subr.mxu0 0.0
    %1434 = vmatpush1.msra.mxu0 0.0
    %1435 = vmatprep.subr.mxu0 0.0
    %1436 = vmatpush1.msra.mxu0 0.0
    %1437 = vmatprep.subr.mxu0 0.0
    %1438 = vmatpush1.msra.mxu0 0.0
    %1439 = vmatprep.subr.mxu0 0.0
    %1440 = vmatpush1.msra.mxu0 0.0
    %1441 = vmatprep.subr.mxu0 0.0
    %1442 = vmatpush1.msra.mxu0 0.0
    %1443 = vmatprep.subr.mxu0 0.0
    %1444 = vmatpush1.msra.mxu0 0.0
    %1445 = vmatprep.subr.mxu0 0.0
    %1446 = vmatpush1.msra.mxu0 0.0
    %1447 = vmatprep.subr.mxu0 0.0
    %1448 = vmatpush1.msra.mxu0 0.0
    %1449 = vmatprep.subr.mxu0 0.0
    %1450 = vmatpush1.msra.mxu0 0.0
    %1451 = vmatprep.subr.mxu0 0.0
    %1452 = vmatpush1.msra.mxu0 0.0
    %1453 = vmatprep.subr.mxu0 0.0
    %1454 = vmatpush1.msra.mxu0 0.0
    %1455 = vmatprep.subr.mxu0 0.0
    %1456 = vmatpush1.msra.mxu0 0.0
    %1457 = vmatprep.subr.mxu0 0.0
    %1458 = vmatpush1.msra.mxu0 0.0
    %1459 = vmatprep.subr.mxu0 0.0
    %1460 = vmatpush1.msra.mxu0 0.0
    %1461 = vmatprep.subr.mxu0 0.0
    %1462 = vmatpush1.msra.mxu0 0.0
    %1463 = vmatprep.subr.mxu0 0.0
    %1464 = vmatpush1.msra.mxu0 0.0
    %1465 = vmatprep.mubr.f32.mxu0 0.0
    %v1466 = vand.u32 %v402, 4294901760
    %1467 = vmatmul.mubr.f32.gmra.mrb[0].mxu0 %v1466
    %v1468 = vpop.f32.mrb[0].mxu0
    %v1469 = vadd.f32 %v1367, %v1468
    %v1470 = vpop.f32.mrb[0].mxu0
    %v1471 = vadd.f32 %v1369, %v1470
    %1472 = vdwg.mxu0
    %v1473 = vand.u32 %v377, 4294901760
    %1474 = vmatprep.subr.mxu0 %v1473
    %v1475 = vand.u32 %v376, 4294901760
    %1476 = vmatpush1.msra.mxu0 %v1475
    %v1477 = vand.u32 %v381, 4294901760
    %1478 = vmatprep.subr.mxu0 %v1477
    %v1479 = vand.u32 %v380, 4294901760
    %1480 = vmatpush1.msra.mxu0 %v1479
    %v1481 = vand.u32 %v385, 4294901760
    %1482 = vmatprep.subr.mxu0 %v1481
    %v1483 = vand.u32 %v384, 4294901760
    %1484 = vmatpush1.msra.mxu0 %v1483
    %v1485 = vand.u32 %v389, 4294901760
    %1486 = vmatprep.subr.mxu0 %v1485
    %v1487 = vand.u32 %v388, 4294901760
    %1488 = vmatpush1.msra.mxu0 %v1487
    %v1489 = vand.u32 %v415, 4294901760
    %1490 = vmatprep.subr.mxu0 %v1489
    %v1491 = vand.u32 %v412, 4294901760
    %1492 = vmatpush1.msra.mxu0 %v1491
    %1493 = vmatprep.subr.mxu0 0.0
    %1494 = vmatpush1.msra.mxu0 0.0
    %1495 = vmatprep.subr.mxu0 0.0
    %1496 = vmatpush1.msra.mxu0 0.0
    %1497 = vmatprep.subr.mxu0 0.0
    %1498 = vmatpush1.msra.mxu0 0.0
    %1499 = vmatprep.subr.mxu0 0.0
    %1500 = vmatpush1.msra.mxu0 0.0
    %1501 = vmatprep.subr.mxu0 0.0
    %1502 = vmatpush1.msra.mxu0 0.0
    %1503 = vmatprep.subr.mxu0 0.0
    %1504 = vmatpush1.msra.mxu0 0.0
    %1505 = vmatprep.subr.mxu0 0.0
    %1506 = vmatpush1.msra.mxu0 0.0
    %1507 = vmatprep.subr.mxu0 0.0
    %1508 = vmatpush1.msra.mxu0 0.0
    %1509 = vmatprep.subr.mxu0 0.0
    %1510 = vmatpush1.msra.mxu0 0.0
    %1511 = vmatprep.subr.mxu0 0.0
    %1512 = vmatpush1.msra.mxu0 0.0
    %1513 = vmatprep.subr.mxu0 0.0
    %1514 = vmatpush1.msra.mxu0 0.0
    %1515 = vmatprep.subr.mxu0 0.0
    %1516 = vmatpush1.msra.mxu0 0.0
    %1517 = vmatprep.subr.mxu0 0.0
    %1518 = vmatpush1.msra.mxu0 0.0
    %1519 = vmatprep.subr.mxu0 0.0
    %1520 = vmatpush1.msra.mxu0 0.0
    %1521 = vmatprep.subr.mxu0 0.0
    %1522 = vmatpush1.msra.mxu0 0.0
    %1523 = vmatprep.subr.mxu0 0.0
    %1524 = vmatpush1.msra.mxu0 0.0
    %1525 = vmatprep.subr.mxu0 0.0
    %1526 = vmatpush1.msra.mxu0 0.0
    %1527 = vmatprep.subr.mxu0 0.0
    %1528 = vmatpush1.msra.mxu0 0.0
    %1529 = vmatprep.subr.mxu0 0.0
    %1530 = vmatpush1.msra.mxu0 0.0
    %1531 = vmatprep.subr.mxu0 0.0
    %1532 = vmatpush1.msra.mxu0 0.0
    %1533 = vmatprep.subr.mxu0 0.0
    %1534 = vmatpush1.msra.mxu0 0.0
    %1535 = vmatprep.subr.mxu0 0.0
    %1536 = vmatpush1.msra.mxu0 0.0
    %1537 = vmatprep.subr.mxu0 0.0
    %1538 = vmatpush1.msra.mxu0 0.0
    %1539 = vmatprep.subr.mxu0 0.0
    %1540 = vmatpush1.msra.mxu0 0.0
    %1541 = vmatprep.subr.mxu0 0.0
    %1542 = vmatpush1.msra.mxu0 0.0
    %1543 = vmatprep.subr.mxu0 0.0
    %1544 = vmatpush1.msra.mxu0 0.0
    %1545 = vmatprep.subr.mxu0 0.0
    %1546 = vmatpush1.msra.mxu0 0.0
    %1547 = vmatprep.mubr.f32.mxu0 0.0
    %v1548 = vand.u32 %v402, 4294901760
    %1549 = vmatmul.mubr.f32.gmra.mrb[0].mxu0 %v1548
    %v1550 = vpop.f32.mrb[0].mxu0
    %v1551 = vadd.f32 %v1469, %v1550
    %v1552 = vpop.f32.mrb[0].mxu0
    %v1553 = vadd.f32 %v1471, %v1552
    %1554 = vdwg.mxu0
    %v1555 = vmax.f32 %v982, 0.0
    %v1556 = vmax.f32 %v984, 0.0
    %v1557 = vmax.f32 %v1551, 0.0
    %v1558 = vmax.f32 %v1553, 0.0
    %1559 = vrot.lane.b32.xlu0 %v1555, 17
    %v1560 = vpop.permute.xlu0 %1559
    %1561 = vrot.lane.b32.xlu0 %v1556, 17
    %v1562 = vpop.permute.xlu0 %1561
    %v1563 = vsel %vm120, %v1560, %v1562
    %v1564 = vsel %vm120, %v1562, %v1560
    %v1565 = vsel %vm125, %v1564, 0.0
    %v1566 = vsel %vm126, %v1563, 0.0
    %1567 = vst [vmem:[#allocation2] sm:$0xf] %v1565
    %1568 = vst [vmem:[#allocation2 + $0x8] sm:$0xf] %v1566
    %1569 = vrot.lane.b32.xlu0 %v1555, 16
    %v1570 = vpop.permute.xlu0 %1569
    %1571 = vrot.lane.b32.xlu0 %v1556, 16
    %v1572 = vpop.permute.xlu0 %1571
    %v1573 = vsel %vm135, %v1570, %v1572
    %v1574 = vsel %vm135, %v1572, %v1570
    %v1575 = vsel %vm140, %v1574, 0.0
    %v1576 = vsel %vm141, %v1573, 0.0
    %v1579 = vrot.slane %v1575, 4
    %v1580 = vrot.slane %v1576, 4
    %1583 = vst [vmem:[#allocation2] sm:$0xf0] %v1579
    %1584 = vst [vmem:[#allocation2 + $0x8] sm:$0xf0] %v1580
    %1585 = vrot.lane.b32.xlu0 %v1555, 15
    %v1586 = vpop.permute.xlu0 %1585
    %1587 = vrot.lane.b32.xlu0 %v1556, 15
    %v1588 = vpop.permute.xlu0 %1587
    %v1589 = vsel %vm156, %v1586, %v1588
    %v1590 = vsel %vm156, %v1588, %v1586
    %v1591 = vsel %vm161, %v1590, 0.0
    %v1592 = vsel %vm162, %v1589, 0.0
    %1593 = vst [vmem:[#allocation2 + $0x20] sm:$0xf] %v1591
    %1594 = vst [vmem:[#allocation2 + $0x28] sm:$0xf] %v1592
    %1595 = vrot.lane.b32.xlu0 %v1555, 1
    %v1596 = vpop.permute.xlu0 %1595
    %1597 = vrot.lane.b32.xlu0 %v1556, 1
    %v1598 = vpop.permute.xlu0 %1597
    %v1599 = vsel %vm171, %v1596, %v1598
    %v1600 = vsel %vm171, %v1598, %v1596
    %v1601 = vsel %vm176, %v1600, 0.0
    %v1602 = vsel %vm177, %v1599, 0.0
    %v1605 = vrot.slane %v1601, 4
    %v1606 = vrot.slane %v1602, 4
    %1609 = vst [vmem:[#allocation2 + $0x20] sm:$0xf0] %v1605
    %1610 = vst [vmem:[#allocation2 + $0x28] sm:$0xf0] %v1606
    %1611 = vst [vmem:[#allocation2 + $0x40] sm:$0xf] %v1555
    %1612 = vst [vmem:[#allocation2 + $0x48] sm:$0xf] %v1556
    %1613 = vrot.lane.b32.xlu0 %v1555, 127
    %v1614 = vpop.permute.xlu0 %1613
    %1615 = vrot.lane.b32.xlu0 %v1556, 127
    %v1616 = vpop.permute.xlu0 %1615
    %v1617 = vsel %vm194, %v1614, %v1616
    %v1618 = vsel %vm194, %v1616, %v1614
    %v1619 = vsel %vm199, %v1617, 0.0
    %v1620 = vsel %vm200, %v1618, 0.0
    %v1623 = vrot.slane %v1619, 4
    %v1624 = vrot.slane %v1620, 4
    %1627 = vst [vmem:[#allocation2 + $0x40] sm:$0xf0] %v1623
    %1628 = vst [vmem:[#allocation2 + $0x48] sm:$0xf0] %v1624
    %1629 = vrot.lane.b32.xlu0 %v1555, 113
    %v1630 = vpop.permute.xlu0 %1629
    %1631 = vrot.lane.b32.xlu0 %v1556, 113
    %v1632 = vpop.permute.xlu0 %1631
    %v1633 = vsel %vm215, %v1630, %v1632
    %v1634 = vsel %vm215, %v1632, %v1630
    %v1635 = vsel %vm220, %v1633, 0.0
    %v1636 = vsel %vm221, %v1634, 0.0
    %1637 = vst [vmem:[#allocation2 + $0x60] sm:$0xf] %v1635
    %1638 = vst [vmem:[#allocation2 + $0x68] sm:$0xf] %v1636
    %1639 = vrot.lane.b32.xlu0 %v1555, 112
    %v1640 = vpop.permute.xlu0 %1639
    %1641 = vrot.lane.b32.xlu0 %v1556, 112
    %v1642 = vpop.permute.xlu0 %1641
    %v1643 = vsel %vm230, %v1640, %v1642
    %v1644 = vsel %vm230, %v1642, %v1640
    %v1645 = vsel %vm235, %v1643, 0.0
    %v1646 = vsel %vm236, %v1644, 0.0
    %v1649 = vrot.slane %v1645, 4
    %v1650 = vrot.slane %v1646, 4
    %1653 = vst [vmem:[#allocation2 + $0x60] sm:$0xf0] %v1649
    %1654 = vst [vmem:[#allocation2 + $0x68] sm:$0xf0] %v1650
    %1655 = vrot.lane.b32.xlu0 %v1555, 111
    %v1656 = vpop.permute.xlu0 %1655
    %1657 = vrot.lane.b32.xlu0 %v1556, 111
    %v1658 = vpop.permute.xlu0 %1657
    %v1659 = vsel %vm251, %v1656, %v1658
    %v1660 = vsel %vm251, %v1658, %v1656
    %v1661 = vsel %vm256, %v1659, 0.0
    %v1662 = vsel %vm257, %v1660, 0.0
    %1663 = vst [vmem:[#allocation2 + $0x80] sm:$0xf] %v1661
    %1664 = vst [vmem:[#allocation2 + $0x88] sm:$0xf] %v1662
    %1665 = vrot.lane.b32.xlu0 %v1557, 17
    %v1666 = vpop.permute.xlu0 %1665
    %1667 = vrot.lane.b32.xlu0 %v1558, 17
    %v1668 = vpop.permute.xlu0 %1667
    %v1669 = vsel %vm120, %v1666, %v1668
    %v1670 = vsel %vm120, %v1668, %v1666
    %v1671 = vsel %vm125, %v1670, 0.0
    %v1672 = vsel %vm126, %v1669, 0.0
    %1673 = vst [vmem:[#allocation2 + $0x10] sm:$0xf] %v1671
    %1674 = vst [vmem:[#allocation2 + $0x18] sm:$0xf] %v1672
    %1675 = vrot.lane.b32.xlu0 %v1557, 16
    %v1676 = vpop.permute.xlu0 %1675
    %1677 = vrot.lane.b32.xlu0 %v1558, 16
    %v1678 = vpop.permute.xlu0 %1677
    %v1679 = vsel %vm135, %v1676, %v1678
    %v1680 = vsel %vm135, %v1678, %v1676
    %v1681 = vsel %vm140, %v1680, 0.0
    %v1682 = vsel %vm141, %v1679, 0.0
    %v1685 = vrot.slane %v1681, 4
    %v1686 = vrot.slane %v1682, 4
    %1689 = vst [vmem:[#allocation2 + $0x10] sm:$0xf0] %v1685
    %1690 = vst [vmem:[#allocation2 + $0x18] sm:$0xf0] %v1686
    %1691 = vrot.lane.b32.xlu0 %v1557, 15
    %v1692 = vpop.permute.xlu0 %1691
    %1693 = vrot.lane.b32.xlu0 %v1558, 15
    %v1694 = vpop.permute.xlu0 %1693
    %v1695 = vsel %vm156, %v1692, %v1694
    %v1696 = vsel %vm156, %v1694, %v1692
    %v1697 = vsel %vm161, %v1696, 0.0
    %v1698 = vsel %vm162, %v1695, 0.0
    %1699 = vst [vmem:[#allocation2 + $0x30] sm:$0xf] %v1697
    %1700 = vst [vmem:[#allocation2 + $0x38] sm:$0xf] %v1698
    %1701 = vrot.lane.b32.xlu0 %v1557, 1
    %v1702 = vpop.permute.xlu0 %1701
    %1703 = vrot.lane.b32.xlu0 %v1558, 1
    %v1704 = vpop.permute.xlu0 %1703
    %v1705 = vsel %vm171, %v1702, %v1704
    %v1706 = vsel %vm171, %v1704, %v1702
    %v1707 = vsel %vm176, %v1706, 0.0
    %v1708 = vsel %vm177, %v1705, 0.0
    %v1711 = vrot.slane %v1707, 4
    %v1712 = vrot.slane %v1708, 4
    %1715 = vst [vmem:[#allocation2 + $0x30] sm:$0xf0] %v1711
    %1716 = vst [vmem:[#allocation2 + $0x38] sm:$0xf0] %v1712
    %1717 = vst [vmem:[#allocation2 + $0x50] sm:$0xf] %v1557
    %1718 = vst [vmem:[#allocation2 + $0x58] sm:$0xf] %v1558
    %1719 = vrot.lane.b32.xlu0 %v1557, 127
    %v1720 = vpop.permute.xlu0 %1719
    %1721 = vrot.lane.b32.xlu0 %v1558, 127
    %v1722 = vpop.permute.xlu0 %1721
    %v1723 = vsel %vm194, %v1720, %v1722
    %v1724 = vsel %vm194, %v1722, %v1720
    %v1725 = vsel %vm199, %v1723, 0.0
    %v1726 = vsel %vm200, %v1724, 0.0
    %v1729 = vrot.slane %v1725, 4
    %v1730 = vrot.slane %v1726, 4
    %1733 = vst [vmem:[#allocation2 + $0x50] sm:$0xf0] %v1729
    %1734 = vst [vmem:[#allocation2 + $0x58] sm:$0xf0] %v1730
    %1735 = vrot.lane.b32.xlu0 %v1557, 113
    %v1736 = vpop.permute.xlu0 %1735
    %1737 = vrot.lane.b32.xlu0 %v1558, 113
    %v1738 = vpop.permute.xlu0 %1737
    %v1739 = vsel %vm215, %v1736, %v1738
    %v1740 = vsel %vm215, %v1738, %v1736
    %v1741 = vsel %vm220, %v1739, 0.0
    %v1742 = vsel %vm221, %v1740, 0.0
    %1743 = vst [vmem:[#allocation2 + $0x70] sm:$0xf] %v1741
    %1744 = vst [vmem:[#allocation2 + $0x78] sm:$0xf] %v1742
    %1745 = vrot.lane.b32.xlu0 %v1557, 112
    %v1746 = vpop.permute.xlu0 %1745
    %1747 = vrot.lane.b32.xlu0 %v1558, 112
    %v1748 = vpop.permute.xlu0 %1747
    %v1749 = vsel %vm230, %v1746, %v1748
    %v1750 = vsel %vm230, %v1748, %v1746
    %v1751 = vsel %vm235, %v1749, 0.0
    %v1752 = vsel %vm236, %v1750, 0.0
    %v1755 = vrot.slane %v1751, 4
    %v1756 = vrot.slane %v1752, 4
    %1759 = vst [vmem:[#allocation2 + $0x70] sm:$0xf0] %v1755
    %1760 = vst [vmem:[#allocation2 + $0x78] sm:$0xf0] %v1756
    %1761 = vrot.lane.b32.xlu0 %v1557, 111
    %v1762 = vpop.permute.xlu0 %1761
    %1763 = vrot.lane.b32.xlu0 %v1558, 111
    %v1764 = vpop.permute.xlu0 %1763
    %v1765 = vsel %vm251, %v1762, %v1764
    %v1766 = vsel %vm251, %v1764, %v1762
    %v1767 = vsel %vm256, %v1765, 0.0
    %v1768 = vsel %vm257, %v1766, 0.0
    %1769 = vst [vmem:[#allocation2 + $0x90] sm:$0xf] %v1767
    %1770 = vst [vmem:[#allocation2 + $0x98] sm:$0xf] %v1768
    %v1771 = vld [vmem:[%s3] sm:$0xf]
    %v1772 = vld [vmem:[#allocation2] sm:$0xff]
    %v1773 = vld [vmem:[#allocation2 + $0x8] sm:$0xff]
    %v1774 = vld [vmem:[#allocation2 + $0x10] sm:$0xff]
    %v1775 = vld [vmem:[#allocation2 + $0x18] sm:$0xff]
    %v1776 = vld [vmem:[#allocation2 + $0x20] sm:$0xff]
    %v1777 = vld [vmem:[#allocation2 + $0x28] sm:$0xff]
    %v1778 = vld [vmem:[#allocation2 + $0x30] sm:$0xff]
    %v1779 = vld [vmem:[#allocation2 + $0x38] sm:$0xff]
    %v1780 = vld [vmem:[#allocation2 + $0x40] sm:$0xff]
    %v1781 = vld [vmem:[#allocation2 + $0x48] sm:$0xff]
    %v1782 = vld [vmem:[#allocation2 + $0x50] sm:$0xff]
    %v1783 = vld [vmem:[#allocation2 + $0x58] sm:$0xff]
    %v1784 = vld [vmem:[#allocation2 + $0x60] sm:$0xff]
    %v1785 = vld [vmem:[#allocation2 + $0x68] sm:$0xff]
    %v1786 = vld [vmem:[#allocation2 + $0x70] sm:$0xff]
    %v1787 = vld [vmem:[#allocation2 + $0x78] sm:$0xff]
    %v1788 = vld [vmem:[#allocation2 + $0x80] sm:$0xf]
    %v1789 = vld [vmem:[#allocation2 + $0x88] sm:$0xf]
    %v1790 = vld [vmem:[#allocation2 + $0x90] sm:$0xf]
    %v1791 = vld [vmem:[#allocation2 + $0x98] sm:$0xf]
    %v1792 = vld [vmem:[%s4] sm:$0xf]
    %1794 = vset.pattern.permute.xlu0 0
    %1795 = vperm.xlu0 %1794, %v1792
    %v1796 = vpop.permute.xlu0 %1795
    %v1799 = vsel %vm400, %v1771, 0
    %v1802 = vsel %vm404, %v1788, 0
    %v1805 = vsel %vm404, %v1789, 0
    %v1808 = vsel %vm404, %v1790, 0
    %v1811 = vsel %vm404, %v1791, 0
    %v1813 = vand.u32 %v1773, 4294901760
    %1814 = vmatprep.subr.mxu0 %v1813
    %v1815 = vand.u32 %v1772, 4294901760
    %1816 = vmatpush1.msra.mxu0 %v1815
    %v1817 = vand.u32 %v1777, 4294901760
    %1818 = vmatprep.subr.mxu0 %v1817
    %v1819 = vand.u32 %v1776, 4294901760
    %1820 = vmatpush1.msra.mxu0 %v1819
    %v1821 = vand.u32 %v1781, 4294901760
    %1822 = vmatprep.subr.mxu0 %v1821
    %v1823 = vand.u32 %v1780, 4294901760
    %1824 = vmatpush1.msra.mxu0 %v1823
    %v1825 = vand.u32 %v1785, 4294901760
    %1826 = vmatprep.subr.mxu0 %v1825
    %v1827 = vand.u32 %v1784, 4294901760
    %1828 = vmatpush1.msra.mxu0 %v1827
    %v1829 = vand.u32 %v1805, 4294901760
    %1830 = vmatprep.subr.mxu0 %v1829
    %v1831 = vand.u32 %v1802, 4294901760
    %1832 = vmatpush1.msra.mxu0 %v1831
    %1833 = vmatprep.subr.mxu0 0.0
    %1834 = vmatpush1.msra.mxu0 0.0
    %1835 = vmatprep.subr.mxu0 0.0
    %1836 = vmatpush1.msra.mxu0 0.0
    %1837 = vmatprep.subr.mxu0 0.0
    %1838 = vmatpush1.msra.mxu0 0.0
    %1839 = vmatprep.subr.mxu0 0.0
    %1840 = vmatpush1.msra.mxu0 0.0
    %1841 = vmatprep.subr.mxu0 0.0
    %1842 = vmatpush1.msra.mxu0 0.0
    %1843 = vmatprep.subr.mxu0 0.0
    %1844 = vmatpush1.msra.mxu0 0.0
    %1845 = vmatprep.subr.mxu0 0.0
    %1846 = vmatpush1.msra.mxu0 0.0
    %1847 = vmatprep.subr.mxu0 0.0
    %1848 = vmatpush1.msra.mxu0 0.0
    %1849 = vmatprep.subr.mxu0 0.0
    %1850 = vmatpush1.msra.mxu0 0.0
    %1851 = vmatprep.subr.mxu0 0.0
    %1852 = vmatpush1.msra.mxu0 0.0
    %1853 = vmatprep.subr.mxu0 0.0
    %1854 = vmatpush1.msra.mxu0 0.0
    %1855 = vmatprep.subr.mxu0 0.0
    %1856 = vmatpush1.msra.mxu0 0.0
    %1857 = vmatprep.subr.mxu0 0.0
    %1858 = vmatpush1.msra.mxu0 0.0
    %1859 = vmatprep.subr.mxu0 0.0
    %1860 = vmatpush1.msra.mxu0 0.0
    %1861 = vmatprep.subr.mxu0 0.0
    %1862 = vmatpush1.msra.mxu0 0.0
    %1863 = vmatprep.subr.mxu0 0.0
    %1864 = vmatpush1.msra.mxu0 0.0
    %1865 = vmatprep.subr.mxu0 0.0
    %1866 = vmatpush1.msra.mxu0 0.0
    %1867 = vmatprep.subr.mxu0 0.0
    %1868 = vmatpush1.msra.mxu0 0.0
    %1869 = vmatprep.subr.mxu0 0.0
    %1870 = vmatpush1.msra.mxu0 0.0
    %1871 = vmatprep.subr.mxu0 0.0
    %1872 = vmatpush1.msra.mxu0 0.0
    %1873 = vmatprep.subr.mxu0 0.0
    %1874 = vmatpush1.msra.mxu0 0.0
    %1875 = vmatprep.subr.mxu0 0.0
    %1876 = vmatpush1.msra.mxu0 0.0
    %1877 = vmatprep.subr.mxu0 0.0
    %1878 = vmatpush1.msra.mxu0 0.0
    %1879 = vmatprep.subr.mxu0 0.0
    %1880 = vmatpush1.msra.mxu0 0.0
    %1881 = vmatprep.subr.mxu0 0.0
    %1882 = vmatpush1.msra.mxu0 0.0
    %1883 = vmatprep.subr.mxu0 0.0
    %1884 = vmatpush1.msra.mxu0 0.0
    %1885 = vmatprep.subr.mxu0 0.0
    %1886 = vmatpush1.msra.mxu0 0.0
    %1887 = vmatprep.mubr.f32.mxu0 0.0
    %v1888 = vand.u32 %v1799, 4294901760
    %v1889 = vsub.f32 %v1799, %v1888
    %v1890 = vand.u32 %v1889, 4294901760
    %v1891 = vsub.f32 %v1889, %v1890
    %v1892 = vand.u32 %v1891, 4294901760
    %1893 = vmatmul.mubr.f32.gmra.mrb[0].mxu0 %v1892
    %v1894 = vpop.f32.mrb[0].mxu0
    %v1895 = vadd.f32 %v1796, %v1894
    %v1896 = vpop.f32.mrb[0].mxu0
    %v1897 = vadd.f32 %v1796, %v1896
    %1898 = vdwg.mxu0
    %v1899 = vand.u32 %v1773, 4294901760
    %v1900 = vsub.f32 %v1773, %v1899
    %v1901 = vand.u32 %v1900, 4294901760
    %v1902 = vsub.f32 %v1900, %v1901
    %v1903 = vand.u32 %v1902, 4294901760
    %1904 = vmatprep.subr.mxu0 %v1903
    %v1905 = vand.u32 %v1772, 4294901760
    %v1906 = vsub.f32 %v1772, %v1905
    %v1907 = vand.u32 %v1906, 4294901760
    %v1908 = vsub.f32 %v1906, %v1907
    %v1909 = vand.u32 %v1908, 4294901760
    %1910 = vmatpush1.msra.mxu0 %v1909
    %v1911 = vand.u32 %v1777, 4294901760
    %v1912 = vsub.f32 %v1777, %v1911
    %v1913 = vand.u32 %v1912, 4294901760
    %v1914 = vsub.f32 %v1912, %v1913
    %v1915 = vand.u32 %v1914, 4294901760
    %1916 = vmatprep.subr.mxu0 %v1915
    %v1917 = vand.u32 %v1776, 4294901760
    %v1918 = vsub.f32 %v1776, %v1917
    %v1919 = vand.u32 %v1918, 4294901760
    %v1920 = vsub.f32 %v1918, %v1919
    %v1921 = vand.u32 %v1920, 4294901760
    %1922 = vmatpush1.msra.mxu0 %v1921
    %v1923 = vand.u32 %v1781, 4294901760
    %v1924 = vsub.f32 %v1781, %v1923
    %v1925 = vand.u32 %v1924, 4294901760
    %v1926 = vsub.f32 %v1924, %v1925
    %v1927 = vand.u32 %v1926, 4294901760
    %1928 = vmatprep.subr.mxu0 %v1927
    %v1929 = vand.u32 %v1780, 4294901760
    %v1930 = vsub.f32 %v1780, %v1929
    %v1931 = vand.u32 %v1930, 4294901760
    %v1932 = vsub.f32 %v1930, %v1931
    %v1933 = vand.u32 %v1932, 4294901760
    %1934 = vmatpush1.msra.mxu0 %v1933
    %v1935 = vand.u32 %v1785, 4294901760
    %v1936 = vsub.f32 %v1785, %v1935
    %v1937 = vand.u32 %v1936, 4294901760
    %v1938 = vsub.f32 %v1936, %v1937
    %v1939 = vand.u32 %v1938, 4294901760
    %1940 = vmatprep.subr.mxu0 %v1939
    %v1941 = vand.u32 %v1784, 4294901760
    %v1942 = vsub.f32 %v1784, %v1941
    %v1943 = vand.u32 %v1942, 4294901760
    %v1944 = vsub.f32 %v1942, %v1943
    %v1945 = vand.u32 %v1944, 4294901760
    %1946 = vmatpush1.msra.mxu0 %v1945
    %v1947 = vand.u32 %v1805, 4294901760
    %v1948 = vsub.f32 %v1805, %v1947
    %v1949 = vand.u32 %v1948, 4294901760
    %v1950 = vsub.f32 %v1948, %v1949
    %v1951 = vand.u32 %v1950, 4294901760
    %1952 = vmatprep.subr.mxu0 %v1951
    %v1953 = vand.u32 %v1802, 4294901760
    %v1954 = vsub.f32 %v1802, %v1953
    %v1955 = vand.u32 %v1954, 4294901760
    %v1956 = vsub.f32 %v1954, %v1955
    %v1957 = vand.u32 %v1956, 4294901760
    %1958 = vmatpush1.msra.mxu0 %v1957
    %1959 = vmatprep.subr.mxu0 0.0
    %1960 = vmatpush1.msra.mxu0 0.0
    %1961 = vmatprep.subr.mxu0 0.0
    %1962 = vmatpush1.msra.mxu0 0.0
    %1963 = vmatprep.subr.mxu0 0.0
    %1964 = vmatpush1.msra.mxu0 0.0
    %1965 = vmatprep.subr.mxu0 0.0
    %1966 = vmatpush1.msra.mxu0 0.0
    %1967 = vmatprep.subr.mxu0 0.0
    %1968 = vmatpush1.msra.mxu0 0.0
    %1969 = vmatprep.subr.mxu0 0.0
    %1970 = vmatpush1.msra.mxu0 0.0
    %1971 = vmatprep.subr.mxu0 0.0
    %1972 = vmatpush1.msra.mxu0 0.0
    %1973 = vmatprep.subr.mxu0 0.0
    %1974 = vmatpush1.msra.mxu0 0.0
    %1975 = vmatprep.subr.mxu0 0.0
    %1976 = vmatpush1.msra.mxu0 0.0
    %1977 = vmatprep.subr.mxu0 0.0
    %1978 = vmatpush1.msra.mxu0 0.0
    %1979 = vmatprep.subr.mxu0 0.0
    %1980 = vmatpush1.msra.mxu0 0.0
    %1981 = vmatprep.subr.mxu0 0.0
    %1982 = vmatpush1.msra.mxu0 0.0
    %1983 = vmatprep.subr.mxu0 0.0
    %1984 = vmatpush1.msra.mxu0 0.0
    %1985 = vmatprep.subr.mxu0 0.0
    %1986 = vmatpush1.msra.mxu0 0.0
    %1987 = vmatprep.subr.mxu0 0.0
    %1988 = vmatpush1.msra.mxu0 0.0
    %1989 = vmatprep.subr.mxu0 0.0
    %1990 = vmatpush1.msra.mxu0 0.0
    %1991 = vmatprep.subr.mxu0 0.0
    %1992 = vmatpush1.msra.mxu0 0.0
    %1993 = vmatprep.subr.mxu0 0.0
    %1994 = vmatpush1.msra.mxu0 0.0
    %1995 = vmatprep.subr.mxu0 0.0
    %1996 = vmatpush1.msra.mxu0 0.0
    %1997 = vmatprep.subr.mxu0 0.0
    %1998 = vmatpush1.msra.mxu0 0.0
    %1999 = vmatprep.subr.mxu0 0.0
    %2000 = vmatpush1.msra.mxu0 0.0
    %2001 = vmatprep.subr.mxu0 0.0
    %2002 = vmatpush1.msra.mxu0 0.0
    %2003 = vmatprep.subr.mxu0 0.0
    %2004 = vmatpush1.msra.mxu0 0.0
    %2005 = vmatprep.subr.mxu0 0.0
    %2006 = vmatpush1.msra.mxu0 0.0
    %2007 = vmatprep.subr.mxu0 0.0
    %2008 = vmatpush1.msra.mxu0 0.0
    %2009 = vmatprep.subr.mxu0 0.0
    %2010 = vmatpush1.msra.mxu0 0.0
    %2011 = vmatprep.subr.mxu0 0.0
    %2012 = vmatpush1.msra.mxu0 0.0
    %2013 = vmatprep.mubr.f32.mxu0 0.0
    %v2014 = vand.u32 %v1799, 4294901760
    %2015 = vmatmul.mubr.f32.gmra.mrb[0].mxu0 %v2014
    %v2016 = vpop.f32.mrb[0].mxu0
    %v2017 = vadd.f32 %v1895, %v2016
    %v2018 = vpop.f32.mrb[0].mxu0
    %v2019 = vadd.f32 %v1897, %v2018
    %2020 = vdwg.mxu0
    %v2021 = vand.u32 %v1773, 4294901760
    %v2022 = vsub.f32 %v1773, %v2021
    %2023 = vmatprep.subr.mxu0 %v2022
    %v2024 = vand.u32 %v1772, 4294901760
    %v2025 = vsub.f32 %v1772, %v2024
    %2026 = vmatpush1.msra.mxu0 %v2025
    %v2027 = vand.u32 %v1777, 4294901760
    %v2028 = vsub.f32 %v1777, %v2027
    %2029 = vmatprep.subr.mxu0 %v2028
    %v2030 = vand.u32 %v1776, 4294901760
    %v2031 = vsub.f32 %v1776, %v2030
    %2032 = vmatpush1.msra.mxu0 %v2031
    %v2033 = vand.u32 %v1781, 4294901760
    %v2034 = vsub.f32 %v1781, %v2033
    %2035 = vmatprep.subr.mxu0 %v2034
    %v2036 = vand.u32 %v1780, 4294901760
    %v2037 = vsub.f32 %v1780, %v2036
    %2038 = vmatpush1.msra.mxu0 %v2037
    %v2039 = vand.u32 %v1785, 4294901760
    %v2040 = vsub.f32 %v1785, %v2039
    %2041 = vmatprep.subr.mxu0 %v2040
    %v2042 = vand.u32 %v1784, 4294901760
    %v2043 = vsub.f32 %v1784, %v2042
    %2044 = vmatpush1.msra.mxu0 %v2043
    %v2045 = vand.u32 %v1805, 4294901760
    %v2046 = vsub.f32 %v1805, %v2045
    %2047 = vmatprep.subr.mxu0 %v2046
    %v2048 = vand.u32 %v1802, 4294901760
    %v2049 = vsub.f32 %v1802, %v2048
    %2050 = vmatpush1.msra.mxu0 %v2049
    %2051 = vmatprep.subr.mxu0 0.0
    %2052 = vmatpush1.msra.mxu0 0.0
    %2053 = vmatprep.subr.mxu0 0.0
    %2054 = vmatpush1.msra.mxu0 0.0
    %2055 = vmatprep.subr.mxu0 0.0
    %2056 = vmatpush1.msra.mxu0 0.0
    %2057 = vmatprep.subr.mxu0 0.0
    %2058 = vmatpush1.msra.mxu0 0.0
    %2059 = vmatprep.subr.mxu0 0.0
    %2060 = vmatpush1.msra.mxu0 0.0
    %2061 = vmatprep.subr.mxu0 0.0
    %2062 = vmatpush1.msra.mxu0 0.0
    %2063 = vmatprep.subr.mxu0 0.0
    %2064 = vmatpush1.msra.mxu0 0.0
    %2065 = vmatprep.subr.mxu0 0.0
    %2066 = vmatpush1.msra.mxu0 0.0
    %2067 = vmatprep.subr.mxu0 0.0
    %2068 = vmatpush1.msra.mxu0 0.0
    %2069 = vmatprep.subr.mxu0 0.0
    %2070 = vmatpush1.msra.mxu0 0.0
    %2071 = vmatprep.subr.mxu0 0.0
    %2072 = vmatpush1.msra.mxu0 0.0
    %2073 = vmatprep.subr.mxu0 0.0
    %2074 = vmatpush1.msra.mxu0 0.0
    %2075 = vmatprep.subr.mxu0 0.0
    %2076 = vmatpush1.msra.mxu0 0.0
    %2077 = vmatprep.subr.mxu0 0.0
    %2078 = vmatpush1.msra.mxu0 0.0
    %2079 = vmatprep.subr.mxu0 0.0
    %2080 = vmatpush1.msra.mxu0 0.0
    %2081 = vmatprep.subr.mxu0 0.0
    %2082 = vmatpush1.msra.mxu0 0.0
    %2083 = vmatprep.subr.mxu0 0.0
    %2084 = vmatpush1.msra.mxu0 0.0
    %2085 = vmatprep.subr.mxu0 0.0
    %2086 = vmatpush1.msra.mxu0 0.0
    %2087 = vmatprep.subr.mxu0 0.0
    %2088 = vmatpush1.msra.mxu0 0.0
    %2089 = vmatprep.subr.mxu0 0.0
    %2090 = vmatpush1.msra.mxu0 0.0
    %2091 = vmatprep.subr.mxu0 0.0
    %2092 = vmatpush1.msra.mxu0 0.0
    %2093 = vmatprep.subr.mxu0 0.0
    %2094 = vmatpush1.msra.mxu0 0.0
    %2095 = vmatprep.subr.mxu0 0.0
    %2096 = vmatpush1.msra.mxu0 0.0
    %2097 = vmatprep.subr.mxu0 0.0
    %2098 = vmatpush1.msra.mxu0 0.0
    %2099 = vmatprep.subr.mxu0 0.0
    %2100 = vmatpush1.msra.mxu0 0.0
    %2101 = vmatprep.subr.mxu0 0.0
    %2102 = vmatpush1.msra.mxu0 0.0
    %2103 = vmatprep.subr.mxu0 0.0
    %2104 = vmatpush1.msra.mxu0 0.0
    %2105 = vmatprep.mubr.f32.mxu0 0.0
    %v2106 = vand.u32 %v1799, 4294901760
    %v2107 = vsub.f32 %v1799, %v2106
    %2108 = vmatmul.mubr.f32.gmra.mrb[0].mxu0 %v2107
    %v2109 = vpop.f32.mrb[0].mxu0
    %v2110 = vadd.f32 %v2017, %v2109
    %v2111 = vpop.f32.mrb[0].mxu0
    %v2112 = vadd.f32 %v2019, %v2111
    %2113 = vdwg.mxu0
    %v2114 = vand.u32 %v1773, 4294901760
    %2115 = vmatprep.subr.mxu0 %v2114
    %v2116 = vand.u32 %v1772, 4294901760
    %2117 = vmatpush1.msra.mxu0 %v2116
    %v2118 = vand.u32 %v1777, 4294901760
    %2119 = vmatprep.subr.mxu0 %v2118
    %v2120 = vand.u32 %v1776, 4294901760
    %2121 = vmatpush1.msra.mxu0 %v2120
    %v2122 = vand.u32 %v1781, 4294901760
    %2123 = vmatprep.subr.mxu0 %v2122
    %v2124 = vand.u32 %v1780, 4294901760
    %2125 = vmatpush1.msra.mxu0 %v2124
    %v2126 = vand.u32 %v1785, 4294901760
    %2127 = vmatprep.subr.mxu0 %v2126
    %v2128 = vand.u32 %v1784, 4294901760
    %2129 = vmatpush1.msra.mxu0 %v2128
    %v2130 = vand.u32 %v1805, 4294901760
    %2131 = vmatprep.subr.mxu0 %v2130
    %v2132 = vand.u32 %v1802, 4294901760
    %2133 = vmatpush1.msra.mxu0 %v2132
    %2134 = vmatprep.subr.mxu0 0.0
    %2135 = vmatpush1.msra.mxu0 0.0
    %2136 = vmatprep.subr.mxu0 0.0
    %2137 = vmatpush1.msra.mxu0 0.0
    %2138 = vmatprep.subr.mxu0 0.0
    %2139 = vmatpush1.msra.mxu0 0.0
    %2140 = vmatprep.subr.mxu0 0.0
    %2141 = vmatpush1.msra.mxu0 0.0
    %2142 = vmatprep.subr.mxu0 0.0
    %2143 = vmatpush1.msra.mxu0 0.0
    %2144 = vmatprep.subr.mxu0 0.0
    %2145 = vmatpush1.msra.mxu0 0.0
    %2146 = vmatprep.subr.mxu0 0.0
    %2147 = vmatpush1.msra.mxu0 0.0
    %2148 = vmatprep.subr.mxu0 0.0
    %2149 = vmatpush1.msra.mxu0 0.0
    %2150 = vmatprep.subr.mxu0 0.0
    %2151 = vmatpush1.msra.mxu0 0.0
    %2152 = vmatprep.subr.mxu0 0.0
    %2153 = vmatpush1.msra.mxu0 0.0
    %2154 = vmatprep.subr.mxu0 0.0
    %2155 = vmatpush1.msra.mxu0 0.0
    %2156 = vmatprep.subr.mxu0 0.0
    %2157 = vmatpush1.msra.mxu0 0.0
    %2158 = vmatprep.subr.mxu0 0.0
    %2159 = vmatpush1.msra.mxu0 0.0
    %2160 = vmatprep.subr.mxu0 0.0
    %2161 = vmatpush1.msra.mxu0 0.0
    %2162 = vmatprep.subr.mxu0 0.0
    %2163 = vmatpush1.msra.mxu0 0.0
    %2164 = vmatprep.subr.mxu0 0.0
    %2165 = vmatpush1.msra.mxu0 0.0
    %2166 = vmatprep.subr.mxu0 0.0
    %2167 = vmatpush1.msra.mxu0 0.0
    %2168 = vmatprep.subr.mxu0 0.0
    %2169 = vmatpush1.msra.mxu0 0.0
    %2170 = vmatprep.subr.mxu0 0.0
    %2171 = vmatpush1.msra.mxu0 0.0
    %2172 = vmatprep.subr.mxu0 0.0
    %2173 = vmatpush1.msra.mxu0 0.0
    %2174 = vmatprep.subr.mxu0 0.0
    %2175 = vmatpush1.msra.mxu0 0.0
    %2176 = vmatprep.subr.mxu0 0.0
    %2177 = vmatpush1.msra.mxu0 0.0
    %2178 = vmatprep.subr.mxu0 0.0
    %2179 = vmatpush1.msra.mxu0 0.0
    %2180 = vmatprep.subr.mxu0 0.0
    %2181 = vmatpush1.msra.mxu0 0.0
    %2182 = vmatprep.subr.mxu0 0.0
    %2183 = vmatpush1.msra.mxu0 0.0
    %2184 = vmatprep.subr.mxu0 0.0
    %2185 = vmatpush1.msra.mxu0 0.0
    %2186 = vmatprep.subr.mxu0 0.0
    %2187 = vmatpush1.msra.mxu0 0.0
    %2188 = vmatprep.mubr.f32.mxu0 0.0
    %v2189 = vand.u32 %v1799, 4294901760
    %v2190 = vsub.f32 %v1799, %v2189
    %v2191 = vand.u32 %v2190, 4294901760
    %2192 = vmatmul.mubr.f32.gmra.mrb[0].mxu0 %v2191
    %v2193 = vpop.f32.mrb[0].mxu0
    %v2194 = vadd.f32 %v2110, %v2193
    %v2195 = vpop.f32.mrb[0].mxu0
    %v2196 = vadd.f32 %v2112, %v2195
    %2197 = vdwg.mxu0
    %v2198 = vand.u32 %v1773, 4294901760
    %v2199 = vsub.f32 %v1773, %v2198
    %v2200 = vand.u32 %v2199, 4294901760
    %2201 = vmatprep.subr.mxu0 %v2200
    %v2202 = vand.u32 %v1772, 4294901760
    %v2203 = vsub.f32 %v1772, %v2202
    %v2204 = vand.u32 %v2203, 4294901760
    %2205 = vmatpush1.msra.mxu0 %v2204
    %v2206 = vand.u32 %v1777, 4294901760
    %v2207 = vsub.f32 %v1777, %v2206
    %v2208 = vand.u32 %v2207, 4294901760
    %2209 = vmatprep.subr.mxu0 %v2208
    %v2210 = vand.u32 %v1776, 4294901760
    %v2211 = vsub.f32 %v1776, %v2210
    %v2212 = vand.u32 %v2211, 4294901760
    %2213 = vmatpush1.msra.mxu0 %v2212
    %v2214 = vand.u32 %v1781, 4294901760
    %v2215 = vsub.f32 %v1781, %v2214
    %v2216 = vand.u32 %v2215, 4294901760
    %2217 = vmatprep.subr.mxu0 %v2216
    %v2218 = vand.u32 %v1780, 4294901760
    %v2219 = vsub.f32 %v1780, %v2218
    %v2220 = vand.u32 %v2219, 4294901760
    %2221 = vmatpush1.msra.mxu0 %v2220
    %v2222 = vand.u32 %v1785, 4294901760
    %v2223 = vsub.f32 %v1785, %v2222
    %v2224 = vand.u32 %v2223, 4294901760
    %2225 = vmatprep.subr.mxu0 %v2224
    %v2226 = vand.u32 %v1784, 4294901760
    %v2227 = vsub.f32 %v1784, %v2226
    %v2228 = vand.u32 %v2227, 4294901760
    %2229 = vmatpush1.msra.mxu0 %v2228
    %v2230 = vand.u32 %v1805, 4294901760
    %v2231 = vsub.f32 %v1805, %v2230
    %v2232 = vand.u32 %v2231, 4294901760
    %2233 = vmatprep.subr.mxu0 %v2232
    %v2234 = vand.u32 %v1802, 4294901760
    %v2235 = vsub.f32 %v1802, %v2234
    %v2236 = vand.u32 %v2235, 4294901760
    %2237 = vmatpush1.msra.mxu0 %v2236
    %2238 = vmatprep.subr.mxu0 0.0
    %2239 = vmatpush1.msra.mxu0 0.0
    %2240 = vmatprep.subr.mxu0 0.0
    %2241 = vmatpush1.msra.mxu0 0.0
    %2242 = vmatprep.subr.mxu0 0.0
    %2243 = vmatpush1.msra.mxu0 0.0
    %2244 = vmatprep.subr.mxu0 0.0
    %2245 = vmatpush1.msra.mxu0 0.0
    %2246 = vmatprep.subr.mxu0 0.0
    %2247 = vmatpush1.msra.mxu0 0.0
    %2248 = vmatprep.subr.mxu0 0.0
    %2249 = vmatpush1.msra.mxu0 0.0
    %2250 = vmatprep.subr.mxu0 0.0
    %2251 = vmatpush1.msra.mxu0 0.0
    %2252 = vmatprep.subr.mxu0 0.0
    %2253 = vmatpush1.msra.mxu0 0.0
    %2254 = vmatprep.subr.mxu0 0.0
    %2255 = vmatpush1.msra.mxu0 0.0
    %2256 = vmatprep.subr.mxu0 0.0
    %2257 = vmatpush1.msra.mxu0 0.0
    %2258 = vmatprep.subr.mxu0 0.0
    %2259 = vmatpush1.msra.mxu0 0.0
    %2260 = vmatprep.subr.mxu0 0.0
    %2261 = vmatpush1.msra.mxu0 0.0
    %2262 = vmatprep.subr.mxu0 0.0
    %2263 = vmatpush1.msra.mxu0 0.0
    %2264 = vmatprep.subr.mxu0 0.0
    %2265 = vmatpush1.msra.mxu0 0.0
    %2266 = vmatprep.subr.mxu0 0.0
    %2267 = vmatpush1.msra.mxu0 0.0
    %2268 = vmatprep.subr.mxu0 0.0
    %2269 = vmatpush1.msra.mxu0 0.0
    %2270 = vmatprep.subr.mxu0 0.0
    %2271 = vmatpush1.msra.mxu0 0.0
    %2272 = vmatprep.subr.mxu0 0.0
    %2273 = vmatpush1.msra.mxu0 0.0
    %2274 = vmatprep.subr.mxu0 0.0
    %2275 = vmatpush1.msra.mxu0 0.0
    %2276 = vmatprep.subr.mxu0 0.0
    %2277 = vmatpush1.msra.mxu0 0.0
    %2278 = vmatprep.subr.mxu0 0.0
    %2279 = vmatpush1.msra.mxu0 0.0
    %2280 = vmatprep.subr.mxu0 0.0
    %2281 = vmatpush1.msra.mxu0 0.0
    %2282 = vmatprep.subr.mxu0 0.0
    %2283 = vmatpush1.msra.mxu0 0.0
    %2284 = vmatprep.subr.mxu0 0.0
    %2285 = vmatpush1.msra.mxu0 0.0
    %2286 = vmatprep.subr.mxu0 0.0
    %2287 = vmatpush1.msra.mxu0 0.0
    %2288 = vmatprep.subr.mxu0 0.0
    %2289 = vmatpush1.msra.mxu0 0.0
    %2290 = vmatprep.subr.mxu0 0.0
    %2291 = vmatpush1.msra.mxu0 0.0
    %2292 = vmatprep.mubr.f32.mxu0 0.0
    %v2293 = vand.u32 %v1799, 4294901760
    %2294 = vmatmul.mubr.f32.gmra.mrb[0].mxu0 %v2293
    %v2295 = vpop.f32.mrb[0].mxu0
    %v2296 = vadd.f32 %v2194, %v2295
    %v2297 = vpop.f32.mrb[0].mxu0
    %v2298 = vadd.f32 %v2196, %v2297
    %2299 = vdwg.mxu0
    %v2300 = vand.u32 %v1773, 4294901760
    %2301 = vmatprep.subr.mxu0 %v2300
    %v2302 = vand.u32 %v1772, 4294901760
    %2303 = vmatpush1.msra.mxu0 %v2302
    %v2304 = vand.u32 %v1777, 4294901760
    %2305 = vmatprep.subr.mxu0 %v2304
    %v2306 = vand.u32 %v1776, 4294901760
    %2307 = vmatpush1.msra.mxu0 %v2306
    %v2308 = vand.u32 %v1781, 4294901760
    %2309 = vmatprep.subr.mxu0 %v2308
    %v2310 = vand.u32 %v1780, 4294901760
    %2311 = vmatpush1.msra.mxu0 %v2310
    %v2312 = vand.u32 %v1785, 4294901760
    %2313 = vmatprep.subr.mxu0 %v2312
    %v2314 = vand.u32 %v1784, 4294901760
    %2315 = vmatpush1.msra.mxu0 %v2314
    %v2316 = vand.u32 %v1805, 4294901760
    %2317 = vmatprep.subr.mxu0 %v2316
    %v2318 = vand.u32 %v1802, 4294901760
    %2319 = vmatpush1.msra.mxu0 %v2318
    %2320 = vmatprep.subr.mxu0 0.0
    %2321 = vmatpush1.msra.mxu0 0.0
    %2322 = vmatprep.subr.mxu0 0.0
    %2323 = vmatpush1.msra.mxu0 0.0
    %2324 = vmatprep.subr.mxu0 0.0
    %2325 = vmatpush1.msra.mxu0 0.0
    %2326 = vmatprep.subr.mxu0 0.0
    %2327 = vmatpush1.msra.mxu0 0.0
    %2328 = vmatprep.subr.mxu0 0.0
    %2329 = vmatpush1.msra.mxu0 0.0
    %2330 = vmatprep.subr.mxu0 0.0
    %2331 = vmatpush1.msra.mxu0 0.0
    %2332 = vmatprep.subr.mxu0 0.0
    %2333 = vmatpush1.msra.mxu0 0.0
    %2334 = vmatprep.subr.mxu0 0.0
    %2335 = vmatpush1.msra.mxu0 0.0
    %2336 = vmatprep.subr.mxu0 0.0
    %2337 = vmatpush1.msra.mxu0 0.0
    %2338 = vmatprep.subr.mxu0 0.0
    %2339 = vmatpush1.msra.mxu0 0.0
    %2340 = vmatprep.subr.mxu0 0.0
    %2341 = vmatpush1.msra.mxu0 0.0
    %2342 = vmatprep.subr.mxu0 0.0
    %2343 = vmatpush1.msra.mxu0 0.0
    %2344 = vmatprep.subr.mxu0 0.0
    %2345 = vmatpush1.msra.mxu0 0.0
    %2346 = vmatprep.subr.mxu0 0.0
    %2347 = vmatpush1.msra.mxu0 0.0
    %2348 = vmatprep.subr.mxu0 0.0
    %2349 = vmatpush1.msra.mxu0 0.0
    %2350 = vmatprep.subr.mxu0 0.0
    %2351 = vmatpush1.msra.mxu0 0.0
    %2352 = vmatprep.subr.mxu0 0.0
    %2353 = vmatpush1.msra.mxu0 0.0
    %2354 = vmatprep.subr.mxu0 0.0
    %2355 = vmatpush1.msra.mxu0 0.0
    %2356 = vmatprep.subr.mxu0 0.0
    %2357 = vmatpush1.msra.mxu0 0.0
    %2358 = vmatprep.subr.mxu0 0.0
    %2359 = vmatpush1.msra.mxu0 0.0
    %2360 = vmatprep.subr.mxu0 0.0
    %2361 = vmatpush1.msra.mxu0 0.0
    %2362 = vmatprep.subr.mxu0 0.0
    %2363 = vmatpush1.msra.mxu0 0.0
    %2364 = vmatprep.subr.mxu0 0.0
    %2365 = vmatpush1.msra.mxu0 0.0
    %2366 = vmatprep.subr.mxu0 0.0
    %2367 = vmatpush1.msra.mxu0 0.0
    %2368 = vmatprep.subr.mxu0 0.0
    %2369 = vmatpush1.msra.mxu0 0.0
    %2370 = vmatprep.subr.mxu0 0.0
    %2371 = vmatpush1.msra.mxu0 0.0
    %2372 = vmatprep.subr.mxu0 0.0
    %2373 = vmatpush1.msra.mxu0 0.0
    %2374 = vmatprep.mubr.f32.mxu0 0.0
    %v2375 = vand.u32 %v1799, 4294901760
    %2376 = vmatmul.mubr.f32.gmra.mrb[0].mxu0 %v2375
    %v2377 = vpop.f32.mrb[0].mxu0
    %v2378 = vadd.f32 %v2296, %v2377
    %v2379 = vpop.f32.mrb[0].mxu0
    %v2380 = vadd.f32 %v2298, %v2379
    %2381 = vdwg.mxu0
    %v2382 = vand.u32 %v1775, 4294901760
    %2383 = vmatprep.subr.mxu0 %v2382
    %v2384 = vand.u32 %v1774, 4294901760
    %2385 = vmatpush1.msra.mxu0 %v2384
    %v2386 = vand.u32 %v1779, 4294901760
    %2387 = vmatprep.subr.mxu0 %v2386
    %v2388 = vand.u32 %v1778, 4294901760
    %2389 = vmatpush1.msra.mxu0 %v2388
    %v2390 = vand.u32 %v1783, 4294901760
    %2391 = vmatprep.subr.mxu0 %v2390
    %v2392 = vand.u32 %v1782, 4294901760
    %2393 = vmatpush1.msra.mxu0 %v2392
    %v2394 = vand.u32 %v1787, 4294901760
    %2395 = vmatprep.subr.mxu0 %v2394
    %v2396 = vand.u32 %v1786, 4294901760
    %2397 = vmatpush1.msra.mxu0 %v2396
    %v2398 = vand.u32 %v1811, 4294901760
    %2399 = vmatprep.subr.mxu0 %v2398
    %v2400 = vand.u32 %v1808, 4294901760
    %2401 = vmatpush1.msra.mxu0 %v2400
    %2402 = vmatprep.subr.mxu0 0.0
    %2403 = vmatpush1.msra.mxu0 0.0
    %2404 = vmatprep.subr.mxu0 0.0
    %2405 = vmatpush1.msra.mxu0 0.0
    %2406 = vmatprep.subr.mxu0 0.0
    %2407 = vmatpush1.msra.mxu0 0.0
    %2408 = vmatprep.subr.mxu0 0.0
    %2409 = vmatpush1.msra.mxu0 0.0
    %2410 = vmatprep.subr.mxu0 0.0
    %2411 = vmatpush1.msra.mxu0 0.0
    %2412 = vmatprep.subr.mxu0 0.0
    %2413 = vmatpush1.msra.mxu0 0.0
    %2414 = vmatprep.subr.mxu0 0.0
    %2415 = vmatpush1.msra.mxu0 0.0
    %2416 = vmatprep.subr.mxu0 0.0
    %2417 = vmatpush1.msra.mxu0 0.0
    %2418 = vmatprep.subr.mxu0 0.0
    %2419 = vmatpush1.msra.mxu0 0.0
    %2420 = vmatprep.subr.mxu0 0.0
    %2421 = vmatpush1.msra.mxu0 0.0
    %2422 = vmatprep.subr.mxu0 0.0
    %2423 = vmatpush1.msra.mxu0 0.0
    %2424 = vmatprep.subr.mxu0 0.0
    %2425 = vmatpush1.msra.mxu0 0.0
    %2426 = vmatprep.subr.mxu0 0.0
    %2427 = vmatpush1.msra.mxu0 0.0
    %2428 = vmatprep.subr.mxu0 0.0
    %2429 = vmatpush1.msra.mxu0 0.0
    %2430 = vmatprep.subr.mxu0 0.0
    %2431 = vmatpush1.msra.mxu0 0.0
    %2432 = vmatprep.subr.mxu0 0.0
    %2433 = vmatpush1.msra.mxu0 0.0
    %2434 = vmatprep.subr.mxu0 0.0
    %2435 = vmatpush1.msra.mxu0 0.0
    %2436 = vmatprep.subr.mxu0 0.0
    %2437 = vmatpush1.msra.mxu0 0.0
    %2438 = vmatprep.subr.mxu0 0.0
    %2439 = vmatpush1.msra.mxu0 0.0
    %2440 = vmatprep.subr.mxu0 0.0
    %2441 = vmatpush1.msra.mxu0 0.0
    %2442 = vmatprep.subr.mxu0 0.0
    %2443 = vmatpush1.msra.mxu0 0.0
    %2444 = vmatprep.subr.mxu0 0.0
    %2445 = vmatpush1.msra.mxu0 0.0
    %2446 = vmatprep.subr.mxu0 0.0
    %2447 = vmatpush1.msra.mxu0 0.0
    %2448 = vmatprep.subr.mxu0 0.0
    %2449 = vmatpush1.msra.mxu0 0.0
    %2450 = vmatprep.subr.mxu0 0.0
    %2451 = vmatpush1.msra.mxu0 0.0
    %2452 = vmatprep.subr.mxu0 0.0
    %2453 = vmatpush1.msra.mxu0 0.0
    %2454 = vmatprep.subr.mxu0 0.0
    %2455 = vmatpush1.msra.mxu0 0.0
    %2456 = vmatprep.mubr.f32.mxu0 0.0
    %v2457 = vand.u32 %v1799, 4294901760
    %v2458 = vsub.f32 %v1799, %v2457
    %v2459 = vand.u32 %v2458, 4294901760
    %v2460 = vsub.f32 %v2458, %v2459
    %v2461 = vand.u32 %v2460, 4294901760
    %2462 = vmatmul.mubr.f32.gmra.mrb[0].mxu0 %v2461
    %v2463 = vpop.f32.mrb[0].mxu0
    %v2464 = vadd.f32 %v1796, %v2463
    %v2465 = vpop.f32.mrb[0].mxu0
    %v2466 = vadd.f32 %v1796, %v2465
    %2467 = vdwg.mxu0
    %v2468 = vand.u32 %v1775, 4294901760
    %v2469 = vsub.f32 %v1775, %v2468
    %v2470 = vand.u32 %v2469, 4294901760
    %v2471 = vsub.f32 %v2469, %v2470
    %v2472 = vand.u32 %v2471, 4294901760
    %2473 = vmatprep.subr.mxu0 %v2472
    %v2474 = vand.u32 %v1774, 4294901760
    %v2475 = vsub.f32 %v1774, %v2474
    %v2476 = vand.u32 %v2475, 4294901760
    %v2477 = vsub.f32 %v2475, %v2476
    %v2478 = vand.u32 %v2477, 4294901760
    %2479 = vmatpush1.msra.mxu0 %v2478
    %v2480 = vand.u32 %v1779, 4294901760
    %v2481 = vsub.f32 %v1779, %v2480
    %v2482 = vand.u32 %v2481, 4294901760
    %v2483 = vsub.f32 %v2481, %v2482
    %v2484 = vand.u32 %v2483, 4294901760
    %2485 = vmatprep.subr.mxu0 %v2484
    %v2486 = vand.u32 %v1778, 4294901760
    %v2487 = vsub.f32 %v1778, %v2486
    %v2488 = vand.u32 %v2487, 4294901760
    %v2489 = vsub.f32 %v2487, %v2488
    %v2490 = vand.u32 %v2489, 4294901760
    %2491 = vmatpush1.msra.mxu0 %v2490
    %v2492 = vand.u32 %v1783, 4294901760
    %v2493 = vsub.f32 %v1783, %v2492
    %v2494 = vand.u32 %v2493, 4294901760
    %v2495 = vsub.f32 %v2493, %v2494
    %v2496 = vand.u32 %v2495, 4294901760
    %2497 = vmatprep.subr.mxu0 %v2496
    %v2498 = vand.u32 %v1782, 4294901760
    %v2499 = vsub.f32 %v1782, %v2498
    %v2500 = vand.u32 %v2499, 4294901760
    %v2501 = vsub.f32 %v2499, %v2500
    %v2502 = vand.u32 %v2501, 4294901760
    %2503 = vmatpush1.msra.mxu0 %v2502
    %v2504 = vand.u32 %v1787, 4294901760
    %v2505 = vsub.f32 %v1787, %v2504
    %v2506 = vand.u32 %v2505, 4294901760
    %v2507 = vsub.f32 %v2505, %v2506
    %v2508 = vand.u32 %v2507, 4294901760
    %2509 = vmatprep.subr.mxu0 %v2508
    %v2510 = vand.u32 %v1786, 4294901760
    %v2511 = vsub.f32 %v1786, %v2510
    %v2512 = vand.u32 %v2511, 4294901760
    %v2513 = vsub.f32 %v2511, %v2512
    %v2514 = vand.u32 %v2513, 4294901760
    %2515 = vmatpush1.msra.mxu0 %v2514
    %v2516 = vand.u32 %v1811, 4294901760
    %v2517 = vsub.f32 %v1811, %v2516
    %v2518 = vand.u32 %v2517, 4294901760
    %v2519 = vsub.f32 %v2517, %v2518
    %v2520 = vand.u32 %v2519, 4294901760
    %2521 = vmatprep.subr.mxu0 %v2520
    %v2522 = vand.u32 %v1808, 4294901760
    %v2523 = vsub.f32 %v1808, %v2522
    %v2524 = vand.u32 %v2523, 4294901760
    %v2525 = vsub.f32 %v2523, %v2524
    %v2526 = vand.u32 %v2525, 4294901760
    %2527 = vmatpush1.msra.mxu0 %v2526
    %2528 = vmatprep.subr.mxu0 0.0
    %2529 = vmatpush1.msra.mxu0 0.0
    %2530 = vmatprep.subr.mxu0 0.0
    %2531 = vmatpush1.msra.mxu0 0.0
    %2532 = vmatprep.subr.mxu0 0.0
    %2533 = vmatpush1.msra.mxu0 0.0
    %2534 = vmatprep.subr.mxu0 0.0
    %2535 = vmatpush1.msra.mxu0 0.0
    %2536 = vmatprep.subr.mxu0 0.0
    %2537 = vmatpush1.msra.mxu0 0.0
    %2538 = vmatprep.subr.mxu0 0.0
    %2539 = vmatpush1.msra.mxu0 0.0
    %2540 = vmatprep.subr.mxu0 0.0
    %2541 = vmatpush1.msra.mxu0 0.0
    %2542 = vmatprep.subr.mxu0 0.0
    %2543 = vmatpush1.msra.mxu0 0.0
    %2544 = vmatprep.subr.mxu0 0.0
    %2545 = vmatpush1.msra.mxu0 0.0
    %2546 = vmatprep.subr.mxu0 0.0
    %2547 = vmatpush1.msra.mxu0 0.0
    %2548 = vmatprep.subr.mxu0 0.0
    %2549 = vmatpush1.msra.mxu0 0.0
    %2550 = vmatprep.subr.mxu0 0.0
    %2551 = vmatpush1.msra.mxu0 0.0
    %2552 = vmatprep.subr.mxu0 0.0
    %2553 = vmatpush1.msra.mxu0 0.0
    %2554 = vmatprep.subr.mxu0 0.0
    %2555 = vmatpush1.msra.mxu0 0.0
    %2556 = vmatprep.subr.mxu0 0.0
    %2557 = vmatpush1.msra.mxu0 0.0
    %2558 = vmatprep.subr.mxu0 0.0
    %2559 = vmatpush1.msra.mxu0 0.0
    %2560 = vmatprep.subr.mxu0 0.0
    %2561 = vmatpush1.msra.mxu0 0.0
    %2562 = vmatprep.subr.mxu0 0.0
    %2563 = vmatpush1.msra.mxu0 0.0
    %2564 = vmatprep.subr.mxu0 0.0
    %2565 = vmatpush1.msra.mxu0 0.0
    %2566 = vmatprep.subr.mxu0 0.0
    %2567 = vmatpush1.msra.mxu0 0.0
    %2568 = vmatprep.subr.mxu0 0.0
    %2569 = vmatpush1.msra.mxu0 0.0
    %2570 = vmatprep.subr.mxu0 0.0
    %2571 = vmatpush1.msra.mxu0 0.0
    %2572 = vmatprep.subr.mxu0 0.0
    %2573 = vmatpush1.msra.mxu0 0.0
    %2574 = vmatprep.subr.mxu0 0.0
    %2575 = vmatpush1.msra.mxu0 0.0
    %2576 = vmatprep.subr.mxu0 0.0
    %2577 = vmatpush1.msra.mxu0 0.0
    %2578 = vmatprep.subr.mxu0 0.0
    %2579 = vmatpush1.msra.mxu0 0.0
    %2580 = vmatprep.subr.mxu0 0.0
    %2581 = vmatpush1.msra.mxu0 0.0
    %2582 = vmatprep.mubr.f32.mxu0 0.0
    %v2583 = vand.u32 %v1799, 4294901760
    %2584 = vmatmul.mubr.f32.gmra.mrb[0].mxu0 %v2583
    %v2585 = vpop.f32.mrb[0].mxu0
    %v2586 = vadd.f32 %v2464, %v2585
    %v2587 = vpop.f32.mrb[0].mxu0
    %v2588 = vadd.f32 %v2466, %v2587
    %2589 = vdwg.mxu0
    %v2590 = vand.u32 %v1775, 4294901760
    %v2591 = vsub.f32 %v1775, %v2590
    %2592 = vmatprep.subr.mxu0 %v2591
    %v2593 = vand.u32 %v1774, 4294901760
    %v2594 = vsub.f32 %v1774, %v2593
    %2595 = vmatpush1.msra.mxu0 %v2594
    %v2596 = vand.u32 %v1779, 4294901760
    %v2597 = vsub.f32 %v1779, %v2596
    %2598 = vmatprep.subr.mxu0 %v2597
    %v2599 = vand.u32 %v1778, 4294901760
    %v2600 = vsub.f32 %v1778, %v2599
    %2601 = vmatpush1.msra.mxu0 %v2600
    %v2602 = vand.u32 %v1783, 4294901760
    %v2603 = vsub.f32 %v1783, %v2602
    %2604 = vmatprep.subr.mxu0 %v2603
    %v2605 = vand.u32 %v1782, 4294901760
    %v2606 = vsub.f32 %v1782, %v2605
    %2607 = vmatpush1.msra.mxu0 %v2606
    %v2608 = vand.u32 %v1787, 4294901760
    %v2609 = vsub.f32 %v1787, %v2608
    %2610 = vmatprep.subr.mxu0 %v2609
    %v2611 = vand.u32 %v1786, 4294901760
    %v2612 = vsub.f32 %v1786, %v2611
    %2613 = vmatpush1.msra.mxu0 %v2612
    %v2614 = vand.u32 %v1811, 4294901760
    %v2615 = vsub.f32 %v1811, %v2614
    %2616 = vmatprep.subr.mxu0 %v2615
    %v2617 = vand.u32 %v1808, 4294901760
    %v2618 = vsub.f32 %v1808, %v2617
    %2619 = vmatpush1.msra.mxu0 %v2618
    %2620 = vmatprep.subr.mxu0 0.0
    %2621 = vmatpush1.msra.mxu0 0.0
    %2622 = vmatprep.subr.mxu0 0.0
    %2623 = vmatpush1.msra.mxu0 0.0
    %2624 = vmatprep.subr.mxu0 0.0
    %2625 = vmatpush1.msra.mxu0 0.0
    %2626 = vmatprep.subr.mxu0 0.0
    %2627 = vmatpush1.msra.mxu0 0.0
    %2628 = vmatprep.subr.mxu0 0.0
    %2629 = vmatpush1.msra.mxu0 0.0
    %2630 = vmatprep.subr.mxu0 0.0
    %2631 = vmatpush1.msra.mxu0 0.0
    %2632 = vmatprep.subr.mxu0 0.0
    %2633 = vmatpush1.msra.mxu0 0.0
    %2634 = vmatprep.subr.mxu0 0.0
    %2635 = vmatpush1.msra.mxu0 0.0
    %2636 = vmatprep.subr.mxu0 0.0
    %2637 = vmatpush1.msra.mxu0 0.0
    %2638 = vmatprep.subr.mxu0 0.0
    %2639 = vmatpush1.msra.mxu0 0.0
    %2640 = vmatprep.subr.mxu0 0.0
    %2641 = vmatpush1.msra.mxu0 0.0
    %2642 = vmatprep.subr.mxu0 0.0
    %2643 = vmatpush1.msra.mxu0 0.0
    %2644 = vmatprep.subr.mxu0 0.0
    %2645 = vmatpush1.msra.mxu0 0.0
    %2646 = vmatprep.subr.mxu0 0.0
    %2647 = vmatpush1.msra.mxu0 0.0
    %2648 = vmatprep.subr.mxu0 0.0
    %2649 = vmatpush1.msra.mxu0 0.0
    %2650 = vmatprep.subr.mxu0 0.0
    %2651 = vmatpush1.msra.mxu0 0.0
    %2652 = vmatprep.subr.mxu0 0.0
    %2653 = vmatpush1.msra.mxu0 0.0
    %2654 = vmatprep.subr.mxu0 0.0
    %2655 = vmatpush1.msra.mxu0 0.0
    %2656 = vmatprep.subr.mxu0 0.0
    %2657 = vmatpush1.msra.mxu0 0.0
    %2658 = vmatprep.subr.mxu0 0.0
    %2659 = vmatpush1.msra.mxu0 0.0
    %2660 = vmatprep.subr.mxu0 0.0
    %2661 = vmatpush1.msra.mxu0 0.0
    %2662 = vmatprep.subr.mxu0 0.0
    %2663 = vmatpush1.msra.mxu0 0.0
    %2664 = vmatprep.subr.mxu0 0.0
    %2665 = vmatpush1.msra.mxu0 0.0
    %2666 = vmatprep.subr.mxu0 0.0
    %2667 = vmatpush1.msra.mxu0 0.0
    %2668 = vmatprep.subr.mxu0 0.0
    %2669 = vmatpush1.msra.mxu0 0.0
    %2670 = vmatprep.subr.mxu0 0.0
    %2671 = vmatpush1.msra.mxu0 0.0
    %2672 = vmatprep.subr.mxu0 0.0
    %2673 = vmatpush1.msra.mxu0 0.0
    %2674 = vmatprep.mubr.f32.mxu0 0.0
    %v2675 = vand.u32 %v1799, 4294901760
    %v2676 = vsub.f32 %v1799, %v2675
    %2677 = vmatmul.mubr.f32.gmra.mrb[0].mxu0 %v2676
    %v2678 = vpop.f32.mrb[0].mxu0
    %v2679 = vadd.f32 %v2586, %v2678
    %v2680 = vpop.f32.mrb[0].mxu0
    %v2681 = vadd.f32 %v2588, %v2680
    %2682 = vdwg.mxu0
    %v2683 = vand.u32 %v1775, 4294901760
    %2684 = vmatprep.subr.mxu0 %v2683
    %v2685 = vand.u32 %v1774, 4294901760
    %2686 = vmatpush1.msra.mxu0 %v2685
    %v2687 = vand.u32 %v1779, 4294901760
    %2688 = vmatprep.subr.mxu0 %v2687
    %v2689 = vand.u32 %v1778, 4294901760
    %2690 = vmatpush1.msra.mxu0 %v2689
    %v2691 = vand.u32 %v1783, 4294901760
    %2692 = vmatprep.subr.mxu0 %v2691
    %v2693 = vand.u32 %v1782, 4294901760
    %2694 = vmatpush1.msra.mxu0 %v2693
    %v2695 = vand.u32 %v1787, 4294901760
    %2696 = vmatprep.subr.mxu0 %v2695
    %v2697 = vand.u32 %v1786, 4294901760
    %2698 = vmatpush1.msra.mxu0 %v2697
    %v2699 = vand.u32 %v1811, 4294901760
    %2700 = vmatprep.subr.mxu0 %v2699
    %v2701 = vand.u32 %v1808, 4294901760
    %2702 = vmatpush1.msra.mxu0 %v2701
    %2703 = vmatprep.subr.mxu0 0.0
    %2704 = vmatpush1.msra.mxu0 0.0
    %2705 = vmatprep.subr.mxu0 0.0
    %2706 = vmatpush1.msra.mxu0 0.0
    %2707 = vmatprep.subr.mxu0 0.0
    %2708 = vmatpush1.msra.mxu0 0.0
    %2709 = vmatprep.subr.mxu0 0.0
    %2710 = vmatpush1.msra.mxu0 0.0
    %2711 = vmatprep.subr.mxu0 0.0
    %2712 = vmatpush1.msra.mxu0 0.0
    %2713 = vmatprep.subr.mxu0 0.0
    %2714 = vmatpush1.msra.mxu0 0.0
    %2715 = vmatprep.subr.mxu0 0.0
    %2716 = vmatpush1.msra.mxu0 0.0
    %2717 = vmatprep.subr.mxu0 0.0
    %2718 = vmatpush1.msra.mxu0 0.0
    %2719 = vmatprep.subr.mxu0 0.0
    %2720 = vmatpush1.msra.mxu0 0.0
    %2721 = vmatprep.subr.mxu0 0.0
    %2722 = vmatpush1.msra.mxu0 0.0
    %2723 = vmatprep.subr.mxu0 0.0
    %2724 = vmatpush1.msra.mxu0 0.0
    %2725 = vmatprep.subr.mxu0 0.0
    %2726 = vmatpush1.msra.mxu0 0.0
    %2727 = vmatprep.subr.mxu0 0.0
    %2728 = vmatpush1.msra.mxu0 0.0
    %2729 = vmatprep.subr.mxu0 0.0
    %2730 = vmatpush1.msra.mxu0 0.0
    %2731 = vmatprep.subr.mxu0 0.0
    %2732 = vmatpush1.msra.mxu0 0.0
    %2733 = vmatprep.subr.mxu0 0.0
    %2734 = vmatpush1.msra.mxu0 0.0
    %2735 = vmatprep.subr.mxu0 0.0
    %2736 = vmatpush1.msra.mxu0 0.0
    %2737 = vmatprep.subr.mxu0 0.0
    %2738 = vmatpush1.msra.mxu0 0.0
    %2739 = vmatprep.subr.mxu0 0.0
    %2740 = vmatpush1.msra.mxu0 0.0
    %2741 = vmatprep.subr.mxu0 0.0
    %2742 = vmatpush1.msra.mxu0 0.0
    %2743 = vmatprep.subr.mxu0 0.0
    %2744 = vmatpush1.msra.mxu0 0.0
    %2745 = vmatprep.subr.mxu0 0.0
    %2746 = vmatpush1.msra.mxu0 0.0
    %2747 = vmatprep.subr.mxu0 0.0
    %2748 = vmatpush1.msra.mxu0 0.0
    %2749 = vmatprep.subr.mxu0 0.0
    %2750 = vmatpush1.msra.mxu0 0.0
    %2751 = vmatprep.subr.mxu0 0.0
    %2752 = vmatpush1.msra.mxu0 0.0
    %2753 = vmatprep.subr.mxu0 0.0
    %2754 = vmatpush1.msra.mxu0 0.0
    %2755 = vmatprep.subr.mxu0 0.0
    %2756 = vmatpush1.msra.mxu0 0.0
    %2757 = vmatprep.mubr.f32.mxu0 0.0
    %v2758 = vand.u32 %v1799, 4294901760
    %v2759 = vsub.f32 %v1799, %v2758
    %v2760 = vand.u32 %v2759, 4294901760
    %2761 = vmatmul.mubr.f32.gmra.mrb[0].mxu0 %v2760
    %v2762 = vpop.f32.mrb[0].mxu0
    %v2763 = vadd.f32 %v2679, %v2762
    %v2764 = vpop.f32.mrb[0].mxu0
    %v2765 = vadd.f32 %v2681, %v2764
    %2766 = vdwg.mxu0
    %v2767 = vand.u32 %v1775, 4294901760
    %v2768 = vsub.f32 %v1775, %v2767
    %v2769 = vand.u32 %v2768, 4294901760
    %2770 = vmatprep.subr.mxu0 %v2769
    %v2771 = vand.u32 %v1774, 4294901760
    %v2772 = vsub.f32 %v1774, %v2771
    %v2773 = vand.u32 %v2772, 4294901760
    %2774 = vmatpush1.msra.mxu0 %v2773
    %v2775 = vand.u32 %v1779, 4294901760
    %v2776 = vsub.f32 %v1779, %v2775
    %v2777 = vand.u32 %v2776, 4294901760
    %2778 = vmatprep.subr.mxu0 %v2777
    %v2779 = vand.u32 %v1778, 4294901760
    %v2780 = vsub.f32 %v1778, %v2779
    %v2781 = vand.u32 %v2780, 4294901760
    %2782 = vmatpush1.msra.mxu0 %v2781
    %v2783 = vand.u32 %v1783, 4294901760
    %v2784 = vsub.f32 %v1783, %v2783
    %v2785 = vand.u32 %v2784, 4294901760
    %2786 = vmatprep.subr.mxu0 %v2785
    %v2787 = vand.u32 %v1782, 4294901760
    %v2788 = vsub.f32 %v1782, %v2787
    %v2789 = vand.u32 %v2788, 4294901760
    %2790 = vmatpush1.msra.mxu0 %v2789
    %v2791 = vand.u32 %v1787, 4294901760
    %v2792 = vsub.f32 %v1787, %v2791
    %v2793 = vand.u32 %v2792, 4294901760
    %2794 = vmatprep.subr.mxu0 %v2793
    %v2795 = vand.u32 %v1786, 4294901760
    %v2796 = vsub.f32 %v1786, %v2795
    %v2797 = vand.u32 %v2796, 4294901760
    %2798 = vmatpush1.msra.mxu0 %v2797
    %v2799 = vand.u32 %v1811, 4294901760
    %v2800 = vsub.f32 %v1811, %v2799
    %v2801 = vand.u32 %v2800, 4294901760
    %2802 = vmatprep.subr.mxu0 %v2801
    %v2803 = vand.u32 %v1808, 4294901760
    %v2804 = vsub.f32 %v1808, %v2803
    %v2805 = vand.u32 %v2804, 4294901760
    %2806 = vmatpush1.msra.mxu0 %v2805
    %2807 = vmatprep.subr.mxu0 0.0
    %2808 = vmatpush1.msra.mxu0 0.0
    %2809 = vmatprep.subr.mxu0 0.0
    %2810 = vmatpush1.msra.mxu0 0.0
    %2811 = vmatprep.subr.mxu0 0.0
    %2812 = vmatpush1.msra.mxu0 0.0
    %2813 = vmatprep.subr.mxu0 0.0
    %2814 = vmatpush1.msra.mxu0 0.0
    %2815 = vmatprep.subr.mxu0 0.0
    %2816 = vmatpush1.msra.mxu0 0.0
    %2817 = vmatprep.subr.mxu0 0.0
    %2818 = vmatpush1.msra.mxu0 0.0
    %2819 = vmatprep.subr.mxu0 0.0
    %2820 = vmatpush1.msra.mxu0 0.0
    %2821 = vmatprep.subr.mxu0 0.0
    %2822 = vmatpush1.msra.mxu0 0.0
    %2823 = vmatprep.subr.mxu0 0.0
    %2824 = vmatpush1.msra.mxu0 0.0
    %2825 = vmatprep.subr.mxu0 0.0
    %2826 = vmatpush1.msra.mxu0 0.0
    %2827 = vmatprep.subr.mxu0 0.0
    %2828 = vmatpush1.msra.mxu0 0.0
    %2829 = vmatprep.subr.mxu0 0.0
    %2830 = vmatpush1.msra.mxu0 0.0
    %2831 = vmatprep.subr.mxu0 0.0
    %2832 = vmatpush1.msra.mxu0 0.0
    %2833 = vmatprep.subr.mxu0 0.0
    %2834 = vmatpush1.msra.mxu0 0.0
    %2835 = vmatprep.subr.mxu0 0.0
    %2836 = vmatpush1.msra.mxu0 0.0
    %2837 = vmatprep.subr.mxu0 0.0
    %2838 = vmatpush1.msra.mxu0 0.0
    %2839 = vmatprep.subr.mxu0 0.0
    %2840 = vmatpush1.msra.mxu0 0.0
    %2841 = vmatprep.subr.mxu0 0.0
    %2842 = vmatpush1.msra.mxu0 0.0
    %2843 = vmatprep.subr.mxu0 0.0
    %2844 = vmatpush1.msra.mxu0 0.0
    %2845 = vmatprep.subr.mxu0 0.0
    %2846 = vmatpush1.msra.mxu0 0.0
    %2847 = vmatprep.subr.mxu0 0.0
    %2848 = vmatpush1.msra.mxu0 0.0
    %2849 = vmatprep.subr.mxu0 0.0
    %2850 = vmatpush1.msra.mxu0 0.0
    %2851 = vmatprep.subr.mxu0 0.0
    %2852 = vmatpush1.msra.mxu0 0.0
    %2853 = vmatprep.subr.mxu0 0.0
    %2854 = vmatpush1.msra.mxu0 0.0
    %2855 = vmatprep.subr.mxu0 0.0
    %2856 = vmatpush1.msra.mxu0 0.0
    %2857 = vmatprep.subr.mxu0 0.0
    %2858 = vmatpush1.msra.mxu0 0.0
    %2859 = vmatprep.subr.mxu0 0.0
    %2860 = vmatpush1.msra.mxu0 0.0
    %2861 = vmatprep.mubr.f32.mxu0 0.0
    %v2862 = vand.u32 %v1799, 4294901760
    %2863 = vmatmul.mubr.f32.gmra.mrb[0].mxu0 %v2862
    %v2864 = vpop.f32.mrb[0].mxu0
    %v2865 = vadd.f32 %v2763, %v2864
    %v2866 = vpop.f32.mrb[0].mxu0
    %v2867 = vadd.f32 %v2765, %v2866
    %2868 = vdwg.mxu0
    %v2869 = vand.u32 %v1775, 4294901760
    %2870 = vmatprep.subr.mxu0 %v2869
    %v2871 = vand.u32 %v1774, 4294901760
    %2872 = vmatpush1.msra.mxu0 %v2871
    %v2873 = vand.u32 %v1779, 4294901760
    %2874 = vmatprep.subr.mxu0 %v2873
    %v2875 = vand.u32 %v1778, 4294901760
    %2876 = vmatpush1.msra.mxu0 %v2875
    %v2877 = vand.u32 %v1783, 4294901760
    %2878 = vmatprep.subr.mxu0 %v2877
    %v2879 = vand.u32 %v1782, 4294901760
    %2880 = vmatpush1.msra.mxu0 %v2879
    %v2881 = vand.u32 %v1787, 4294901760
    %2882 = vmatprep.subr.mxu0 %v2881
    %v2883 = vand.u32 %v1786, 4294901760
    %2884 = vmatpush1.msra.mxu0 %v2883
    %v2885 = vand.u32 %v1811, 4294901760
    %2886 = vmatprep.subr.mxu0 %v2885
    %v2887 = vand.u32 %v1808, 4294901760
    %2888 = vmatpush1.msra.mxu0 %v2887
    %2889 = vmatprep.subr.mxu0 0.0
    %2890 = vmatpush1.msra.mxu0 0.0
    %2891 = vmatprep.subr.mxu0 0.0
    %2892 = vmatpush1.msra.mxu0 0.0
    %2893 = vmatprep.subr.mxu0 0.0
    %2894 = vmatpush1.msra.mxu0 0.0
    %2895 = vmatprep.subr.mxu0 0.0
    %2896 = vmatpush1.msra.mxu0 0.0
    %2897 = vmatprep.subr.mxu0 0.0
    %2898 = vmatpush1.msra.mxu0 0.0
    %2899 = vmatprep.subr.mxu0 0.0
    %2900 = vmatpush1.msra.mxu0 0.0
    %2901 = vmatprep.subr.mxu0 0.0
    %2902 = vmatpush1.msra.mxu0 0.0
    %2903 = vmatprep.subr.mxu0 0.0
    %2904 = vmatpush1.msra.mxu0 0.0
    %2905 = vmatprep.subr.mxu0 0.0
    %2906 = vmatpush1.msra.mxu0 0.0
    %2907 = vmatprep.subr.mxu0 0.0
    %2908 = vmatpush1.msra.mxu0 0.0
    %2909 = vmatprep.subr.mxu0 0.0
    %2910 = vmatpush1.msra.mxu0 0.0
    %2911 = vmatprep.subr.mxu0 0.0
    %2912 = vmatpush1.msra.mxu0 0.0
    %2913 = vmatprep.subr.mxu0 0.0
    %2914 = vmatpush1.msra.mxu0 0.0
    %2915 = vmatprep.subr.mxu0 0.0
    %2916 = vmatpush1.msra.mxu0 0.0
    %2917 = vmatprep.subr.mxu0 0.0
    %2918 = vmatpush1.msra.mxu0 0.0
    %2919 = vmatprep.subr.mxu0 0.0
    %2920 = vmatpush1.msra.mxu0 0.0
    %2921 = vmatprep.subr.mxu0 0.0
    %2922 = vmatpush1.msra.mxu0 0.0
    %2923 = vmatprep.subr.mxu0 0.0
    %2924 = vmatpush1.msra.mxu0 0.0
    %2925 = vmatprep.subr.mxu0 0.0
    %2926 = vmatpush1.msra.mxu0 0.0
    %2927 = vmatprep.subr.mxu0 0.0
    %2928 = vmatpush1.msra.mxu0 0.0
    %2929 = vmatprep.subr.mxu0 0.0
    %2930 = vmatpush1.msra.mxu0 0.0
    %2931 = vmatprep.subr.mxu0 0.0
    %2932 = vmatpush1.msra.mxu0 0.0
    %2933 = vmatprep.subr.mxu0 0.0
    %2934 = vmatpush1.msra.mxu0 0.0
    %2935 = vmatprep.subr.mxu0 0.0
    %2936 = vmatpush1.msra.mxu0 0.0
    %2937 = vmatprep.subr.mxu0 0.0
    %2938 = vmatpush1.msra.mxu0 0.0
    %2939 = vmatprep.subr.mxu0 0.0
    %2940 = vmatpush1.msra.mxu0 0.0
    %2941 = vmatprep.subr.mxu0 0.0
    %2942 = vmatpush1.msra.mxu0 0.0
    %2943 = vmatprep.mubr.f32.mxu0 0.0
    %v2944 = vand.u32 %v1799, 4294901760
    %2945 = vmatmul.mubr.f32.gmra.mrb[0].mxu0 %v2944
    %v2946 = vpop.f32.mrb[0].mxu0
    %v2947 = vadd.f32 %v2865, %v2946
    %v2948 = vpop.f32.mrb[0].mxu0
    %v2949 = vadd.f32 %v2867, %v2948
    %2950 = vdwg.mxu0
    %v2951 = vld [vmem:[#allocation3] sm:$0xff]
    %v2953 = vcombine.high %v2951, %v2951
    %v2955 = vadd.f32 %v2378, %v2951
    %v2956 = vadd.f32 %v2380, %v2953
    %v2957 = vmax.f32 %v2955, 0.0
    %v2958 = vmax.f32 %v2956, 0.0
    %v2961 = vcombine.low %v2957, %v2958
    %2963 = vst [vmem:[#allocation6] sm:$0xff] %v2961
    %v2964 = vld [vmem:[%s262] sm:$0xff]
    %v2966 = vcombine.high %v2964, %v2964
    %v2968 = vadd.f32 %v2947, %v2964
    %v2969 = vadd.f32 %v2949, %v2966
    %v2970 = vmax.f32 %v2968, 0.0
    %v2971 = vmax.f32 %v2969, 0.0
    %v2974 = vcombine.low %v2970, %v2971
    %s2976 = scalar_lea.vmem [#allocation6], 8
    %2977 = vst [vmem:[%s2976] sm:$0xff] %v2974
    // Predicated region
    $region26: #{tpu_custom_call.1} parent=1 // pred_check
      _
    $region27: #{tpu_custom_call.1} parent=1 // pred_check_branch
      %2979 = sbr.rel (0) target = $region29
    $region28: #{tpu_custom_call.1} parent=1 // pred_region
      %s2981 = ssub.s32 256, 256
      %2982 = vsyncadd [#allocation5], %s2981
      %s2983 = sshll.u32 [#allocation6], 4
      %s2984 = int_to_ptr.vmem [resolvable:$true] %s2983
      %2989 = dma.vmem_to_hbm [thread:$0]  %s2984, 256, %s5, [#allocation5], 128, 128, 8
    $region29: #{tpu_custom_call.1} parent=1 // pred_fallthru
      _
    // Predicated region
    $region30: #{tpu_custom_call.1} parent=1 // pred_check
      _
    $region31: #{tpu_custom_call.1} parent=1 // pred_check_branch
      %2991 = sbr.rel (0) target = $region33
    $region32: #{tpu_custom_call.1} parent=1 // pred_region
      %2992 = dma.done [#allocation5], 256
    $region33: #{tpu_custom_call.1} parent=1 // pred_fallthru
      _
    %2993 = vsyncpa [#allocation4], 1
    %2994 = vsyncpa [#allocation5], 1

</llo_original>
